<compile_context>
chip_gen: v6e
topology: v6e:2x2x1
jax: 0.10.0
libtpu: 0.0.40
codegen_flags: <defaults>
</compile_context>

<pallas_src>
import functools

import jax
import jax.numpy as jnp
from jax.experimental import pallas as pl
from jax.experimental.pallas import tpu as pltpu


def _round_up(x, m):
    return (x + m - 1) // m * m


_COMPILER_PARAMS = pltpu.CompilerParams(
    dimension_semantics=("parallel",),
    vmem_limit_bytes=48 * 1024 * 1024,   # safe on v7x (64 MiB VMEM); plenty for v5e/v6e
)


# ----------------------------------------------------------------------------
# Fused forward kernel: video Linear -> classification Linear, snp two-layer MLP
# ----------------------------------------------------------------------------
def _fused_forward_kernel(vid_ref, snp_ref,
                          wv_ref, bv_ref, wc_ref, bc_ref,
                          w1_ref, b1_ref, w2_ref, b2_ref,
                          cls_ref, vemb_ref, semb_ref):
    # --- video path: embedding, then classification on the in-register embedding ---
    x = vid_ref[...].astype(jnp.bfloat16)                       # cast on VPU, hidden under MXU
    vemb = jnp.dot(x, wv_ref[...], preferred_element_type=jnp.float32) + bv_ref[...]
    vemb_ref[...] = vemb
    cls = jnp.dot(vemb.astype(jnp.bfloat16), wc_ref[...],
                  preferred_element_type=jnp.float32) + bc_ref[...]
    cls_ref[...] = cls                                           # lane-dense (N padded to 128)

    # --- snp path: Linear(snps_size, 2048) -> Linear(2048, E); hidden never leaves VMEM ---
    s = snp_ref[...].astype(jnp.bfloat16)
    h = jnp.dot(s, w1_ref[...], preferred_element_type=jnp.float32) + b1_ref[...]
    semb = jnp.dot(h.astype(jnp.bfloat16), w2_ref[...],
                   preferred_element_type=jnp.float32) + b2_ref[...]
    semb_ref[...] = semb


# ----------------------------------------------------------------------------
# Wrapper
# ----------------------------------------------------------------------------
def _pad_rows(a, mp):
    """Zero-pad the row (M) axis only, keeping the original dtype (no cast)."""
    m = a.shape[0]
    if mp == m:
        return a
    return jnp.zeros((mp,) + a.shape[1:], a.dtype).at[:m].set(a)


def embedding_model_forward(video_input, snps, prep, *, n_classes):
    """Returns (classification, video_embedding, snps_embedding)."""
    M, Kv = video_input.shape
    Ms, Ks = snps.shape
    assert M == Ms
    E = prep["video"]["w"].shape[1]       # embedding_size
    Ncp = prep["clf"]["w"].shape[1]       # n_classes padded to a multiple of 128
    H = prep["snp1"]["w"].shape[1]        # 2048

    # M tiling: tiny batches use a full-extent block (exempt from the 8-row rule,
    # zero padding copies); larger batches pad M and produce >= 2 blocks so the
    # "parallel" axis can shard across v7x TensorCores.
    if M < 16:
        Mp, tm = M, M
    else:
        Mp = _round_up(M, 8)
        tm = _round_up(min(512, max(8, Mp // 2)), 8)
        Mp = _round_up(Mp, tm)

    vid_p = _pad_rows(video_input, Mp)
    snp_p = _pad_rows(snps, Mp)

    cls_p, vemb_p, semb_p = pl.pallas_call(
        _fused_forward_kernel,
        out_shape=(
            jax.ShapeDtypeStruct((Mp, Ncp), jnp.float32),   # classification (padded N)
            jax.ShapeDtypeStruct((Mp, E), jnp.float32),     # video_embedding
            jax.ShapeDtypeStruct((Mp, E), jnp.float32),     # snps_embedding
        ),
        grid_spec=pltpu.PrefetchScalarGridSpec(
            num_scalar_prefetch=0,
            grid=(Mp // tm,),
            in_specs=[
                pl.BlockSpec((tm, Kv), lambda i: (i, 0)),   # video activations (f32)
                pl.BlockSpec((tm, Ks), lambda i: (i, 0)),   # snp activations (f32)
                pl.BlockSpec((Kv, E), lambda i: (0, 0)),    # video weight (bf16, resident)
                pl.BlockSpec((1, E), lambda i: (0, 0)),     # video bias (f32)
                pl.BlockSpec((E, Ncp), lambda i: (0, 0)),   # clf weight (bf16, lane-padded)
                pl.BlockSpec((1, Ncp), lambda i: (0, 0)),   # clf bias (f32)
                pl.BlockSpec((Ks, H), lambda i: (0, 0)),    # snp1 weight (bf16, resident)
                pl.BlockSpec((1, H), lambda i: (0, 0)),     # snp1 bias (f32)
                pl.BlockSpec((H, E), lambda i: (0, 0)),     # snp2 weight (bf16, resident)
                pl.BlockSpec((1, E), lambda i: (0, 0)),     # snp2 bias (f32)
            ],
            out_specs=[
                pl.BlockSpec((tm, Ncp), lambda i: (i, 0)),
                pl.BlockSpec((tm, E), lambda i: (i, 0)),
                pl.BlockSpec((tm, E), lambda i: (i, 0)),
            ],
        ),
        compiler_params=_COMPILER_PARAMS,
    )(vid_p, snp_p,
      prep["video"]["w"], prep["video"]["b"],
      prep["clf"]["w"], prep["clf"]["b"],
      prep["snp1"]["w"], prep["snp1"]["b"],
      prep["snp2"]["w"], prep["snp2"]["b"])

    return cls_p[:M, :n_classes], vemb_p[:M], semb_p[:M]


# ----------------------------------------------------------------------------
# Parameters (PyTorch layout) and one-time prep
# ----------------------------------------------------------------------------
def make_params(key, snps_size, embedding_size, n_classes, video_feat):
    """Synthetic parameters matching the module's shapes (weights in PyTorch (out, in))."""
    ks = jax.random.split(key, 8)

    def xavier(k, out_f, in_f):
        std = (2.0 / (in_f + out_f)) ** 0.5          # xavier_normal, gain=1
        return std * jax.random.normal(k, (out_f, in_f), jnp.float32)

    def bias(k, out_f, in_f):
        bound = 1.0 / (in_f ** 0.5)                  # nn.Linear default bias init
        return jax.random.uniform(k, (out_f,), jnp.float32, -bound, bound)

    return {
        "video": {"w": xavier(ks[0], embedding_size, video_feat),
                  "b": bias(ks[1], embedding_size, video_feat)},
        "snp1": {"w": xavier(ks[2], 2048, snps_size),
                 "b": bias(ks[3], 2048, snps_size)},
        "snp2": {"w": xavier(ks[4], embedding_size, 2048),
                 "b": bias(ks[5], embedding_size, 2048)},
        "clf": {"w": xavier(ks[6], n_classes, embedding_size),
                "b": bias(ks[7], n_classes, embedding_size)},
    }


def prepare_params(params, n_classes):
    """One-time prep OUTSIDE jit: transpose (out,in)->(in,out), cast weights to bf16,
    reshape biases to (1,N), and pad the classifier to 128 output lanes."""
    def prep(p):
        return {"w": jnp.transpose(p["w"]).astype(jnp.bfloat16),
                "b": p["b"].astype(jnp.float32).reshape(1, -1)}

    out = {k: prep(v) for k, v in params.items()}

    ncp = _round_up(n_classes, 128)
    wc, bc = out["clf"]["w"], out["clf"]["b"]
    if ncp != n_classes:
        wc = jnp.zeros((wc.shape[0], ncp), wc.dtype).at[:, :n_classes].set(wc)
        bc = jnp.zeros((1, ncp), bc.dtype).at[:, :n_classes].set(bc)
    out["clf"] = {"w": wc, "b": bc}
    return out


# ----------------------------------------------------------------------------
# Pure-JAX reference (f32 throughout)
# ----------------------------------------------------------------------------
def _reference(video_input, snps, params):
    def lin(x, p):
        return x @ p["w"].T + p["b"]
    vemb = lin(video_input, params["video"])
    cls = lin(vemb, params["clf"])
    semb = lin(lin(snps, params["snp1"]), params["snp2"])
    return cls, vemb, semb


if __name__ == "__main__":
    B = 2
    snps_size = 512
    embedding_size = 128
    n_classes = 10
    video_feat = 256

    key = jax.random.PRNGKey(0)
    k_vid, k_snp, k_par = jax.random.split(key, 3)
    video_input = jax.random.normal(k_vid, (B, video_feat), jnp.float32)
    snps = jax.random.normal(k_snp, (B, snps_size), jnp.float32)

    params = make_params(k_par, snps_size, embedding_size, n_classes, video_feat)
    prep = prepare_params(params, n_classes)     # transpose + bf16 cast + clf lane-pad, done once

    fwd = jax.jit(functools.partial(embedding_model_forward, n_classes=n_classes))
    cls, vemb, semb = jax.block_until_ready(fwd(video_input, snps, prep))

    assert cls.shape == (B, n_classes), cls.shape
    assert vemb.shape == (B, embedding_size), vemb.shape
    assert semb.shape == (B, embedding_size), semb.shape
    assert jnp.all(jnp.isfinite(cls)) and jnp.all(jnp.isfinite(vemb)) and jnp.all(jnp.isfinite(semb))

    # loose tolerance: kernel uses bf16 operands / bf16 hidden with f32 MXU accumulation
    ref_cls, ref_vemb, ref_semb = _reference(video_input, snps, params)
    assert jnp.max(jnp.abs(cls - ref_cls)) < 1e-1
    assert jnp.max(jnp.abs(vemb - ref_vemb)) < 1e-1
    assert jnp.max(jnp.abs(semb - ref_semb)) < 1e-1

    print("KERNEL_OK")
</pallas_src>

<mosaic_0001>
module attributes {stable_mosaic.version = 11 : i64} {
  func.func @_fused_forward_kernel(%arg0: i32, %arg1: memref<2x256xf32, #tpu.memory_space<vmem>>, %arg2: memref<2x512xf32, #tpu.memory_space<vmem>>, %arg3: memref<256x128xbf16, #tpu.memory_space<vmem>>, %arg4: memref<1x128xf32, #tpu.memory_space<vmem>>, %arg5: memref<128x128xbf16, #tpu.memory_space<vmem>>, %arg6: memref<1x128xf32, #tpu.memory_space<vmem>>, %arg7: memref<512x2048xbf16, #tpu.memory_space<vmem>>, %arg8: memref<1x2048xf32, #tpu.memory_space<vmem>>, %arg9: memref<2048x128xbf16, #tpu.memory_space<vmem>>, %arg10: memref<1x128xf32, #tpu.memory_space<vmem>>, %arg11: memref<2x128xf32, #tpu.memory_space<vmem>>, %arg12: memref<2x128xf32, #tpu.memory_space<vmem>>, %arg13: memref<2x128xf32, #tpu.memory_space<vmem>>) attributes {dimension_semantics = [#tpu.dimension_semantics<parallel>], iteration_bounds = array<i64: 1>, scalar_prefetch = 0 : i64, scratch_operands = 0 : i64, tpu.core_type = #tpu.core_type<tc>, window_params = [{transform_indices = @transform_0, window_bounds = array<i64: 2, 256>}, {transform_indices = @transform_1, window_bounds = array<i64: 2, 512>}, {pipeline_mode = #tpu.pipeline_mode<synchronous>, transform_indices = @transform_2, window_bounds = array<i64: 256, 128>}, {pipeline_mode = #tpu.pipeline_mode<synchronous>, transform_indices = @transform_3, window_bounds = array<i64: 1, 128>}, {pipeline_mode = #tpu.pipeline_mode<synchronous>, transform_indices = @transform_4, window_bounds = array<i64: 128, 128>}, {pipeline_mode = #tpu.pipeline_mode<synchronous>, transform_indices = @transform_5, window_bounds = array<i64: 1, 128>}, {pipeline_mode = #tpu.pipeline_mode<synchronous>, transform_indices = @transform_6, window_bounds = array<i64: 512, 2048>}, {pipeline_mode = #tpu.pipeline_mode<synchronous>, transform_indices = @transform_7, window_bounds = array<i64: 1, 2048>}, {pipeline_mode = #tpu.pipeline_mode<synchronous>, transform_indices = @transform_8, window_bounds = array<i64: 2048, 128>}, {pipeline_mode = #tpu.pipeline_mode<synchronous>, transform_indices = @transform_9, window_bounds = array<i64: 1, 128>}, {transform_indices = @transform_10, window_bounds = array<i64: 2, 128>}, {transform_indices = @transform_11, window_bounds = array<i64: 2, 128>}, {transform_indices = @transform_12, window_bounds = array<i64: 2, 128>}]} {
    %c0 = arith.constant 0 : index
    %c0_0 = arith.constant 0 : index
    %0 = vector.load %arg1[%c0, %c0_0] : memref<2x256xf32, #tpu.memory_space<vmem>>, vector<2x256xf32>
    %1 = arith.truncf %0 : vector<2x256xf32> to vector<2x256xbf16>
    %c0_1 = arith.constant 0 : index
    %c0_2 = arith.constant 0 : index
    %2 = vector.load %arg3[%c0_1, %c0_2] : memref<256x128xbf16, #tpu.memory_space<vmem>>, vector<256x128xbf16>
    %cst = arith.constant dense<0.000000e+00> : vector<2x128xf32>
    %3 = tpu.matmul %1, %2, %cst {dimension_numbers = #tpu.dot_dimension_numbers<[1], [0], [0], [1], [0, 0, 1, 1], [], []>} : vector<2x256xbf16>, vector<256x128xbf16>, vector<2x128xf32> -> vector<2x128xf32>
    %c0_3 = arith.constant 0 : index
    %c0_4 = arith.constant 0 : index
    %4 = vector.load %arg4[%c0_3, %c0_4] : memref<1x128xf32, #tpu.memory_space<vmem>>, vector<1x128xf32>
    %5 = vector.broadcast %4 : vector<1x128xf32> to vector<2x128xf32>
    %6 = arith.addf %3, %5 : vector<2x128xf32>
    %c0_5 = arith.constant 0 : index
    %c0_6 = arith.constant 0 : index
    %7 = vector.load %arg12[%c0_5, %c0_6] : memref<2x128xf32, #tpu.memory_space<vmem>>, vector<2x128xf32>
    tpu.vector_store %arg12[%c0_5, %c0_6], %6 {strides = array<i32>} : memref<2x128xf32, #tpu.memory_space<vmem>>, vector<2x128xf32>,
    %8 = arith.truncf %6 : vector<2x128xf32> to vector<2x128xbf16>
    %c0_7 = arith.constant 0 : index
    %c0_8 = arith.constant 0 : index
    %9 = vector.load %arg5[%c0_7, %c0_8] : memref<128x128xbf16, #tpu.memory_space<vmem>>, vector<128x128xbf16>
    %cst_9 = arith.constant dense<0.000000e+00> : vector<2x128xf32>
    %10 = tpu.matmul %8, %9, %cst_9 {dimension_numbers = #tpu.dot_dimension_numbers<[1], [0], [0], [1], [0, 0, 1, 1], [], []>} : vector<2x128xbf16>, vector<128x128xbf16>, vector<2x128xf32> -> vector<2x128xf32>
    %c0_10 = arith.constant 0 : index
    %c0_11 = arith.constant 0 : index
    %11 = vector.load %arg6[%c0_10, %c0_11] : memref<1x128xf32, #tpu.memory_space<vmem>>, vector<1x128xf32>
    %12 = vector.broadcast %11 : vector<1x128xf32> to vector<2x128xf32>
    %13 = arith.addf %10, %12 : vector<2x128xf32>
    %c0_12 = arith.constant 0 : index
    %c0_13 = arith.constant 0 : index
    %14 = vector.load %arg11[%c0_12, %c0_13] : memref<2x128xf32, #tpu.memory_space<vmem>>, vector<2x128xf32>
    tpu.vector_store %arg11[%c0_12, %c0_13], %13 {strides = array<i32>} : memref<2x128xf32, #tpu.memory_space<vmem>>, vector<2x128xf32>,
    %c0_14 = arith.constant 0 : index
    %c0_15 = arith.constant 0 : index
    %15 = vector.load %arg2[%c0_14, %c0_15] : memref<2x512xf32, #tpu.memory_space<vmem>>, vector<2x512xf32>
    %16 = arith.truncf %15 : vector<2x512xf32> to vector<2x512xbf16>
    %c0_16 = arith.constant 0 : index
    %c0_17 = arith.constant 0 : index
    %17 = vector.load %arg7[%c0_16, %c0_17] : memref<512x2048xbf16, #tpu.memory_space<vmem>>, vector<512x2048xbf16>
    %cst_18 = arith.constant dense<0.000000e+00> : vector<2x2048xf32>
    %18 = tpu.matmul %16, %17, %cst_18 {dimension_numbers = #tpu.dot_dimension_numbers<[1], [0], [0], [1], [0, 0, 1, 1], [], []>} : vector<2x512xbf16>, vector<512x2048xbf16>, vector<2x2048xf32> -> vector<2x2048xf32>
    %c0_19 = arith.constant 0 : index
    %c0_20 = arith.constant 0 : index
    %19 = vector.load %arg8[%c0_19, %c0_20] : memref<1x2048xf32, #tpu.memory_space<vmem>>, vector<1x2048xf32>
    %20 = vector.broadcast %19 : vector<1x2048xf32> to vector<2x2048xf32>
    %21 = arith.addf %18, %20 : vector<2x2048xf32>
    %22 = arith.truncf %21 : vector<2x2048xf32> to vector<2x2048xbf16>
    %c0_21 = arith.constant 0 : index
    %c0_22 = arith.constant 0 : index
    %23 = vector.load %arg9[%c0_21, %c0_22] : memref<2048x128xbf16, #tpu.memory_space<vmem>>, vector<2048x128xbf16>
    %cst_23 = arith.constant dense<0.000000e+00> : vector<2x128xf32>
    %24 = tpu.matmul %22, %23, %cst_23 {dimension_numbers = #tpu.dot_dimension_numbers<[1], [0], [0], [1], [0, 0, 1, 1], [], []>} : vector<2x2048xbf16>, vector<2048x128xbf16>, vector<2x128xf32> -> vector<2x128xf32>
    %c0_24 = arith.constant 0 : index
    %c0_25 = arith.constant 0 : index
    %25 = vector.load %arg10[%c0_24, %c0_25] : memref<1x128xf32, #tpu.memory_space<vmem>>, vector<1x128xf32>
    %26 = vector.broadcast %25 : vector<1x128xf32> to vector<2x128xf32>
    %27 = arith.addf %24, %26 : vector<2x128xf32>
    %c0_26 = arith.constant 0 : index
    %c0_27 = arith.constant 0 : index
    %28 = vector.load %arg13[%c0_26, %c0_27] : memref<2x128xf32, #tpu.memory_space<vmem>>, vector<2x128xf32>
    tpu.vector_store %arg13[%c0_26, %c0_27], %27 {strides = array<i32>} : memref<2x128xf32, #tpu.memory_space<vmem>>, vector<2x128xf32>,
    return
  }
  func.func @transform_0(%arg0: i32) -> (i32, i32) {
    %c0_i32 = arith.constant 0 : i32
    %c0_i32_0 = arith.constant 0 : i32
    return %arg0, %c0_i32 : i32, i32
  }
  func.func @transform_1(%arg0: i32) -> (i32, i32) {
    %c0_i32 = arith.constant 0 : i32
    %c0_i32_0 = arith.constant 0 : i32
    return %arg0, %c0_i32 : i32, i32
  }
  func.func @transform_2(%arg0: i32) -> (i32, i32) {
    %c0_i32 = arith.constant 0 : i32
    %c0_i32_0 = arith.constant 0 : i32
    %c0_i32_1 = arith.constant 0 : i32
    return %c0_i32, %c0_i32_0 : i32, i32
  }
  func.func @transform_3(%arg0: i32) -> (i32, i32) {
    %c0_i32 = arith.constant 0 : i32
    %c0_i32_0 = arith.constant 0 : i32
    %c0_i32_1 = arith.constant 0 : i32
    return %c0_i32, %c0_i32_0 : i32, i32
  }
  func.func @transform_4(%arg0: i32) -> (i32, i32) {
    %c0_i32 = arith.constant 0 : i32
    %c0_i32_0 = arith.constant 0 : i32
    %c0_i32_1 = arith.constant 0 : i32
    return %c0_i32, %c0_i32_0 : i32, i32
  }
  func.func @transform_5(%arg0: i32) -> (i32, i32) {
    %c0_i32 = arith.constant 0 : i32
    %c0_i32_0 = arith.constant 0 : i32
    %c0_i32_1 = arith.constant 0 : i32
    return %c0_i32, %c0_i32_0 : i32, i32
  }
  func.func @transform_6(%arg0: i32) -> (i32, i32) {
    %c0_i32 = arith.constant 0 : i32
    %c0_i32_0 = arith.constant 0 : i32
    %c0_i32_1 = arith.constant 0 : i32
    return %c0_i32, %c0_i32_0 : i32, i32
  }
  func.func @transform_7(%arg0: i32) -> (i32, i32) {
    %c0_i32 = arith.constant 0 : i32
    %c0_i32_0 = arith.constant 0 : i32
    %c0_i32_1 = arith.constant 0 : i32
    return %c0_i32, %c0_i32_0 : i32, i32
  }
  func.func @transform_8(%arg0: i32) -> (i32, i32) {
    %c0_i32 = arith.constant 0 : i32
    %c0_i32_0 = arith.constant 0 : i32
    %c0_i32_1 = arith.constant 0 : i32
    return %c0_i32, %c0_i32_0 : i32, i32
  }
  func.func @transform_9(%arg0: i32) -> (i32, i32) {
    %c0_i32 = arith.constant 0 : i32
    %c0_i32_0 = arith.constant 0 : i32
    %c0_i32_1 = arith.constant 0 : i32
    return %c0_i32, %c0_i32_0 : i32, i32
  }
  func.func @transform_10(%arg0: i32) -> (i32, i32) {
    %c0_i32 = arith.constant 0 : i32
    %c0_i32_0 = arith.constant 0 : i32
    return %arg0, %c0_i32 : i32, i32
  }
  func.func @transform_11(%arg0: i32) -> (i32, i32) {
    %c0_i32 = arith.constant 0 : i32
    %c0_i32_0 = arith.constant 0 : i32
    return %arg0, %c0_i32 : i32, i32
  }
  func.func @transform_12(%arg0: i32) -> (i32, i32) {
    %c0_i32 = arith.constant 0 : i32
    %c0_i32_0 = arith.constant 0 : i32
    return %arg0, %c0_i32 : i32, i32
  }
}

</mosaic_0001>

<llo_original>
// kernel: embedding_model_forward.1
$region0: #{embedding_model_forward.1}
  #allocation0 [shape = 'u32[]', space=smem, size = 0x4, offset = 0x4, fixed_abs, tag = 'smem constant byte address 0x4 - core index']
  #allocation1 [shape = 'u32[144,128]{1,0:T(1,128)}', space=vmem, size = 0x12000, scoped, tag = 'internal scratch']
  %s0 = inlined_call_operand.hbm [shape: f32[2,256], index: 0, kind: input, shape index: {}]
  %s1 = inlined_call_operand.hbm [shape: f32[2,512], index: 1, kind: input, shape index: {}]
  %s2 = inlined_call_operand.hbm [shape: bf16[256,128], index: 2, kind: input, shape index: {}]
  %s3 = inlined_call_operand.hbm [shape: f32[1,128], index: 3, kind: input, shape index: {}]
  %s4 = inlined_call_operand.hbm [shape: bf16[128,128], index: 4, kind: input, shape index: {}]
  %s5 = inlined_call_operand.hbm [shape: f32[1,128], index: 5, kind: input, shape index: {}]
  %s6 = inlined_call_operand.hbm [shape: bf16[512,2048], index: 6, kind: input, shape index: {}]
  %s7 = inlined_call_operand.hbm [shape: f32[1,2048], index: 7, kind: input, shape index: {}]
  %s8 = inlined_call_operand.hbm [shape: bf16[2048,128], index: 8, kind: input, shape index: {}]
  %s9 = inlined_call_operand.hbm [shape: f32[1,128], index: 9, kind: input, shape index: {}]
  %s10 = inlined_call_operand.hbm [shape: f32[2,128], index: 10, kind: output, shape index: {0}]
  %s11 = inlined_call_operand.hbm [shape: f32[2,128], index: 11, kind: output, shape index: {1}]
  %s12 = inlined_call_operand.hbm [shape: f32[2,128], index: 12, kind: output, shape index: {2}]
  %13 = xla_tuple %s10, %s11, %s12
  %s14 = sld [smem:[#allocation0]]
  $region106: #{embedding_model_forward.1} parent=0
    _
  %s16 = ssub.s32 1, %s14
  %s17 = scalar_select 0, %s16, %s14
  $region1: #{embedding_model_forward.1} parent=0
    #allocation2 [shape = 'u8[2048]{0}', space=vmem, size = 0x800, scoped, tag = 'input window, operand 0, single buffered']
    #allocation3 [shape = 's32[1]{0}', space=sflag, size = 0x4, scoped, tag = 'scoped memory for embedding_model_forward.1']
    #allocation4 [shape = 's32[1]{0}', space=sflag, size = 0x4, scoped, tag = 'scoped memory for embedding_model_forward.1']
    #allocation5 [shape = 'u8[4096]{0}', space=vmem, size = 0x1000, scoped, tag = 'input window, operand 1, single buffered']
    #allocation6 [shape = 's32[1]{0}', space=sflag, size = 0x4, scoped, tag = 'scoped memory for embedding_model_forward.1']
    #allocation7 [shape = 'u8[65536]{0}', space=vmem, size = 0x10000, scoped, tag = 'input window, operand 2, single buffered']
    #allocation8 [shape = 'u8[512]{0}', space=vmem, size = 0x400, scoped, tag = 'input window, operand 3, single buffered']
    #allocation9 [shape = 's32[1]{0}', space=sflag, size = 0x4, scoped, tag = 'scoped memory for embedding_model_forward.1']
    #allocation10 [shape = 'u8[32768]{0}', space=vmem, size = 0x8000, scoped, tag = 'input window, operand 4, single buffered']
    #allocation11 [shape = 'u8[512]{0}', space=vmem, size = 0x400, scoped, tag = 'input window, operand 5, single buffered']
    #allocation12 [shape = 's32[1]{0}', space=sflag, size = 0x4, scoped, tag = 'scoped memory for embedding_model_forward.1']
    #allocation13 [shape = 'u8[2097152]{0}', space=vmem, size = 0x200000, scoped, tag = 'input window, operand 6, single buffered']
    #allocation14 [shape = 'u8[8192]{0}', space=vmem, size = 0x2000, scoped, tag = 'input window, operand 7, single buffered']
    #allocation15 [shape = 's32[1]{0}', space=sflag, size = 0x4, scoped, tag = 'scoped memory for embedding_model_forward.1']
    #allocation16 [shape = 'u8[524288]{0}', space=vmem, size = 0x80000, scoped, tag = 'input window, operand 8, single buffered']
    #allocation17 [shape = 'u8[512]{0}', space=vmem, size = 0x400, scoped, tag = 'input window, operand 9, single buffered']
    #allocation18 [shape = 's32[1]{0}', space=sflag, size = 0x4, scoped, tag = 'scoped memory for embedding_model_forward.1']
    #allocation19 [shape = 'u8[1024]{0}', space=vmem, size = 0x400, scoped, tag = 'output window, operand 0, single buffered']
    #allocation20 [shape = 'u8[1024]{0}', space=vmem, size = 0x400, scoped, tag = 'output window, operand 1, single buffered']
    #allocation21 [shape = 's32[1]{0}', space=sflag, size = 0x4, scoped, tag = 'scoped memory for embedding_model_forward.1']
    #allocation22 [shape = 'u8[1024]{0}', space=vmem, size = 0x400, scoped, tag = 'output window, operand 2, single buffered']
    %18 = vsyncpa [#allocation3], 0
    %19 = vsyncpa [#allocation6], 0
    %20 = vsyncpa [#allocation9], 0
    %21 = vsyncpa [#allocation12], 0
    %22 = vsyncpa [#allocation15], 0
    %23 = vsyncpa [#allocation18], 0
    %24 = vsyncpa [#allocation4], 0
    %25 = vsyncpa [#allocation21], 0
    // Predicated region
    $region2: #{embedding_model_forward.1} parent=1 // pred_check
      _
    $region3: #{embedding_model_forward.1} parent=1 // pred_check_branch
      %27 = sbr.rel (0) target = $region5
    $region4: #{embedding_model_forward.1} parent=1 // pred_region
      %s29 = ssub.s32 64, 64
      %30 = vsyncadd [#allocation3], %s29
      %s32 = sshll.u32 [#allocation2], 4
      %s33 = int_to_ptr.vmem [resolvable:$true] %s32
      %35 = dma.hbm_to_vmem [thread:$0]  %s0, 64, %s33, [#allocation3]
    $region5: #{embedding_model_forward.1} parent=1 // pred_fallthru
      _
    // Predicated region
    $region6: #{embedding_model_forward.1} parent=1 // pred_check
      _
    $region7: #{embedding_model_forward.1} parent=1 // pred_check_branch
      %37 = sbr.rel (0) target = $region9
    $region8: #{embedding_model_forward.1} parent=1 // pred_region
      %s39 = ssub.s32 128, 128
      %40 = vsyncadd [#allocation6], %s39
      %s42 = sshll.u32 [#allocation5], 4
      %s43 = int_to_ptr.vmem [resolvable:$true] %s42
      %45 = dma.hbm_to_vmem [thread:$0]  %s1, 128, %s43, [#allocation6]
    $region9: #{embedding_model_forward.1} parent=1 // pred_fallthru
      _
    // Predicated region
    $region10: #{embedding_model_forward.1} parent=1 // pred_check
      _
    $region11: #{embedding_model_forward.1} parent=1 // pred_check_branch
      %47 = sbr.rel (0) target = $region13
    $region12: #{embedding_model_forward.1} parent=1 // pred_region
      %s49 = ssub.s32 2048, 2048
      %50 = vsyncadd [#allocation6], %s49
      %s51 = sshll.u32 [#allocation7], 4
      %s52 = int_to_ptr.vmem [resolvable:$true] %s51
      %57 = dma.hbm_to_vmem [thread:$0]  %s2, 2048, %s52, [#allocation6], 64, 64, 4
    $region13: #{embedding_model_forward.1} parent=1 // pred_fallthru
      _
    // Predicated region
    $region14: #{embedding_model_forward.1} parent=1 // pred_check
      _
    $region15: #{embedding_model_forward.1} parent=1 // pred_check_branch
      %59 = sbr.rel (0) target = $region17
    $region16: #{embedding_model_forward.1} parent=1 // pred_region
      %s61 = ssub.s32 16, 16
      %62 = vsyncadd [#allocation9], %s61
      %s64 = sshll.u32 [#allocation8], 4
      %s65 = int_to_ptr.vmem [resolvable:$true] %s64
      %67 = dma.hbm_to_vmem [thread:$0]  %s3, 16, %s65, [#allocation9]
    $region17: #{embedding_model_forward.1} parent=1 // pred_fallthru
      _
    // Predicated region
    $region18: #{embedding_model_forward.1} parent=1 // pred_check
      _
    $region19: #{embedding_model_forward.1} parent=1 // pred_check_branch
      %69 = sbr.rel (0) target = $region21
    $region20: #{embedding_model_forward.1} parent=1 // pred_region
      %s71 = ssub.s32 1024, 1024
      %72 = vsyncadd [#allocation9], %s71
      %s73 = sshll.u32 [#allocation10], 4
      %s74 = int_to_ptr.vmem [resolvable:$true] %s73
      %79 = dma.hbm_to_vmem [thread:$0]  %s4, 1024, %s74, [#allocation9], 64, 64, 4
    $region21: #{embedding_model_forward.1} parent=1 // pred_fallthru
      _
    // Predicated region
    $region22: #{embedding_model_forward.1} parent=1 // pred_check
      _
    $region23: #{embedding_model_forward.1} parent=1 // pred_check_branch
      %81 = sbr.rel (0) target = $region25
    $region24: #{embedding_model_forward.1} parent=1 // pred_region
      %s83 = ssub.s32 16, 16
      %84 = vsyncadd [#allocation12], %s83
      %s86 = sshll.u32 [#allocation11], 4
      %s87 = int_to_ptr.vmem [resolvable:$true] %s86
      %89 = dma.hbm_to_vmem [thread:$0]  %s5, 16, %s87, [#allocation12]
    $region25: #{embedding_model_forward.1} parent=1 // pred_fallthru
      _
    // Predicated region
    $region26: #{embedding_model_forward.1} parent=1 // pred_check
      _
    $region27: #{embedding_model_forward.1} parent=1 // pred_check_branch
      %91 = sbr.rel (0) target = $region29
    $region28: #{embedding_model_forward.1} parent=1 // pred_region
      %s93 = ssub.s32 65536, 65536
      %94 = vsyncadd [#allocation12], %s93
      %s95 = sshll.u32 [#allocation13], 4
      %s96 = int_to_ptr.vmem [resolvable:$true] %s95
      %101 = dma.hbm_to_vmem [thread:$0]  %s6, 65536, %s96, [#allocation12], 1024, 1024, 64
    $region29: #{embedding_model_forward.1} parent=1 // pred_fallthru
      _
    // Predicated region
    $region30: #{embedding_model_forward.1} parent=1 // pred_check
      _
    $region31: #{embedding_model_forward.1} parent=1 // pred_check_branch
      %103 = sbr.rel (0) target = $region33
    $region32: #{embedding_model_forward.1} parent=1 // pred_region
      %s105 = ssub.s32 256, 256
      %106 = vsyncadd [#allocation15], %s105
      %s108 = sshll.u32 [#allocation14], 4
      %s109 = int_to_ptr.vmem [resolvable:$true] %s108
      %111 = dma.hbm_to_vmem [thread:$0]  %s7, 256, %s109, [#allocation15]
    $region33: #{embedding_model_forward.1} parent=1 // pred_fallthru
      _
    // Predicated region
    $region34: #{embedding_model_forward.1} parent=1 // pred_check
      _
    $region35: #{embedding_model_forward.1} parent=1 // pred_check_branch
      %113 = sbr.rel (0) target = $region37
    $region36: #{embedding_model_forward.1} parent=1 // pred_region
      %s115 = ssub.s32 16384, 16384
      %116 = vsyncadd [#allocation15], %s115
      %s117 = sshll.u32 [#allocation16], 4
      %s118 = int_to_ptr.vmem [resolvable:$true] %s117
      %123 = dma.hbm_to_vmem [thread:$0]  %s8, 16384, %s118, [#allocation15], 64, 64, 4
    $region37: #{embedding_model_forward.1} parent=1 // pred_fallthru
      _
    // Predicated region
    $region38: #{embedding_model_forward.1} parent=1 // pred_check
      _
    $region39: #{embedding_model_forward.1} parent=1 // pred_check_branch
      %125 = sbr.rel (0) target = $region41
    $region40: #{embedding_model_forward.1} parent=1 // pred_region
      %s127 = ssub.s32 16, 16
      %128 = vsyncadd [#allocation18], %s127
      %s130 = sshll.u32 [#allocation17], 4
      %s131 = int_to_ptr.vmem [resolvable:$true] %s130
      %133 = dma.hbm_to_vmem [thread:$0]  %s9, 16, %s131, [#allocation18]
    $region41: #{embedding_model_forward.1} parent=1 // pred_fallthru
      _
    // Predicated region
    $region42: #{embedding_model_forward.1} parent=1 // pred_check
      _
    $region43: #{embedding_model_forward.1} parent=1 // pred_check_branch
      %135 = sbr.rel (0) target = $region45
    $region44: #{embedding_model_forward.1} parent=1 // pred_region
      %136 = dma.done [#allocation3], 64
    $region45: #{embedding_model_forward.1} parent=1 // pred_fallthru
      _
    // Predicated region
    $region46: #{embedding_model_forward.1} parent=1 // pred_check
      _
    $region47: #{embedding_model_forward.1} parent=1 // pred_check_branch
      %138 = sbr.rel (0) target = $region49
    $region48: #{embedding_model_forward.1} parent=1 // pred_region
      %139 = dma.done [#allocation6], 128
    $region49: #{embedding_model_forward.1} parent=1 // pred_fallthru
      _
    // Predicated region
    $region50: #{embedding_model_forward.1} parent=1 // pred_check
      _
    $region51: #{embedding_model_forward.1} parent=1 // pred_check_branch
      %141 = sbr.rel (0) target = $region53
    $region52: #{embedding_model_forward.1} parent=1 // pred_region
      %142 = dma.done [#allocation6], 2048
    $region53: #{embedding_model_forward.1} parent=1 // pred_fallthru
      _
    // Predicated region
    $region54: #{embedding_model_forward.1} parent=1 // pred_check
      _
    $region55: #{embedding_model_forward.1} parent=1 // pred_check_branch
      %144 = sbr.rel (0) target = $region57
    $region56: #{embedding_model_forward.1} parent=1 // pred_region
      %145 = dma.done [#allocation9], 16
    $region57: #{embedding_model_forward.1} parent=1 // pred_fallthru
      _
    // Predicated region
    $region58: #{embedding_model_forward.1} parent=1 // pred_check
      _
    $region59: #{embedding_model_forward.1} parent=1 // pred_check_branch
      %147 = sbr.rel (0) target = $region61
    $region60: #{embedding_model_forward.1} parent=1 // pred_region
      %148 = dma.done [#allocation9], 1024
    $region61: #{embedding_model_forward.1} parent=1 // pred_fallthru
      _
    // Predicated region
    $region62: #{embedding_model_forward.1} parent=1 // pred_check
      _
    $region63: #{embedding_model_forward.1} parent=1 // pred_check_branch
      %150 = sbr.rel (0) target = $region65
    $region64: #{embedding_model_forward.1} parent=1 // pred_region
      %151 = dma.done [#allocation12], 16
    $region65: #{embedding_model_forward.1} parent=1 // pred_fallthru
      _
    // Predicated region
    $region66: #{embedding_model_forward.1} parent=1 // pred_check
      _
    $region67: #{embedding_model_forward.1} parent=1 // pred_check_branch
      %153 = sbr.rel (0) target = $region69
    $region68: #{embedding_model_forward.1} parent=1 // pred_region
      %154 = dma.done [#allocation12], 65536
    $region69: #{embedding_model_forward.1} parent=1 // pred_fallthru
      _
    // Predicated region
    $region70: #{embedding_model_forward.1} parent=1 // pred_check
      _
    $region71: #{embedding_model_forward.1} parent=1 // pred_check_branch
      %156 = sbr.rel (0) target = $region73
    $region72: #{embedding_model_forward.1} parent=1 // pred_region
      %157 = dma.done [#allocation15], 256
    $region73: #{embedding_model_forward.1} parent=1 // pred_fallthru
      _
    // Predicated region
    $region74: #{embedding_model_forward.1} parent=1 // pred_check
      _
    $region75: #{embedding_model_forward.1} parent=1 // pred_check_branch
      %159 = sbr.rel (0) target = $region77
    $region76: #{embedding_model_forward.1} parent=1 // pred_region
      %160 = dma.done [#allocation15], 16384
    $region77: #{embedding_model_forward.1} parent=1 // pred_fallthru
      _
    // Predicated region
    $region78: #{embedding_model_forward.1} parent=1 // pred_check
      _
    $region79: #{embedding_model_forward.1} parent=1 // pred_check_branch
      %162 = sbr.rel (0) target = $region81
    $region80: #{embedding_model_forward.1} parent=1 // pred_region
      %163 = dma.done [#allocation18], 16
    $region81: #{embedding_model_forward.1} parent=1 // pred_fallthru
      _
    %v165 = vld [vmem:[#allocation2] sm:$0xf]
    %v168 = vunpack.c.l.s4 1983009808
    %v169 = vunpack.c.0.s8 %v168
    %v170 = vlaneseq
    %v171 = vshrl.u32 %v170, 7
    %v172 = vsub.s32 %v169, %v171
    %v173 = vrot.slane %v165, %v172
    %v174 = vcombine.high %v173, %v173
    %v177 = vpack.c.bf16 %v173, %v173
    %v178 = vpack.c.bf16 %v174, %v174
    %v179 = vld [vmem:[#allocation7] sm:$0xf]
    %v180 = vld [vmem:[#allocation7 + $0x4] sm:$0xf]
    %v181 = vld [vmem:[#allocation7 + $0x8] sm:$0xf]
    %v182 = vld [vmem:[#allocation7 + $0xc] sm:$0xf]
    %v183 = vld [vmem:[#allocation7 + $0x10] sm:$0xf]
    %v184 = vld [vmem:[#allocation7 + $0x14] sm:$0xf]
    %v185 = vld [vmem:[#allocation7 + $0x18] sm:$0xf]
    %v186 = vld [vmem:[#allocation7 + $0x1c] sm:$0xf]
    %v187 = vld [vmem:[#allocation7 + $0x20] sm:$0xf]
    %v188 = vld [vmem:[#allocation7 + $0x24] sm:$0xf]
    %v189 = vld [vmem:[#allocation7 + $0x28] sm:$0xf]
    %v190 = vld [vmem:[#allocation7 + $0x2c] sm:$0xf]
    %v191 = vld [vmem:[#allocation7 + $0x30] sm:$0xf]
    %v192 = vld [vmem:[#allocation7 + $0x34] sm:$0xf]
    %v193 = vld [vmem:[#allocation7 + $0x38] sm:$0xf]
    %v194 = vld [vmem:[#allocation7 + $0x3c] sm:$0xf]
    %v195 = vld [vmem:[#allocation7 + $0x40] sm:$0xf]
    %v196 = vld [vmem:[#allocation7 + $0x44] sm:$0xf]
    %v197 = vld [vmem:[#allocation7 + $0x48] sm:$0xf]
    %v198 = vld [vmem:[#allocation7 + $0x4c] sm:$0xf]
    %v199 = vld [vmem:[#allocation7 + $0x50] sm:$0xf]
    %v200 = vld [vmem:[#allocation7 + $0x54] sm:$0xf]
    %v201 = vld [vmem:[#allocation7 + $0x58] sm:$0xf]
    %v202 = vld [vmem:[#allocation7 + $0x5c] sm:$0xf]
    %v203 = vld [vmem:[#allocation7 + $0x60] sm:$0xf]
    %v204 = vld [vmem:[#allocation7 + $0x64] sm:$0xf]
    %v205 = vld [vmem:[#allocation7 + $0x68] sm:$0xf]
    %v206 = vld [vmem:[#allocation7 + $0x6c] sm:$0xf]
    %v207 = vld [vmem:[#allocation7 + $0x70] sm:$0xf]
    %v208 = vld [vmem:[#allocation7 + $0x74] sm:$0xf]
    %v209 = vld [vmem:[#allocation7 + $0x78] sm:$0xf]
    %v210 = vld [vmem:[#allocation7 + $0x7c] sm:$0xf]
    %v211 = vld [vmem:[#allocation8] sm:$0x1]
    %v213 = vlaneseq
    %v214 = vshrl.u32 %v213, 7
    %v215 = vsub.s32 0, %v214
    %v216 = vrot.slane %v211, %v215
    %v250 = vunpack.c.l.b16 %v179
    %v251 = vunpack.c.l.b16 %v180
    %v252 = vunpack.c.l.b16 %v181
    %v253 = vunpack.c.l.b16 %v182
    %v254 = vunpack.c.l.b16 %v183
    %v255 = vunpack.c.l.b16 %v184
    %v256 = vunpack.c.l.b16 %v185
    %v257 = vunpack.c.l.b16 %v186
    %v258 = vunpack.c.l.b16 %v187
    %v259 = vunpack.c.l.b16 %v188
    %v260 = vunpack.c.l.b16 %v189
    %v261 = vunpack.c.l.b16 %v190
    %v262 = vunpack.c.l.b16 %v191
    %v263 = vunpack.c.l.b16 %v192
    %v264 = vunpack.c.l.b16 %v193
    %v265 = vunpack.c.l.b16 %v194
    %v266 = vunpack.c.l.b16 %v195
    %v267 = vunpack.c.l.b16 %v196
    %v268 = vunpack.c.l.b16 %v197
    %v269 = vunpack.c.l.b16 %v198
    %v270 = vunpack.c.l.b16 %v199
    %v271 = vunpack.c.l.b16 %v200
    %v272 = vunpack.c.l.b16 %v201
    %v273 = vunpack.c.l.b16 %v202
    %v274 = vunpack.c.l.b16 %v203
    %v275 = vunpack.c.l.b16 %v204
    %v276 = vunpack.c.l.b16 %v205
    %v277 = vunpack.c.l.b16 %v206
    %v278 = vunpack.c.l.b16 %v207
    %v279 = vunpack.c.l.b16 %v208
    %v280 = vunpack.c.l.b16 %v209
    %v281 = vunpack.c.l.b16 %v210
    %v282 = vpack.c.b16 %v251, %v250
    %v283 = vpack.c.b16 %v253, %v252
    %v284 = vpack.c.b16 %v255, %v254
    %v285 = vpack.c.b16 %v257, %v256
    %v286 = vpack.c.b16 %v259, %v258
    %v287 = vpack.c.b16 %v261, %v260
    %v288 = vpack.c.b16 %v263, %v262
    %v289 = vpack.c.b16 %v265, %v264
    %v290 = vpack.c.b16 %v267, %v266
    %v291 = vpack.c.b16 %v269, %v268
    %v292 = vpack.c.b16 %v271, %v270
    %v293 = vpack.c.b16 %v273, %v272
    %v294 = vpack.c.b16 %v275, %v274
    %v295 = vpack.c.b16 %v277, %v276
    %v296 = vpack.c.b16 %v279, %v278
    %v297 = vpack.c.b16 %v281, %v280
    %314 = vmatprep.subr.bf16.mxu0 0
    %315 = vmatpush1.bf16.msra.mxu0 %v289
    %316 = vmatprep.subr.bf16.mxu0 0
    %317 = vmatpush1.bf16.msra.mxu0 %v288
    %318 = vmatprep.subr.bf16.mxu0 0
    %319 = vmatpush1.bf16.msra.mxu0 %v287
    %320 = vmatprep.subr.bf16.mxu0 0
    %321 = vmatpush1.bf16.msra.mxu0 %v286
    %322 = vmatprep.subr.bf16.mxu0 0
    %323 = vmatpush1.bf16.msra.mxu0 %v285
    %324 = vmatprep.subr.bf16.mxu0 0
    %325 = vmatpush1.bf16.msra.mxu0 %v284
    %326 = vmatprep.subr.bf16.mxu0 0
    %327 = vmatpush1.bf16.msra.mxu0 %v283
    %328 = vmatprep.subr.bf16.mxu0 0
    %329 = vmatpush1.bf16.msra.mxu0 %v282
    %330 = vmatprep.subr.bf16.mxu0 0
    %331 = vmatpush2.bf16.msra.mxu0 %v297
    %332 = vmatprep.subr.bf16.mxu0 0
    %333 = vmatpush2.bf16.msra.mxu0 %v296
    %334 = vmatprep.subr.bf16.mxu0 0
    %335 = vmatpush2.bf16.msra.mxu0 %v295
    %336 = vmatprep.subr.bf16.mxu0 0
    %337 = vmatpush2.bf16.msra.mxu0 %v294
    %338 = vmatprep.subr.bf16.mxu0 0
    %339 = vmatpush2.bf16.msra.mxu0 %v293
    %340 = vmatprep.subr.bf16.mxu0 0
    %341 = vmatpush2.bf16.msra.mxu0 %v292
    %342 = vmatprep.subr.bf16.mxu0 0
    %343 = vmatpush2.bf16.msra.mxu0 %v291
    %344 = vmatprep.subr.bf16.mxu0 0
    %345 = vmatpush2.bf16.msra.mxu0 %v290
    %346 = vmatprep.mubr.bf16.mxu0 %v178
    %347 = vmatmul.mubr.bf16.gmra.mxu0 %v177
    %v348 = vpop.f32.mrf.mxu0
    %v349 = vadd.f32 %v216, %v348
    %v350 = vpop.f32.mrf.mxu0
    %v351 = vpop.f32.mrf.mxu0
    %v352 = vpop.f32.mrf.mxu0
    %353 = vdwg.mxu0
    %354 = vst [vmem:[#allocation20] sm:$0x3] %v349
    %v355 = vpack.c.bf16 %v349, %v349
    %v356 = vld [vmem:[#allocation10] sm:$0xf]
    %v357 = vld [vmem:[#allocation10 + $0x4] sm:$0xf]
    %v358 = vld [vmem:[#allocation10 + $0x8] sm:$0xf]
    %v359 = vld [vmem:[#allocation10 + $0xc] sm:$0xf]
    %v360 = vld [vmem:[#allocation10 + $0x10] sm:$0xf]
    %v361 = vld [vmem:[#allocation10 + $0x14] sm:$0xf]
    %v362 = vld [vmem:[#allocation10 + $0x18] sm:$0xf]
    %v363 = vld [vmem:[#allocation10 + $0x1c] sm:$0xf]
    %v364 = vld [vmem:[#allocation10 + $0x20] sm:$0xf]
    %v365 = vld [vmem:[#allocation10 + $0x24] sm:$0xf]
    %v366 = vld [vmem:[#allocation10 + $0x28] sm:$0xf]
    %v367 = vld [vmem:[#allocation10 + $0x2c] sm:$0xf]
    %v368 = vld [vmem:[#allocation10 + $0x30] sm:$0xf]
    %v369 = vld [vmem:[#allocation10 + $0x34] sm:$0xf]
    %v370 = vld [vmem:[#allocation10 + $0x38] sm:$0xf]
    %v371 = vld [vmem:[#allocation10 + $0x3c] sm:$0xf]
    %v372 = vld [vmem:[#allocation11] sm:$0x1]
    %v374 = vlaneseq
    %v375 = vshrl.u32 %v374, 7
    %v376 = vsub.s32 0, %v375
    %v377 = vrot.slane %v372, %v376
    %v395 = vunpack.c.l.b16 %v356
    %v396 = vunpack.c.l.b16 %v357
    %v397 = vunpack.c.l.b16 %v358
    %v398 = vunpack.c.l.b16 %v359
    %v399 = vunpack.c.l.b16 %v360
    %v400 = vunpack.c.l.b16 %v361
    %v401 = vunpack.c.l.b16 %v362
    %v402 = vunpack.c.l.b16 %v363
    %v403 = vunpack.c.l.b16 %v364
    %v404 = vunpack.c.l.b16 %v365
    %v405 = vunpack.c.l.b16 %v366
    %v406 = vunpack.c.l.b16 %v367
    %v407 = vunpack.c.l.b16 %v368
    %v408 = vunpack.c.l.b16 %v369
    %v409 = vunpack.c.l.b16 %v370
    %v410 = vunpack.c.l.b16 %v371
    %v411 = vpack.c.b16 %v396, %v395
    %v412 = vpack.c.b16 %v398, %v397
    %v413 = vpack.c.b16 %v400, %v399
    %v414 = vpack.c.b16 %v402, %v401
    %v415 = vpack.c.b16 %v404, %v403
    %v416 = vpack.c.b16 %v406, %v405
    %v417 = vpack.c.b16 %v408, %v407
    %v418 = vpack.c.b16 %v410, %v409
    %427 = vmatprep.subr.bf16.mxu0 0
    %428 = vmatpush1.bf16.msra.mxu0 %v418
    %429 = vmatprep.subr.bf16.mxu0 0
    %430 = vmatpush1.bf16.msra.mxu0 %v417
    %431 = vmatprep.subr.bf16.mxu0 0
    %432 = vmatpush1.bf16.msra.mxu0 %v416
    %433 = vmatprep.subr.bf16.mxu0 0
    %434 = vmatpush1.bf16.msra.mxu0 %v415
    %435 = vmatprep.subr.bf16.mxu0 0
    %436 = vmatpush1.bf16.msra.mxu0 %v414
    %437 = vmatprep.subr.bf16.mxu0 0
    %438 = vmatpush1.bf16.msra.mxu0 %v413
    %439 = vmatprep.subr.bf16.mxu0 0
    %440 = vmatpush1.bf16.msra.mxu0 %v412
    %441 = vmatprep.subr.bf16.mxu0 0
    %442 = vmatpush1.bf16.msra.mxu0 %v411
    %443 = vmatprep.subr.bf16.mxu0 0
    %444 = vmatpush2.bf16.msra.mxu0 0
    %445 = vmatprep.subr.bf16.mxu0 0
    %446 = vmatpush2.bf16.msra.mxu0 0
    %447 = vmatprep.subr.bf16.mxu0 0
    %448 = vmatpush2.bf16.msra.mxu0 0
    %449 = vmatprep.subr.bf16.mxu0 0
    %450 = vmatpush2.bf16.msra.mxu0 0
    %451 = vmatprep.subr.bf16.mxu0 0
    %452 = vmatpush2.bf16.msra.mxu0 0
    %453 = vmatprep.subr.bf16.mxu0 0
    %454 = vmatpush2.bf16.msra.mxu0 0
    %455 = vmatprep.subr.bf16.mxu0 0
    %456 = vmatpush2.bf16.msra.mxu0 0
    %457 = vmatprep.subr.bf16.mxu0 0
    %458 = vmatpush2.bf16.msra.mxu0 0
    %459 = vmatprep.mubr.bf16.mxu0 0
    %460 = vmatmul.mubr.bf16.gmra.mxu0 %v355
    %v461 = vpop.f32.mrf.mxu0
    %v462 = vadd.f32 %v377, %v461
    %v463 = vpop.f32.mrf.mxu0
    %v464 = vpop.f32.mrf.mxu0
    %v465 = vpop.f32.mrf.mxu0
    %466 = vdwg.mxu0
    %467 = vst [vmem:[#allocation19] sm:$0x3] %v462
    %v468 = vld [vmem:[#allocation5] sm:$0xff]
    %v470 = vcombine.high %v468, %v468
    %v472 = vunpack.c.l.s4 1983009808
    %v473 = vunpack.c.0.s8 %v472
    %v474 = vlaneseq
    %v475 = vshrl.u32 %v474, 7
    %v476 = vsub.s32 %v473, %v475
    %v477 = vrot.slane %v468, %v476
    %v479 = vunpack.c.l.s4 1983009808
    %v480 = vunpack.c.0.s8 %v479
    %v481 = vlaneseq
    %v482 = vshrl.u32 %v481, 7
    %v483 = vsub.s32 %v480, %v482
    %v484 = vrot.slane %v470, %v483
    %v485 = vcombine.high %v477, %v477
    %v486 = vcombine.high %v484, %v484
    %v491 = vpack.c.bf16 %v477, %v477
    %v492 = vpack.c.bf16 %v485, %v485
    %v493 = vpack.c.bf16 %v484, %v484
    %v494 = vpack.c.bf16 %v486, %v486
    %v495 = vld [vmem:[#allocation13] sm:$0xff]
    %v496 = vld [vmem:[#allocation13 + $0x8] sm:$0xff]
    %v497 = vld [vmem:[#allocation13 + $0x10] sm:$0xff]
    %v498 = vld [vmem:[#allocation13 + $0x18] sm:$0xff]
    %v499 = vld [vmem:[#allocation13 + $0x20] sm:$0xff]
    %v500 = vld [vmem:[#allocation13 + $0x28] sm:$0xff]
    %v501 = vld [vmem:[#allocation13 + $0x30] sm:$0xff]
    %v502 = vld [vmem:[#allocation13 + $0x38] sm:$0xff]
    %v503 = vld [vmem:[#allocation13 + $0x40] sm:$0xff]
    %v504 = vld [vmem:[#allocation13 + $0x48] sm:$0xff]
    %v505 = vld [vmem:[#allocation13 + $0x50] sm:$0xff]
    %v506 = vld [vmem:[#allocation13 + $0x58] sm:$0xff]
    %v507 = vld [vmem:[#allocation13 + $0x60] sm:$0xff]
    %v508 = vld [vmem:[#allocation13 + $0x68] sm:$0xff]
    %v509 = vld [vmem:[#allocation13 + $0x70] sm:$0xff]
    %v510 = vld [vmem:[#allocation13 + $0x78] sm:$0xff]
    %v511 = vld [vmem:[#allocation13 + $0x80] sm:$0xff]
    %v512 = vld [vmem:[#allocation13 + $0x88] sm:$0xff]
    %v513 = vld [vmem:[#allocation13 + $0x90] sm:$0xff]
    %v514 = vld [vmem:[#allocation13 + $0x98] sm:$0xff]
    %v515 = vld [vmem:[#allocation13 + $0xa0] sm:$0xff]
    %v516 = vld [vmem:[#allocation13 + $0xa8] sm:$0xff]
    %v517 = vld [vmem:[#allocation13 + $0xb0] sm:$0xff]
    %v518 = vld [vmem:[#allocation13 + $0xb8] sm:$0xff]
    %v519 = vld [vmem:[#allocation13 + $0xc0] sm:$0xff]
    %v520 = vld [vmem:[#allocation13 + $0xc8] sm:$0xff]
    %v521 = vld [vmem:[#allocation13 + $0xd0] sm:$0xff]
    %v522 = vld [vmem:[#allocation13 + $0xd8] sm:$0xff]
    %v523 = vld [vmem:[#allocation13 + $0xe0] sm:$0xff]
    %v524 = vld [vmem:[#allocation13 + $0xe8] sm:$0xff]
    %v525 = vld [vmem:[#allocation13 + $0xf0] sm:$0xff]
    %v526 = vld [vmem:[#allocation13 + $0xf8] sm:$0xff]
    %v527 = vld [vmem:[#allocation13 + $0x100] sm:$0xff]
    %v528 = vld [vmem:[#allocation13 + $0x108] sm:$0xff]
    %v529 = vld [vmem:[#allocation13 + $0x110] sm:$0xff]
    %v530 = vld [vmem:[#allocation13 + $0x118] sm:$0xff]
    %v531 = vld [vmem:[#allocation13 + $0x120] sm:$0xff]
    %v532 = vld [vmem:[#allocation13 + $0x128] sm:$0xff]
    %v533 = vld [vmem:[#allocation13 + $0x130] sm:$0xff]
    %v534 = vld [vmem:[#allocation13 + $0x138] sm:$0xff]
    %v535 = vld [vmem:[#allocation13 + $0x140] sm:$0xff]
    %v536 = vld [vmem:[#allocation13 + $0x148] sm:$0xff]
    %v537 = vld [vmem:[#allocation13 + $0x150] sm:$0xff]
    %v538 = vld [vmem:[#allocation13 + $0x158] sm:$0xff]
    %v539 = vld [vmem:[#allocation13 + $0x160] sm:$0xff]
    %v540 = vld [vmem:[#allocation13 + $0x168] sm:$0xff]
    %v541 = vld [vmem:[#allocation13 + $0x170] sm:$0xff]
    %v542 = vld [vmem:[#allocation13 + $0x178] sm:$0xff]
    %v543 = vld [vmem:[#allocation13 + $0x180] sm:$0xff]
    %v544 = vld [vmem:[#allocation13 + $0x188] sm:$0xff]
    %v545 = vld [vmem:[#allocation13 + $0x190] sm:$0xff]
    %v546 = vld [vmem:[#allocation13 + $0x198] sm:$0xff]
    %v547 = vld [vmem:[#allocation13 + $0x1a0] sm:$0xff]
    %v548 = vld [vmem:[#allocation13 + $0x1a8] sm:$0xff]
    %v549 = vld [vmem:[#allocation13 + $0x1b0] sm:$0xff]
    %v550 = vld [vmem:[#allocation13 + $0x1b8] sm:$0xff]
    %v551 = vld [vmem:[#allocation13 + $0x1c0] sm:$0xff]
    %v552 = vld [vmem:[#allocation13 + $0x1c8] sm:$0xff]
    %v553 = vld [vmem:[#allocation13 + $0x1d0] sm:$0xff]
    %v554 = vld [vmem:[#allocation13 + $0x1d8] sm:$0xff]
    %v555 = vld [vmem:[#allocation13 + $0x1e0] sm:$0xff]
    %v556 = vld [vmem:[#allocation13 + $0x1e8] sm:$0xff]
    %v557 = vld [vmem:[#allocation13 + $0x1f0] sm:$0xff]
    %v558 = vld [vmem:[#allocation13 + $0x1f8] sm:$0xff]
    %v559 = vld [vmem:[#allocation13 + $0x200] sm:$0xff]
    %v560 = vld [vmem:[#allocation13 + $0x208] sm:$0xff]
    %v561 = vld [vmem:[#allocation13 + $0x210] sm:$0xff]
    %v562 = vld [vmem:[#allocation13 + $0x218] sm:$0xff]
    %v563 = vld [vmem:[#allocation13 + $0x220] sm:$0xff]
    %v564 = vld [vmem:[#allocation13 + $0x228] sm:$0xff]
    %v565 = vld [vmem:[#allocation13 + $0x230] sm:$0xff]
    %v566 = vld [vmem:[#allocation13 + $0x238] sm:$0xff]
    %v567 = vld [vmem:[#allocation13 + $0x240] sm:$0xff]
    %v568 = vld [vmem:[#allocation13 + $0x248] sm:$0xff]
    %v569 = vld [vmem:[#allocation13 + $0x250] sm:$0xff]
    %v570 = vld [vmem:[#allocation13 + $0x258] sm:$0xff]
    %v571 = vld [vmem:[#allocation13 + $0x260] sm:$0xff]
    %v572 = vld [vmem:[#allocation13 + $0x268] sm:$0xff]
    %v573 = vld [vmem:[#allocation13 + $0x270] sm:$0xff]
    %v574 = vld [vmem:[#allocation13 + $0x278] sm:$0xff]
    %v575 = vld [vmem:[#allocation13 + $0x280] sm:$0xff]
    %v576 = vld [vmem:[#allocation13 + $0x288] sm:$0xff]
    %v577 = vld [vmem:[#allocation13 + $0x290] sm:$0xff]
    %v578 = vld [vmem:[#allocation13 + $0x298] sm:$0xff]
    %v579 = vld [vmem:[#allocation13 + $0x2a0] sm:$0xff]
    %v580 = vld [vmem:[#allocation13 + $0x2a8] sm:$0xff]
    %v581 = vld [vmem:[#allocation13 + $0x2b0] sm:$0xff]
    %v582 = vld [vmem:[#allocation13 + $0x2b8] sm:$0xff]
    %v583 = vld [vmem:[#allocation13 + $0x2c0] sm:$0xff]
    %v584 = vld [vmem:[#allocation13 + $0x2c8] sm:$0xff]
    %v585 = vld [vmem:[#allocation13 + $0x2d0] sm:$0xff]
    %v586 = vld [vmem:[#allocation13 + $0x2d8] sm:$0xff]
    %v587 = vld [vmem:[#allocation13 + $0x2e0] sm:$0xff]
    %v588 = vld [vmem:[#allocation13 + $0x2e8] sm:$0xff]
    %v589 = vld [vmem:[#allocation13 + $0x2f0] sm:$0xff]
    %v590 = vld [vmem:[#allocation13 + $0x2f8] sm:$0xff]
    %v591 = vld [vmem:[#allocation13 + $0x300] sm:$0xff]
    %v592 = vld [vmem:[#allocation13 + $0x308] sm:$0xff]
    %v593 = vld [vmem:[#allocation13 + $0x310] sm:$0xff]
    %v594 = vld [vmem:[#allocation13 + $0x318] sm:$0xff]
    %v595 = vld [vmem:[#allocation13 + $0x320] sm:$0xff]
    %v596 = vld [vmem:[#allocation13 + $0x328] sm:$0xff]
    %v597 = vld [vmem:[#allocation13 + $0x330] sm:$0xff]
    %v598 = vld [vmem:[#allocation13 + $0x338] sm:$0xff]
    %v599 = vld [vmem:[#allocation13 + $0x340] sm:$0xff]
    %v600 = vld [vmem:[#allocation13 + $0x348] sm:$0xff]
    %v601 = vld [vmem:[#allocation13 + $0x350] sm:$0xff]
    %v602 = vld [vmem:[#allocation13 + $0x358] sm:$0xff]
    %v603 = vld [vmem:[#allocation13 + $0x360] sm:$0xff]
    %v604 = vld [vmem:[#allocation13 + $0x368] sm:$0xff]
    %v605 = vld [vmem:[#allocation13 + $0x370] sm:$0xff]
    %v606 = vld [vmem:[#allocation13 + $0x378] sm:$0xff]
    %v607 = vld [vmem:[#allocation13 + $0x380] sm:$0xff]
    %v608 = vld [vmem:[#allocation13 + $0x388] sm:$0xff]
    %v609 = vld [vmem:[#allocation13 + $0x390] sm:$0xff]
    %v610 = vld [vmem:[#allocation13 + $0x398] sm:$0xff]
    %v611 = vld [vmem:[#allocation13 + $0x3a0] sm:$0xff]
    %v612 = vld [vmem:[#allocation13 + $0x3a8] sm:$0xff]
    %v613 = vld [vmem:[#allocation13 + $0x3b0] sm:$0xff]
    %v614 = vld [vmem:[#allocation13 + $0x3b8] sm:$0xff]
    %v615 = vld [vmem:[#allocation13 + $0x3c0] sm:$0xff]
    %v616 = vld [vmem:[#allocation13 + $0x3c8] sm:$0xff]
    %v617 = vld [vmem:[#allocation13 + $0x3d0] sm:$0xff]
    %v618 = vld [vmem:[#allocation13 + $0x3d8] sm:$0xff]
    %v619 = vld [vmem:[#allocation13 + $0x3e0] sm:$0xff]
    %v620 = vld [vmem:[#allocation13 + $0x3e8] sm:$0xff]
    %v621 = vld [vmem:[#allocation13 + $0x3f0] sm:$0xff]
    %v622 = vld [vmem:[#allocation13 + $0x3f8] sm:$0xff]
    %v623 = vld [vmem:[#allocation13 + $0x400] sm:$0xff]
    %v624 = vld [vmem:[#allocation13 + $0x408] sm:$0xff]
    %v625 = vld [vmem:[#allocation13 + $0x410] sm:$0xff]
    %v626 = vld [vmem:[#allocation13 + $0x418] sm:$0xff]
    %v627 = vld [vmem:[#allocation13 + $0x420] sm:$0xff]
    %v628 = vld [vmem:[#allocation13 + $0x428] sm:$0xff]
    %v629 = vld [vmem:[#allocation13 + $0x430] sm:$0xff]
    %v630 = vld [vmem:[#allocation13 + $0x438] sm:$0xff]
    %v631 = vld [vmem:[#allocation13 + $0x440] sm:$0xff]
    %v632 = vld [vmem:[#allocation13 + $0x448] sm:$0xff]
    %v633 = vld [vmem:[#allocation13 + $0x450] sm:$0xff]
    %v634 = vld [vmem:[#allocation13 + $0x458] sm:$0xff]
    %v635 = vld [vmem:[#allocation13 + $0x460] sm:$0xff]
    %v636 = vld [vmem:[#allocation13 + $0x468] sm:$0xff]
    %v637 = vld [vmem:[#allocation13 + $0x470] sm:$0xff]
    %v638 = vld [vmem:[#allocation13 + $0x478] sm:$0xff]
    %v639 = vld [vmem:[#allocation13 + $0x480] sm:$0xff]
    %v640 = vld [vmem:[#allocation13 + $0x488] sm:$0xff]
    %v641 = vld [vmem:[#allocation13 + $0x490] sm:$0xff]
    %v642 = vld [vmem:[#allocation13 + $0x498] sm:$0xff]
    %v643 = vld [vmem:[#allocation13 + $0x4a0] sm:$0xff]
    %v644 = vld [vmem:[#allocation13 + $0x4a8] sm:$0xff]
    %v645 = vld [vmem:[#allocation13 + $0x4b0] sm:$0xff]
    %v646 = vld [vmem:[#allocation13 + $0x4b8] sm:$0xff]
    %v647 = vld [vmem:[#allocation13 + $0x4c0] sm:$0xff]
    %v648 = vld [vmem:[#allocation13 + $0x4c8] sm:$0xff]
    %v649 = vld [vmem:[#allocation13 + $0x4d0] sm:$0xff]
    %v650 = vld [vmem:[#allocation13 + $0x4d8] sm:$0xff]
    %v651 = vld [vmem:[#allocation13 + $0x4e0] sm:$0xff]
    %v652 = vld [vmem:[#allocation13 + $0x4e8] sm:$0xff]
    %v653 = vld [vmem:[#allocation13 + $0x4f0] sm:$0xff]
    %v654 = vld [vmem:[#allocation13 + $0x4f8] sm:$0xff]
    %v655 = vld [vmem:[#allocation13 + $0x500] sm:$0xff]
    %v656 = vld [vmem:[#allocation13 + $0x508] sm:$0xff]
    %v657 = vld [vmem:[#allocation13 + $0x510] sm:$0xff]
    %v658 = vld [vmem:[#allocation13 + $0x518] sm:$0xff]
    %v659 = vld [vmem:[#allocation13 + $0x520] sm:$0xff]
    %v660 = vld [vmem:[#allocation13 + $0x528] sm:$0xff]
    %v661 = vld [vmem:[#allocation13 + $0x530] sm:$0xff]
    %v662 = vld [vmem:[#allocation13 + $0x538] sm:$0xff]
    %v663 = vld [vmem:[#allocation13 + $0x540] sm:$0xff]
    %v664 = vld [vmem:[#allocation13 + $0x548] sm:$0xff]
    %v665 = vld [vmem:[#allocation13 + $0x550] sm:$0xff]
    %v666 = vld [vmem:[#allocation13 + $0x558] sm:$0xff]
    %v667 = vld [vmem:[#allocation13 + $0x560] sm:$0xff]
    %v668 = vld [vmem:[#allocation13 + $0x568] sm:$0xff]
    %v669 = vld [vmem:[#allocation13 + $0x570] sm:$0xff]
    %v670 = vld [vmem:[#allocation13 + $0x578] sm:$0xff]
    %v671 = vld [vmem:[#allocation13 + $0x580] sm:$0xff]
    %v672 = vld [vmem:[#allocation13 + $0x588] sm:$0xff]
    %v673 = vld [vmem:[#allocation13 + $0x590] sm:$0xff]
    %v674 = vld [vmem:[#allocation13 + $0x598] sm:$0xff]
    %v675 = vld [vmem:[#allocation13 + $0x5a0] sm:$0xff]
    %v676 = vld [vmem:[#allocation13 + $0x5a8] sm:$0xff]
    %v677 = vld [vmem:[#allocation13 + $0x5b0] sm:$0xff]
    %v678 = vld [vmem:[#allocation13 + $0x5b8] sm:$0xff]
    %v679 = vld [vmem:[#allocation13 + $0x5c0] sm:$0xff]
    %v680 = vld [vmem:[#allocation13 + $0x5c8] sm:$0xff]
    %v681 = vld [vmem:[#allocation13 + $0x5d0] sm:$0xff]
    %v682 = vld [vmem:[#allocation13 + $0x5d8] sm:$0xff]
    %v683 = vld [vmem:[#allocation13 + $0x5e0] sm:$0xff]
    %v684 = vld [vmem:[#allocation13 + $0x5e8] sm:$0xff]
    %v685 = vld [vmem:[#allocation13 + $0x5f0] sm:$0xff]
    %v686 = vld [vmem:[#allocation13 + $0x5f8] sm:$0xff]
    %v687 = vld [vmem:[#allocation13 + $0x600] sm:$0xff]
    %v688 = vld [vmem:[#allocation13 + $0x608] sm:$0xff]
    %v689 = vld [vmem:[#allocation13 + $0x610] sm:$0xff]
    %v690 = vld [vmem:[#allocation13 + $0x618] sm:$0xff]
    %v691 = vld [vmem:[#allocation13 + $0x620] sm:$0xff]
    %v692 = vld [vmem:[#allocation13 + $0x628] sm:$0xff]
    %v693 = vld [vmem:[#allocation13 + $0x630] sm:$0xff]
    %v694 = vld [vmem:[#allocation13 + $0x638] sm:$0xff]
    %v695 = vld [vmem:[#allocation13 + $0x640] sm:$0xff]
    %v696 = vld [vmem:[#allocation13 + $0x648] sm:$0xff]
    %v697 = vld [vmem:[#allocation13 + $0x650] sm:$0xff]
    %v698 = vld [vmem:[#allocation13 + $0x658] sm:$0xff]
    %v699 = vld [vmem:[#allocation13 + $0x660] sm:$0xff]
    %v700 = vld [vmem:[#allocation13 + $0x668] sm:$0xff]
    %v701 = vld [vmem:[#allocation13 + $0x670] sm:$0xff]
    %v702 = vld [vmem:[#allocation13 + $0x678] sm:$0xff]
    %v703 = vld [vmem:[#allocation13 + $0x680] sm:$0xff]
    %v704 = vld [vmem:[#allocation13 + $0x688] sm:$0xff]
    %v705 = vld [vmem:[#allocation13 + $0x690] sm:$0xff]
    %v706 = vld [vmem:[#allocation13 + $0x698] sm:$0xff]
    %v707 = vld [vmem:[#allocation13 + $0x6a0] sm:$0xff]
    %v708 = vld [vmem:[#allocation13 + $0x6a8] sm:$0xff]
    %v709 = vld [vmem:[#allocation13 + $0x6b0] sm:$0xff]
    %v710 = vld [vmem:[#allocation13 + $0x6b8] sm:$0xff]
    %v711 = vld [vmem:[#allocation13 + $0x6c0] sm:$0xff]
    %v712 = vld [vmem:[#allocation13 + $0x6c8] sm:$0xff]
    %v713 = vld [vmem:[#allocation13 + $0x6d0] sm:$0xff]
    %v714 = vld [vmem:[#allocation13 + $0x6d8] sm:$0xff]
    %v715 = vld [vmem:[#allocation13 + $0x6e0] sm:$0xff]
    %v716 = vld [vmem:[#allocation13 + $0x6e8] sm:$0xff]
    %v717 = vld [vmem:[#allocation13 + $0x6f0] sm:$0xff]
    %v718 = vld [vmem:[#allocation13 + $0x6f8] sm:$0xff]
    %v719 = vld [vmem:[#allocation13 + $0x700] sm:$0xff]
    %v720 = vld [vmem:[#allocation13 + $0x708] sm:$0xff]
    %v721 = vld [vmem:[#allocation13 + $0x710] sm:$0xff]
    %v722 = vld [vmem:[#allocation13 + $0x718] sm:$0xff]
    %v723 = vld [vmem:[#allocation13 + $0x720] sm:$0xff]
    %v724 = vld [vmem:[#allocation13 + $0x728] sm:$0xff]
    %v725 = vld [vmem:[#allocation13 + $0x730] sm:$0xff]
    %v726 = vld [vmem:[#allocation13 + $0x738] sm:$0xff]
    %v727 = vld [vmem:[#allocation13 + $0x740] sm:$0xff]
    %v728 = vld [vmem:[#allocation13 + $0x748] sm:$0xff]
    %v729 = vld [vmem:[#allocation13 + $0x750] sm:$0xff]
    %v730 = vld [vmem:[#allocation13 + $0x758] sm:$0xff]
    %v731 = vld [vmem:[#allocation13 + $0x760] sm:$0xff]
    %v732 = vld [vmem:[#allocation13 + $0x768] sm:$0xff]
    %v733 = vld [vmem:[#allocation13 + $0x770] sm:$0xff]
    %v734 = vld [vmem:[#allocation13 + $0x778] sm:$0xff]
    %v735 = vld [vmem:[#allocation13 + $0x780] sm:$0xff]
    %v736 = vld [vmem:[#allocation13 + $0x788] sm:$0xff]
    %v737 = vld [vmem:[#allocation13 + $0x790] sm:$0xff]
    %v738 = vld [vmem:[#allocation13 + $0x798] sm:$0xff]
    %v739 = vld [vmem:[#allocation13 + $0x7a0] sm:$0xff]
    %v740 = vld [vmem:[#allocation13 + $0x7a8] sm:$0xff]
    %v741 = vld [vmem:[#allocation13 + $0x7b0] sm:$0xff]
    %v742 = vld [vmem:[#allocation13 + $0x7b8] sm:$0xff]
    %v743 = vld [vmem:[#allocation13 + $0x7c0] sm:$0xff]
    %v744 = vld [vmem:[#allocation13 + $0x7c8] sm:$0xff]
    %v745 = vld [vmem:[#allocation13 + $0x7d0] sm:$0xff]
    %v746 = vld [vmem:[#allocation13 + $0x7d8] sm:$0xff]
    %v747 = vld [vmem:[#allocation13 + $0x7e0] sm:$0xff]
    %v748 = vld [vmem:[#allocation13 + $0x7e8] sm:$0xff]
    %v749 = vld [vmem:[#allocation13 + $0x7f0] sm:$0xff]
    %v750 = vld [vmem:[#allocation13 + $0x7f8] sm:$0xff]
    %v751 = vld [vmem:[#allocation13 + $0x800] sm:$0xff]
    %v752 = vld [vmem:[#allocation13 + $0x808] sm:$0xff]
    %v753 = vld [vmem:[#allocation13 + $0x810] sm:$0xff]
    %v754 = vld [vmem:[#allocation13 + $0x818] sm:$0xff]
    %v755 = vld [vmem:[#allocation13 + $0x820] sm:$0xff]
    %v756 = vld [vmem:[#allocation13 + $0x828] sm:$0xff]
    %v757 = vld [vmem:[#allocation13 + $0x830] sm:$0xff]
    %v758 = vld [vmem:[#allocation13 + $0x838] sm:$0xff]
    %v759 = vld [vmem:[#allocation13 + $0x840] sm:$0xff]
    %v760 = vld [vmem:[#allocation13 + $0x848] sm:$0xff]
    %v761 = vld [vmem:[#allocation13 + $0x850] sm:$0xff]
    %v762 = vld [vmem:[#allocation13 + $0x858] sm:$0xff]
    %v763 = vld [vmem:[#allocation13 + $0x860] sm:$0xff]
    %v764 = vld [vmem:[#allocation13 + $0x868] sm:$0xff]
    %v765 = vld [vmem:[#allocation13 + $0x870] sm:$0xff]
    %v766 = vld [vmem:[#allocation13 + $0x878] sm:$0xff]
    %v767 = vld [vmem:[#allocation13 + $0x880] sm:$0xff]
    %v768 = vld [vmem:[#allocation13 + $0x888] sm:$0xff]
    %v769 = vld [vmem:[#allocation13 + $0x890] sm:$0xff]
    %v770 = vld [vmem:[#allocation13 + $0x898] sm:$0xff]
    %v771 = vld [vmem:[#allocation13 + $0x8a0] sm:$0xff]
    %v772 = vld [vmem:[#allocation13 + $0x8a8] sm:$0xff]
    %v773 = vld [vmem:[#allocation13 + $0x8b0] sm:$0xff]
    %v774 = vld [vmem:[#allocation13 + $0x8b8] sm:$0xff]
    %v775 = vld [vmem:[#allocation13 + $0x8c0] sm:$0xff]
    %v776 = vld [vmem:[#allocation13 + $0x8c8] sm:$0xff]
    %v777 = vld [vmem:[#allocation13 + $0x8d0] sm:$0xff]
    %v778 = vld [vmem:[#allocation13 + $0x8d8] sm:$0xff]
    %v779 = vld [vmem:[#allocation13 + $0x8e0] sm:$0xff]
    %v780 = vld [vmem:[#allocation13 + $0x8e8] sm:$0xff]
    %v781 = vld [vmem:[#allocation13 + $0x8f0] sm:$0xff]
    %v782 = vld [vmem:[#allocation13 + $0x8f8] sm:$0xff]
    %v783 = vld [vmem:[#allocation13 + $0x900] sm:$0xff]
    %v784 = vld [vmem:[#allocation13 + $0x908] sm:$0xff]
    %v785 = vld [vmem:[#allocation13 + $0x910] sm:$0xff]
    %v786 = vld [vmem:[#allocation13 + $0x918] sm:$0xff]
    %v787 = vld [vmem:[#allocation13 + $0x920] sm:$0xff]
    %v788 = vld [vmem:[#allocation13 + $0x928] sm:$0xff]
    %v789 = vld [vmem:[#allocation13 + $0x930] sm:$0xff]
    %v790 = vld [vmem:[#allocation13 + $0x938] sm:$0xff]
    %v791 = vld [vmem:[#allocation13 + $0x940] sm:$0xff]
    %v792 = vld [vmem:[#allocation13 + $0x948] sm:$0xff]
    %v793 = vld [vmem:[#allocation13 + $0x950] sm:$0xff]
    %v794 = vld [vmem:[#allocation13 + $0x958] sm:$0xff]
    %v795 = vld [vmem:[#allocation13 + $0x960] sm:$0xff]
    %v796 = vld [vmem:[#allocation13 + $0x968] sm:$0xff]
    %v797 = vld [vmem:[#allocation13 + $0x970] sm:$0xff]
    %v798 = vld [vmem:[#allocation13 + $0x978] sm:$0xff]
    %v799 = vld [vmem:[#allocation13 + $0x980] sm:$0xff]
    %v800 = vld [vmem:[#allocation13 + $0x988] sm:$0xff]
    %v801 = vld [vmem:[#allocation13 + $0x990] sm:$0xff]
    %v802 = vld [vmem:[#allocation13 + $0x998] sm:$0xff]
    %v803 = vld [vmem:[#allocation13 + $0x9a0] sm:$0xff]
    %v804 = vld [vmem:[#allocation13 + $0x9a8] sm:$0xff]
    %v805 = vld [vmem:[#allocation13 + $0x9b0] sm:$0xff]
    %v806 = vld [vmem:[#allocation13 + $0x9b8] sm:$0xff]
    %v807 = vld [vmem:[#allocation13 + $0x9c0] sm:$0xff]
    %v808 = vld [vmem:[#allocation13 + $0x9c8] sm:$0xff]
    %v809 = vld [vmem:[#allocation13 + $0x9d0] sm:$0xff]
    %v810 = vld [vmem:[#allocation13 + $0x9d8] sm:$0xff]
    %v811 = vld [vmem:[#allocation13 + $0x9e0] sm:$0xff]
    %v812 = vld [vmem:[#allocation13 + $0x9e8] sm:$0xff]
    %v813 = vld [vmem:[#allocation13 + $0x9f0] sm:$0xff]
    %v814 = vld [vmem:[#allocation13 + $0x9f8] sm:$0xff]
    %v815 = vld [vmem:[#allocation13 + $0xa00] sm:$0xff]
    %v816 = vld [vmem:[#allocation13 + $0xa08] sm:$0xff]
    %v817 = vld [vmem:[#allocation13 + $0xa10] sm:$0xff]
    %v818 = vld [vmem:[#allocation13 + $0xa18] sm:$0xff]
    %v819 = vld [vmem:[#allocation13 + $0xa20] sm:$0xff]
    %v820 = vld [vmem:[#allocation13 + $0xa28] sm:$0xff]
    %v821 = vld [vmem:[#allocation13 + $0xa30] sm:$0xff]
    %v822 = vld [vmem:[#allocation13 + $0xa38] sm:$0xff]
    %v823 = vld [vmem:[#allocation13 + $0xa40] sm:$0xff]
    %v824 = vld [vmem:[#allocation13 + $0xa48] sm:$0xff]
    %v825 = vld [vmem:[#allocation13 + $0xa50] sm:$0xff]
    %v826 = vld [vmem:[#allocation13 + $0xa58] sm:$0xff]
    %v827 = vld [vmem:[#allocation13 + $0xa60] sm:$0xff]
    %v828 = vld [vmem:[#allocation13 + $0xa68] sm:$0xff]
    %v829 = vld [vmem:[#allocation13 + $0xa70] sm:$0xff]
    %v830 = vld [vmem:[#allocation13 + $0xa78] sm:$0xff]
    %v831 = vld [vmem:[#allocation13 + $0xa80] sm:$0xff]
    %v832 = vld [vmem:[#allocation13 + $0xa88] sm:$0xff]
    %v833 = vld [vmem:[#allocation13 + $0xa90] sm:$0xff]
    %v834 = vld [vmem:[#allocation13 + $0xa98] sm:$0xff]
    %v835 = vld [vmem:[#allocation13 + $0xaa0] sm:$0xff]
    %v836 = vld [vmem:[#allocation13 + $0xaa8] sm:$0xff]
    %v837 = vld [vmem:[#allocation13 + $0xab0] sm:$0xff]
    %v838 = vld [vmem:[#allocation13 + $0xab8] sm:$0xff]
    %v839 = vld [vmem:[#allocation13 + $0xac0] sm:$0xff]
    %v840 = vld [vmem:[#allocation13 + $0xac8] sm:$0xff]
    %v841 = vld [vmem:[#allocation13 + $0xad0] sm:$0xff]
    %v842 = vld [vmem:[#allocation13 + $0xad8] sm:$0xff]
    %v843 = vld [vmem:[#allocation13 + $0xae0] sm:$0xff]
    %v844 = vld [vmem:[#allocation13 + $0xae8] sm:$0xff]
    %v845 = vld [vmem:[#allocation13 + $0xaf0] sm:$0xff]
    %v846 = vld [vmem:[#allocation13 + $0xaf8] sm:$0xff]
    %v847 = vld [vmem:[#allocation13 + $0xb00] sm:$0xff]
    %v848 = vld [vmem:[#allocation13 + $0xb08] sm:$0xff]
    %v849 = vld [vmem:[#allocation13 + $0xb10] sm:$0xff]
    %v850 = vld [vmem:[#allocation13 + $0xb18] sm:$0xff]
    %v851 = vld [vmem:[#allocation13 + $0xb20] sm:$0xff]
    %v852 = vld [vmem:[#allocation13 + $0xb28] sm:$0xff]
    %v853 = vld [vmem:[#allocation13 + $0xb30] sm:$0xff]
    %v854 = vld [vmem:[#allocation13 + $0xb38] sm:$0xff]
    %v855 = vld [vmem:[#allocation13 + $0xb40] sm:$0xff]
    %v856 = vld [vmem:[#allocation13 + $0xb48] sm:$0xff]
    %v857 = vld [vmem:[#allocation13 + $0xb50] sm:$0xff]
    %v858 = vld [vmem:[#allocation13 + $0xb58] sm:$0xff]
    %v859 = vld [vmem:[#allocation13 + $0xb60] sm:$0xff]
    %v860 = vld [vmem:[#allocation13 + $0xb68] sm:$0xff]
    %v861 = vld [vmem:[#allocation13 + $0xb70] sm:$0xff]
    %v862 = vld [vmem:[#allocation13 + $0xb78] sm:$0xff]
    %v863 = vld [vmem:[#allocation13 + $0xb80] sm:$0xff]
    %v864 = vld [vmem:[#allocation13 + $0xb88] sm:$0xff]
    %v865 = vld [vmem:[#allocation13 + $0xb90] sm:$0xff]
    %v866 = vld [vmem:[#allocation13 + $0xb98] sm:$0xff]
    %v867 = vld [vmem:[#allocation13 + $0xba0] sm:$0xff]
    %v868 = vld [vmem:[#allocation13 + $0xba8] sm:$0xff]
    %v869 = vld [vmem:[#allocation13 + $0xbb0] sm:$0xff]
    %v870 = vld [vmem:[#allocation13 + $0xbb8] sm:$0xff]
    %v871 = vld [vmem:[#allocation13 + $0xbc0] sm:$0xff]
    %v872 = vld [vmem:[#allocation13 + $0xbc8] sm:$0xff]
    %v873 = vld [vmem:[#allocation13 + $0xbd0] sm:$0xff]
    %v874 = vld [vmem:[#allocation13 + $0xbd8] sm:$0xff]
    %v875 = vld [vmem:[#allocation13 + $0xbe0] sm:$0xff]
    %v876 = vld [vmem:[#allocation13 + $0xbe8] sm:$0xff]
    %v877 = vld [vmem:[#allocation13 + $0xbf0] sm:$0xff]
    %v878 = vld [vmem:[#allocation13 + $0xbf8] sm:$0xff]
    %v879 = vld [vmem:[#allocation13 + $0xc00] sm:$0xff]
    %v880 = vld [vmem:[#allocation13 + $0xc08] sm:$0xff]
    %v881 = vld [vmem:[#allocation13 + $0xc10] sm:$0xff]
    %v882 = vld [vmem:[#allocation13 + $0xc18] sm:$0xff]
    %v883 = vld [vmem:[#allocation13 + $0xc20] sm:$0xff]
    %v884 = vld [vmem:[#allocation13 + $0xc28] sm:$0xff]
    %v885 = vld [vmem:[#allocation13 + $0xc30] sm:$0xff]
    %v886 = vld [vmem:[#allocation13 + $0xc38] sm:$0xff]
    %v887 = vld [vmem:[#allocation13 + $0xc40] sm:$0xff]
    %v888 = vld [vmem:[#allocation13 + $0xc48] sm:$0xff]
    %v889 = vld [vmem:[#allocation13 + $0xc50] sm:$0xff]
    %v890 = vld [vmem:[#allocation13 + $0xc58] sm:$0xff]
    %v891 = vld [vmem:[#allocation13 + $0xc60] sm:$0xff]
    %v892 = vld [vmem:[#allocation13 + $0xc68] sm:$0xff]
    %v893 = vld [vmem:[#allocation13 + $0xc70] sm:$0xff]
    %v894 = vld [vmem:[#allocation13 + $0xc78] sm:$0xff]
    %v895 = vld [vmem:[#allocation13 + $0xc80] sm:$0xff]
    %v896 = vld [vmem:[#allocation13 + $0xc88] sm:$0xff]
    %v897 = vld [vmem:[#allocation13 + $0xc90] sm:$0xff]
    %v898 = vld [vmem:[#allocation13 + $0xc98] sm:$0xff]
    %v899 = vld [vmem:[#allocation13 + $0xca0] sm:$0xff]
    %v900 = vld [vmem:[#allocation13 + $0xca8] sm:$0xff]
    %v901 = vld [vmem:[#allocation13 + $0xcb0] sm:$0xff]
    %v902 = vld [vmem:[#allocation13 + $0xcb8] sm:$0xff]
    %v903 = vld [vmem:[#allocation13 + $0xcc0] sm:$0xff]
    %v904 = vld [vmem:[#allocation13 + $0xcc8] sm:$0xff]
    %v905 = vld [vmem:[#allocation13 + $0xcd0] sm:$0xff]
    %v906 = vld [vmem:[#allocation13 + $0xcd8] sm:$0xff]
    %v907 = vld [vmem:[#allocation13 + $0xce0] sm:$0xff]
    %v908 = vld [vmem:[#allocation13 + $0xce8] sm:$0xff]
    %v909 = vld [vmem:[#allocation13 + $0xcf0] sm:$0xff]
    %v910 = vld [vmem:[#allocation13 + $0xcf8] sm:$0xff]
    %v911 = vld [vmem:[#allocation13 + $0xd00] sm:$0xff]
    %v912 = vld [vmem:[#allocation13 + $0xd08] sm:$0xff]
    %v913 = vld [vmem:[#allocation13 + $0xd10] sm:$0xff]
    %v914 = vld [vmem:[#allocation13 + $0xd18] sm:$0xff]
    %v915 = vld [vmem:[#allocation13 + $0xd20] sm:$0xff]
    %v916 = vld [vmem:[#allocation13 + $0xd28] sm:$0xff]
    %v917 = vld [vmem:[#allocation13 + $0xd30] sm:$0xff]
    %v918 = vld [vmem:[#allocation13 + $0xd38] sm:$0xff]
    %v919 = vld [vmem:[#allocation13 + $0xd40] sm:$0xff]
    %v920 = vld [vmem:[#allocation13 + $0xd48] sm:$0xff]
    %v921 = vld [vmem:[#allocation13 + $0xd50] sm:$0xff]
    %v922 = vld [vmem:[#allocation13 + $0xd58] sm:$0xff]
    %v923 = vld [vmem:[#allocation13 + $0xd60] sm:$0xff]
    %v924 = vld [vmem:[#allocation13 + $0xd68] sm:$0xff]
    %v925 = vld [vmem:[#allocation13 + $0xd70] sm:$0xff]
    %v926 = vld [vmem:[#allocation13 + $0xd78] sm:$0xff]
    %v927 = vld [vmem:[#allocation13 + $0xd80] sm:$0xff]
    %v928 = vld [vmem:[#allocation13 + $0xd88] sm:$0xff]
    %v929 = vld [vmem:[#allocation13 + $0xd90] sm:$0xff]
    %v930 = vld [vmem:[#allocation13 + $0xd98] sm:$0xff]
    %v931 = vld [vmem:[#allocation13 + $0xda0] sm:$0xff]
    %v932 = vld [vmem:[#allocation13 + $0xda8] sm:$0xff]
    %v933 = vld [vmem:[#allocation13 + $0xdb0] sm:$0xff]
    %v934 = vld [vmem:[#allocation13 + $0xdb8] sm:$0xff]
    %v935 = vld [vmem:[#allocation13 + $0xdc0] sm:$0xff]
    %v936 = vld [vmem:[#allocation13 + $0xdc8] sm:$0xff]
    %v937 = vld [vmem:[#allocation13 + $0xdd0] sm:$0xff]
    %v938 = vld [vmem:[#allocation13 + $0xdd8] sm:$0xff]
    %v939 = vld [vmem:[#allocation13 + $0xde0] sm:$0xff]
    %v940 = vld [vmem:[#allocation13 + $0xde8] sm:$0xff]
    %v941 = vld [vmem:[#allocation13 + $0xdf0] sm:$0xff]
    %v942 = vld [vmem:[#allocation13 + $0xdf8] sm:$0xff]
    %v943 = vld [vmem:[#allocation13 + $0xe00] sm:$0xff]
    %v944 = vld [vmem:[#allocation13 + $0xe08] sm:$0xff]
    %v945 = vld [vmem:[#allocation13 + $0xe10] sm:$0xff]
    %v946 = vld [vmem:[#allocation13 + $0xe18] sm:$0xff]
    %v947 = vld [vmem:[#allocation13 + $0xe20] sm:$0xff]
    %v948 = vld [vmem:[#allocation13 + $0xe28] sm:$0xff]
    %v949 = vld [vmem:[#allocation13 + $0xe30] sm:$0xff]
    %v950 = vld [vmem:[#allocation13 + $0xe38] sm:$0xff]
    %v951 = vld [vmem:[#allocation13 + $0xe40] sm:$0xff]
    %v952 = vld [vmem:[#allocation13 + $0xe48] sm:$0xff]
    %v953 = vld [vmem:[#allocation13 + $0xe50] sm:$0xff]
    %v954 = vld [vmem:[#allocation13 + $0xe58] sm:$0xff]
    %v955 = vld [vmem:[#allocation13 + $0xe60] sm:$0xff]
    %v956 = vld [vmem:[#allocation13 + $0xe68] sm:$0xff]
    %v957 = vld [vmem:[#allocation13 + $0xe70] sm:$0xff]
    %v958 = vld [vmem:[#allocation13 + $0xe78] sm:$0xff]
    %v959 = vld [vmem:[#allocation13 + $0xe80] sm:$0xff]
    %v960 = vld [vmem:[#allocation13 + $0xe88] sm:$0xff]
    %v961 = vld [vmem:[#allocation13 + $0xe90] sm:$0xff]
    %v962 = vld [vmem:[#allocation13 + $0xe98] sm:$0xff]
    %v963 = vld [vmem:[#allocation13 + $0xea0] sm:$0xff]
    %v964 = vld [vmem:[#allocation13 + $0xea8] sm:$0xff]
    %v965 = vld [vmem:[#allocation13 + $0xeb0] sm:$0xff]
    %v966 = vld [vmem:[#allocation13 + $0xeb8] sm:$0xff]
    %v967 = vld [vmem:[#allocation13 + $0xec0] sm:$0xff]
    %v968 = vld [vmem:[#allocation13 + $0xec8] sm:$0xff]
    %v969 = vld [vmem:[#allocation13 + $0xed0] sm:$0xff]
    %v970 = vld [vmem:[#allocation13 + $0xed8] sm:$0xff]
    %v971 = vld [vmem:[#allocation13 + $0xee0] sm:$0xff]
    %v972 = vld [vmem:[#allocation13 + $0xee8] sm:$0xff]
    %v973 = vld [vmem:[#allocation13 + $0xef0] sm:$0xff]
    %v974 = vld [vmem:[#allocation13 + $0xef8] sm:$0xff]
    %v975 = vld [vmem:[#allocation13 + $0xf00] sm:$0xff]
    %v976 = vld [vmem:[#allocation13 + $0xf08] sm:$0xff]
    %v977 = vld [vmem:[#allocation13 + $0xf10] sm:$0xff]
    %v978 = vld [vmem:[#allocation13 + $0xf18] sm:$0xff]
    %v979 = vld [vmem:[#allocation13 + $0xf20] sm:$0xff]
    %v980 = vld [vmem:[#allocation13 + $0xf28] sm:$0xff]
    %v981 = vld [vmem:[#allocation13 + $0xf30] sm:$0xff]
    %v982 = vld [vmem:[#allocation13 + $0xf38] sm:$0xff]
    %v983 = vld [vmem:[#allocation13 + $0xf40] sm:$0xff]
    %v984 = vld [vmem:[#allocation13 + $0xf48] sm:$0xff]
    %v985 = vld [vmem:[#allocation13 + $0xf50] sm:$0xff]
    %v986 = vld [vmem:[#allocation13 + $0xf58] sm:$0xff]
    %v987 = vld [vmem:[#allocation13 + $0xf60] sm:$0xff]
    %v988 = vld [vmem:[#allocation13 + $0xf68] sm:$0xff]
    %v989 = vld [vmem:[#allocation13 + $0xf70] sm:$0xff]
    %v990 = vld [vmem:[#allocation13 + $0xf78] sm:$0xff]
    %v991 = vld [vmem:[#allocation13 + $0xf80] sm:$0xff]
    %v992 = vld [vmem:[#allocation13 + $0xf88] sm:$0xff]
    %v993 = vld [vmem:[#allocation13 + $0xf90] sm:$0xff]
    %v994 = vld [vmem:[#allocation13 + $0xf98] sm:$0xff]
    %v995 = vld [vmem:[#allocation13 + $0xfa0] sm:$0xff]
    %v996 = vld [vmem:[#allocation13 + $0xfa8] sm:$0xff]
    %v997 = vld [vmem:[#allocation13 + $0xfb0] sm:$0xff]
    %v998 = vld [vmem:[#allocation13 + $0xfb8] sm:$0xff]
    %v999 = vld [vmem:[#allocation13 + $0xfc0] sm:$0xff]
    %v1000 = vld [vmem:[#allocation13 + $0xfc8] sm:$0xff]
    %v1001 = vld [vmem:[#allocation13 + $0xfd0] sm:$0xff]
    %v1002 = vld [vmem:[#allocation13 + $0xfd8] sm:$0xff]
    %v1003 = vld [vmem:[#allocation13 + $0xfe0] sm:$0xff]
    %v1004 = vld [vmem:[#allocation13 + $0xfe8] sm:$0xff]
    %v1005 = vld [vmem:[#allocation13 + $0xff0] sm:$0xff]
    %v1006 = vld [vmem:[#allocation13 + $0xff8] sm:$0xff]
    %v1007 = vld [vmem:[#allocation14] sm:$0xff]
    %v1008 = vld [vmem:[#allocation14 + $0x8] sm:$0xff]
    %v1011 = vlaneseq
    %v1012 = vshrl.u32 %v1011, 7
    %v1013 = vsub.s32 0, %v1012
    %v1014 = vrot.slane %v1007, %v1013
    %v1015 = vlaneseq
    %v1016 = vshrl.u32 %v1015, 7
    %v1017 = vsub.s32 1, %v1016
    %v1018 = vrot.slane %v1007, %v1017
    %v1019 = vlaneseq
    %v1020 = vshrl.u32 %v1019, 7
    %v1021 = vsub.s32 2, %v1020
    %v1022 = vrot.slane %v1007, %v1021
    %v1023 = vlaneseq
    %v1024 = vshrl.u32 %v1023, 7
    %v1025 = vsub.s32 3, %v1024
    %v1026 = vrot.slane %v1007, %v1025
    %v1027 = vlaneseq
    %v1028 = vshrl.u32 %v1027, 7
    %v1029 = vsub.s32 4, %v1028
    %v1030 = vrot.slane %v1007, %v1029
    %v1031 = vlaneseq
    %v1032 = vshrl.u32 %v1031, 7
    %v1033 = vsub.s32 5, %v1032
    %v1034 = vrot.slane %v1007, %v1033
    %v1035 = vlaneseq
    %v1036 = vshrl.u32 %v1035, 7
    %v1037 = vsub.s32 6, %v1036
    %v1038 = vrot.slane %v1007, %v1037
    %v1039 = vlaneseq
    %v1040 = vshrl.u32 %v1039, 7
    %v1041 = vsub.s32 7, %v1040
    %v1042 = vrot.slane %v1007, %v1041
    %v1043 = vlaneseq
    %v1044 = vshrl.u32 %v1043, 7
    %v1045 = vsub.s32 0, %v1044
    %v1046 = vrot.slane %v1008, %v1045
    %v1047 = vlaneseq
    %v1048 = vshrl.u32 %v1047, 7
    %v1049 = vsub.s32 1, %v1048
    %v1050 = vrot.slane %v1008, %v1049
    %v1051 = vlaneseq
    %v1052 = vshrl.u32 %v1051, 7
    %v1053 = vsub.s32 2, %v1052
    %v1054 = vrot.slane %v1008, %v1053
    %v1055 = vlaneseq
    %v1056 = vshrl.u32 %v1055, 7
    %v1057 = vsub.s32 3, %v1056
    %v1058 = vrot.slane %v1008, %v1057
    %v1059 = vlaneseq
    %v1060 = vshrl.u32 %v1059, 7
    %v1061 = vsub.s32 4, %v1060
    %v1062 = vrot.slane %v1008, %v1061
    %v1063 = vlaneseq
    %v1064 = vshrl.u32 %v1063, 7
    %v1065 = vsub.s32 5, %v1064
    %v1066 = vrot.slane %v1008, %v1065
    %v1067 = vlaneseq
    %v1068 = vshrl.u32 %v1067, 7
    %v1069 = vsub.s32 6, %v1068
    %v1070 = vrot.slane %v1008, %v1069
    %v1071 = vlaneseq
    %v1072 = vshrl.u32 %v1071, 7
    %v1073 = vsub.s32 7, %v1072
    %v1074 = vrot.slane %v1008, %v1073
    %v1603 = vunpack.c.l.b16 %v495
    %v1604 = vunpack.c.h.b16 %v495
    %v1605 = vunpack.c.l.b16 %v496
    %v1606 = vunpack.c.h.b16 %v496
    %v1607 = vunpack.c.l.b16 %v497
    %v1608 = vunpack.c.h.b16 %v497
    %v1609 = vunpack.c.l.b16 %v498
    %v1610 = vunpack.c.h.b16 %v498
    %v1611 = vunpack.c.l.b16 %v499
    %v1612 = vunpack.c.h.b16 %v499
    %v1613 = vunpack.c.l.b16 %v500
    %v1614 = vunpack.c.h.b16 %v500
    %v1615 = vunpack.c.l.b16 %v501
    %v1616 = vunpack.c.h.b16 %v501
    %v1617 = vunpack.c.l.b16 %v502
    %v1618 = vunpack.c.h.b16 %v502
    %v1619 = vunpack.c.l.b16 %v503
    %v1620 = vunpack.c.h.b16 %v503
    %v1621 = vunpack.c.l.b16 %v504
    %v1622 = vunpack.c.h.b16 %v504
    %v1623 = vunpack.c.l.b16 %v505
    %v1624 = vunpack.c.h.b16 %v505
    %v1625 = vunpack.c.l.b16 %v506
    %v1626 = vunpack.c.h.b16 %v506
    %v1627 = vunpack.c.l.b16 %v507
    %v1628 = vunpack.c.h.b16 %v507
    %v1629 = vunpack.c.l.b16 %v508
    %v1630 = vunpack.c.h.b16 %v508
    %v1631 = vunpack.c.l.b16 %v509
    %v1632 = vunpack.c.h.b16 %v509
    %v1633 = vunpack.c.l.b16 %v510
    %v1634 = vunpack.c.h.b16 %v510
    %v1635 = vunpack.c.l.b16 %v511
    %v1636 = vunpack.c.h.b16 %v511
    %v1637 = vunpack.c.l.b16 %v512
    %v1638 = vunpack.c.h.b16 %v512
    %v1639 = vunpack.c.l.b16 %v513
    %v1640 = vunpack.c.h.b16 %v513
    %v1641 = vunpack.c.l.b16 %v514
    %v1642 = vunpack.c.h.b16 %v514
    %v1643 = vunpack.c.l.b16 %v515
    %v1644 = vunpack.c.h.b16 %v515
    %v1645 = vunpack.c.l.b16 %v516
    %v1646 = vunpack.c.h.b16 %v516
    %v1647 = vunpack.c.l.b16 %v517
    %v1648 = vunpack.c.h.b16 %v517
    %v1649 = vunpack.c.l.b16 %v518
    %v1650 = vunpack.c.h.b16 %v518
    %v1651 = vunpack.c.l.b16 %v519
    %v1652 = vunpack.c.h.b16 %v519
    %v1653 = vunpack.c.l.b16 %v520
    %v1654 = vunpack.c.h.b16 %v520
    %v1655 = vunpack.c.l.b16 %v521
    %v1656 = vunpack.c.h.b16 %v521
    %v1657 = vunpack.c.l.b16 %v522
    %v1658 = vunpack.c.h.b16 %v522
    %v1659 = vunpack.c.l.b16 %v523
    %v1660 = vunpack.c.h.b16 %v523
    %v1661 = vunpack.c.l.b16 %v524
    %v1662 = vunpack.c.h.b16 %v524
    %v1663 = vunpack.c.l.b16 %v525
    %v1664 = vunpack.c.h.b16 %v525
    %v1665 = vunpack.c.l.b16 %v526
    %v1666 = vunpack.c.h.b16 %v526
    %v1667 = vunpack.c.l.b16 %v527
    %v1668 = vunpack.c.h.b16 %v527
    %v1669 = vunpack.c.l.b16 %v528
    %v1670 = vunpack.c.h.b16 %v528
    %v1671 = vunpack.c.l.b16 %v529
    %v1672 = vunpack.c.h.b16 %v529
    %v1673 = vunpack.c.l.b16 %v530
    %v1674 = vunpack.c.h.b16 %v530
    %v1675 = vunpack.c.l.b16 %v531
    %v1676 = vunpack.c.h.b16 %v531
    %v1677 = vunpack.c.l.b16 %v532
    %v1678 = vunpack.c.h.b16 %v532
    %v1679 = vunpack.c.l.b16 %v533
    %v1680 = vunpack.c.h.b16 %v533
    %v1681 = vunpack.c.l.b16 %v534
    %v1682 = vunpack.c.h.b16 %v534
    %v1683 = vunpack.c.l.b16 %v535
    %v1684 = vunpack.c.h.b16 %v535
    %v1685 = vunpack.c.l.b16 %v536
    %v1686 = vunpack.c.h.b16 %v536
    %v1687 = vunpack.c.l.b16 %v537
    %v1688 = vunpack.c.h.b16 %v537
    %v1689 = vunpack.c.l.b16 %v538
    %v1690 = vunpack.c.h.b16 %v538
    %v1691 = vunpack.c.l.b16 %v539
    %v1692 = vunpack.c.h.b16 %v539
    %v1693 = vunpack.c.l.b16 %v540
    %v1694 = vunpack.c.h.b16 %v540
    %v1695 = vunpack.c.l.b16 %v541
    %v1696 = vunpack.c.h.b16 %v541
    %v1697 = vunpack.c.l.b16 %v542
    %v1698 = vunpack.c.h.b16 %v542
    %v1699 = vunpack.c.l.b16 %v543
    %v1700 = vunpack.c.h.b16 %v543
    %v1701 = vunpack.c.l.b16 %v544
    %v1702 = vunpack.c.h.b16 %v544
    %v1703 = vunpack.c.l.b16 %v545
    %v1704 = vunpack.c.h.b16 %v545
    %v1705 = vunpack.c.l.b16 %v546
    %v1706 = vunpack.c.h.b16 %v546
    %v1707 = vunpack.c.l.b16 %v547
    %v1708 = vunpack.c.h.b16 %v547
    %v1709 = vunpack.c.l.b16 %v548
    %v1710 = vunpack.c.h.b16 %v548
    %v1711 = vunpack.c.l.b16 %v549
    %v1712 = vunpack.c.h.b16 %v549
    %v1713 = vunpack.c.l.b16 %v550
    %v1714 = vunpack.c.h.b16 %v550
    %v1715 = vunpack.c.l.b16 %v551
    %v1716 = vunpack.c.h.b16 %v551
    %v1717 = vunpack.c.l.b16 %v552
    %v1718 = vunpack.c.h.b16 %v552
    %v1719 = vunpack.c.l.b16 %v553
    %v1720 = vunpack.c.h.b16 %v553
    %v1721 = vunpack.c.l.b16 %v554
    %v1722 = vunpack.c.h.b16 %v554
    %v1723 = vunpack.c.l.b16 %v555
    %v1724 = vunpack.c.h.b16 %v555
    %v1725 = vunpack.c.l.b16 %v556
    %v1726 = vunpack.c.h.b16 %v556
    %v1727 = vunpack.c.l.b16 %v557
    %v1728 = vunpack.c.h.b16 %v557
    %v1729 = vunpack.c.l.b16 %v558
    %v1730 = vunpack.c.h.b16 %v558
    %v1731 = vunpack.c.l.b16 %v559
    %v1732 = vunpack.c.h.b16 %v559
    %v1733 = vunpack.c.l.b16 %v560
    %v1734 = vunpack.c.h.b16 %v560
    %v1735 = vunpack.c.l.b16 %v561
    %v1736 = vunpack.c.h.b16 %v561
    %v1737 = vunpack.c.l.b16 %v562
    %v1738 = vunpack.c.h.b16 %v562
    %v1739 = vunpack.c.l.b16 %v563
    %v1740 = vunpack.c.h.b16 %v563
    %v1741 = vunpack.c.l.b16 %v564
    %v1742 = vunpack.c.h.b16 %v564
    %v1743 = vunpack.c.l.b16 %v565
    %v1744 = vunpack.c.h.b16 %v565
    %v1745 = vunpack.c.l.b16 %v566
    %v1746 = vunpack.c.h.b16 %v566
    %v1747 = vunpack.c.l.b16 %v567
    %v1748 = vunpack.c.h.b16 %v567
    %v1749 = vunpack.c.l.b16 %v568
    %v1750 = vunpack.c.h.b16 %v568
    %v1751 = vunpack.c.l.b16 %v569
    %v1752 = vunpack.c.h.b16 %v569
    %v1753 = vunpack.c.l.b16 %v570
    %v1754 = vunpack.c.h.b16 %v570
    %v1755 = vunpack.c.l.b16 %v571
    %v1756 = vunpack.c.h.b16 %v571
    %v1757 = vunpack.c.l.b16 %v572
    %v1758 = vunpack.c.h.b16 %v572
    %v1759 = vunpack.c.l.b16 %v573
    %v1760 = vunpack.c.h.b16 %v573
    %v1761 = vunpack.c.l.b16 %v574
    %v1762 = vunpack.c.h.b16 %v574
    %v1763 = vunpack.c.l.b16 %v575
    %v1764 = vunpack.c.h.b16 %v575
    %v1765 = vunpack.c.l.b16 %v576
    %v1766 = vunpack.c.h.b16 %v576
    %v1767 = vunpack.c.l.b16 %v577
    %v1768 = vunpack.c.h.b16 %v577
    %v1769 = vunpack.c.l.b16 %v578
    %v1770 = vunpack.c.h.b16 %v578
    %v1771 = vunpack.c.l.b16 %v579
    %v1772 = vunpack.c.h.b16 %v579
    %v1773 = vunpack.c.l.b16 %v580
    %v1774 = vunpack.c.h.b16 %v580
    %v1775 = vunpack.c.l.b16 %v581
    %v1776 = vunpack.c.h.b16 %v581
    %v1777 = vunpack.c.l.b16 %v582
    %v1778 = vunpack.c.h.b16 %v582
    %v1779 = vunpack.c.l.b16 %v583
    %v1780 = vunpack.c.h.b16 %v583
    %v1781 = vunpack.c.l.b16 %v584
    %v1782 = vunpack.c.h.b16 %v584
    %v1783 = vunpack.c.l.b16 %v585
    %v1784 = vunpack.c.h.b16 %v585
    %v1785 = vunpack.c.l.b16 %v586
    %v1786 = vunpack.c.h.b16 %v586
    %v1787 = vunpack.c.l.b16 %v587
    %v1788 = vunpack.c.h.b16 %v587
    %v1789 = vunpack.c.l.b16 %v588
    %v1790 = vunpack.c.h.b16 %v588
    %v1791 = vunpack.c.l.b16 %v589
    %v1792 = vunpack.c.h.b16 %v589
    %v1793 = vunpack.c.l.b16 %v590
    %v1794 = vunpack.c.h.b16 %v590
    %v1795 = vunpack.c.l.b16 %v591
    %v1796 = vunpack.c.h.b16 %v591
    %v1797 = vunpack.c.l.b16 %v592
    %v1798 = vunpack.c.h.b16 %v592
    %v1799 = vunpack.c.l.b16 %v593
    %v1800 = vunpack.c.h.b16 %v593
    %v1801 = vunpack.c.l.b16 %v594
    %v1802 = vunpack.c.h.b16 %v594
    %v1803 = vunpack.c.l.b16 %v595
    %v1804 = vunpack.c.h.b16 %v595
    %v1805 = vunpack.c.l.b16 %v596
    %v1806 = vunpack.c.h.b16 %v596
    %v1807 = vunpack.c.l.b16 %v597
    %v1808 = vunpack.c.h.b16 %v597
    %v1809 = vunpack.c.l.b16 %v598
    %v1810 = vunpack.c.h.b16 %v598
    %v1811 = vunpack.c.l.b16 %v599
    %v1812 = vunpack.c.h.b16 %v599
    %v1813 = vunpack.c.l.b16 %v600
    %v1814 = vunpack.c.h.b16 %v600
    %v1815 = vunpack.c.l.b16 %v601
    %v1816 = vunpack.c.h.b16 %v601
    %v1817 = vunpack.c.l.b16 %v602
    %v1818 = vunpack.c.h.b16 %v602
    %v1819 = vunpack.c.l.b16 %v603
    %v1820 = vunpack.c.h.b16 %v603
    %v1821 = vunpack.c.l.b16 %v604
    %v1822 = vunpack.c.h.b16 %v604
    %v1823 = vunpack.c.l.b16 %v605
    %v1824 = vunpack.c.h.b16 %v605
    %v1825 = vunpack.c.l.b16 %v606
    %v1826 = vunpack.c.h.b16 %v606
    %v1827 = vunpack.c.l.b16 %v607
    %v1828 = vunpack.c.h.b16 %v607
    %v1829 = vunpack.c.l.b16 %v608
    %v1830 = vunpack.c.h.b16 %v608
    %v1831 = vunpack.c.l.b16 %v609
    %v1832 = vunpack.c.h.b16 %v609
    %v1833 = vunpack.c.l.b16 %v610
    %v1834 = vunpack.c.h.b16 %v610
    %v1835 = vunpack.c.l.b16 %v611
    %v1836 = vunpack.c.h.b16 %v611
    %v1837 = vunpack.c.l.b16 %v612
    %v1838 = vunpack.c.h.b16 %v612
    %v1839 = vunpack.c.l.b16 %v613
    %v1840 = vunpack.c.h.b16 %v613
    %v1841 = vunpack.c.l.b16 %v614
    %v1842 = vunpack.c.h.b16 %v614
    %v1843 = vunpack.c.l.b16 %v615
    %v1844 = vunpack.c.h.b16 %v615
    %v1845 = vunpack.c.l.b16 %v616
    %v1846 = vunpack.c.h.b16 %v616
    %v1847 = vunpack.c.l.b16 %v617
    %v1848 = vunpack.c.h.b16 %v617
    %v1849 = vunpack.c.l.b16 %v618
    %v1850 = vunpack.c.h.b16 %v618
    %v1851 = vunpack.c.l.b16 %v619
    %v1852 = vunpack.c.h.b16 %v619
    %v1853 = vunpack.c.l.b16 %v620
    %v1854 = vunpack.c.h.b16 %v620
    %v1855 = vunpack.c.l.b16 %v621
    %v1856 = vunpack.c.h.b16 %v621
    %v1857 = vunpack.c.l.b16 %v622
    %v1858 = vunpack.c.h.b16 %v622
    %v1859 = vunpack.c.l.b16 %v623
    %v1860 = vunpack.c.h.b16 %v623
    %v1861 = vunpack.c.l.b16 %v624
    %v1862 = vunpack.c.h.b16 %v624
    %v1863 = vunpack.c.l.b16 %v625
    %v1864 = vunpack.c.h.b16 %v625
    %v1865 = vunpack.c.l.b16 %v626
    %v1866 = vunpack.c.h.b16 %v626
    %v1867 = vunpack.c.l.b16 %v627
    %v1868 = vunpack.c.h.b16 %v627
    %v1869 = vunpack.c.l.b16 %v628
    %v1870 = vunpack.c.h.b16 %v628
    %v1871 = vunpack.c.l.b16 %v629
    %v1872 = vunpack.c.h.b16 %v629
    %v1873 = vunpack.c.l.b16 %v630
    %v1874 = vunpack.c.h.b16 %v630
    %v1875 = vunpack.c.l.b16 %v631
    %v1876 = vunpack.c.h.b16 %v631
    %v1877 = vunpack.c.l.b16 %v632
    %v1878 = vunpack.c.h.b16 %v632
    %v1879 = vunpack.c.l.b16 %v633
    %v1880 = vunpack.c.h.b16 %v633
    %v1881 = vunpack.c.l.b16 %v634
    %v1882 = vunpack.c.h.b16 %v634
    %v1883 = vunpack.c.l.b16 %v635
    %v1884 = vunpack.c.h.b16 %v635
    %v1885 = vunpack.c.l.b16 %v636
    %v1886 = vunpack.c.h.b16 %v636
    %v1887 = vunpack.c.l.b16 %v637
    %v1888 = vunpack.c.h.b16 %v637
    %v1889 = vunpack.c.l.b16 %v638
    %v1890 = vunpack.c.h.b16 %v638
    %v1891 = vunpack.c.l.b16 %v639
    %v1892 = vunpack.c.h.b16 %v639
    %v1893 = vunpack.c.l.b16 %v640
    %v1894 = vunpack.c.h.b16 %v640
    %v1895 = vunpack.c.l.b16 %v641
    %v1896 = vunpack.c.h.b16 %v641
    %v1897 = vunpack.c.l.b16 %v642
    %v1898 = vunpack.c.h.b16 %v642
    %v1899 = vunpack.c.l.b16 %v643
    %v1900 = vunpack.c.h.b16 %v643
    %v1901 = vunpack.c.l.b16 %v644
    %v1902 = vunpack.c.h.b16 %v644
    %v1903 = vunpack.c.l.b16 %v645
    %v1904 = vunpack.c.h.b16 %v645
    %v1905 = vunpack.c.l.b16 %v646
    %v1906 = vunpack.c.h.b16 %v646
    %v1907 = vunpack.c.l.b16 %v647
    %v1908 = vunpack.c.h.b16 %v647
    %v1909 = vunpack.c.l.b16 %v648
    %v1910 = vunpack.c.h.b16 %v648
    %v1911 = vunpack.c.l.b16 %v649
    %v1912 = vunpack.c.h.b16 %v649
    %v1913 = vunpack.c.l.b16 %v650
    %v1914 = vunpack.c.h.b16 %v650
    %v1915 = vunpack.c.l.b16 %v651
    %v1916 = vunpack.c.h.b16 %v651
    %v1917 = vunpack.c.l.b16 %v652
    %v1918 = vunpack.c.h.b16 %v652
    %v1919 = vunpack.c.l.b16 %v653
    %v1920 = vunpack.c.h.b16 %v653
    %v1921 = vunpack.c.l.b16 %v654
    %v1922 = vunpack.c.h.b16 %v654
    %v1923 = vunpack.c.l.b16 %v655
    %v1924 = vunpack.c.h.b16 %v655
    %v1925 = vunpack.c.l.b16 %v656
    %v1926 = vunpack.c.h.b16 %v656
    %v1927 = vunpack.c.l.b16 %v657
    %v1928 = vunpack.c.h.b16 %v657
    %v1929 = vunpack.c.l.b16 %v658
    %v1930 = vunpack.c.h.b16 %v658
    %v1931 = vunpack.c.l.b16 %v659
    %v1932 = vunpack.c.h.b16 %v659
    %v1933 = vunpack.c.l.b16 %v660
    %v1934 = vunpack.c.h.b16 %v660
    %v1935 = vunpack.c.l.b16 %v661
    %v1936 = vunpack.c.h.b16 %v661
    %v1937 = vunpack.c.l.b16 %v662
    %v1938 = vunpack.c.h.b16 %v662
    %v1939 = vunpack.c.l.b16 %v663
    %v1940 = vunpack.c.h.b16 %v663
    %v1941 = vunpack.c.l.b16 %v664
    %v1942 = vunpack.c.h.b16 %v664
    %v1943 = vunpack.c.l.b16 %v665
    %v1944 = vunpack.c.h.b16 %v665
    %v1945 = vunpack.c.l.b16 %v666
    %v1946 = vunpack.c.h.b16 %v666
    %v1947 = vunpack.c.l.b16 %v667
    %v1948 = vunpack.c.h.b16 %v667
    %v1949 = vunpack.c.l.b16 %v668
    %v1950 = vunpack.c.h.b16 %v668
    %v1951 = vunpack.c.l.b16 %v669
    %v1952 = vunpack.c.h.b16 %v669
    %v1953 = vunpack.c.l.b16 %v670
    %v1954 = vunpack.c.h.b16 %v670
    %v1955 = vunpack.c.l.b16 %v671
    %v1956 = vunpack.c.h.b16 %v671
    %v1957 = vunpack.c.l.b16 %v672
    %v1958 = vunpack.c.h.b16 %v672
    %v1959 = vunpack.c.l.b16 %v673
    %v1960 = vunpack.c.h.b16 %v673
    %v1961 = vunpack.c.l.b16 %v674
    %v1962 = vunpack.c.h.b16 %v674
    %v1963 = vunpack.c.l.b16 %v675
    %v1964 = vunpack.c.h.b16 %v675
    %v1965 = vunpack.c.l.b16 %v676
    %v1966 = vunpack.c.h.b16 %v676
    %v1967 = vunpack.c.l.b16 %v677
    %v1968 = vunpack.c.h.b16 %v677
    %v1969 = vunpack.c.l.b16 %v678
    %v1970 = vunpack.c.h.b16 %v678
    %v1971 = vunpack.c.l.b16 %v679
    %v1972 = vunpack.c.h.b16 %v679
    %v1973 = vunpack.c.l.b16 %v680
    %v1974 = vunpack.c.h.b16 %v680
    %v1975 = vunpack.c.l.b16 %v681
    %v1976 = vunpack.c.h.b16 %v681
    %v1977 = vunpack.c.l.b16 %v682
    %v1978 = vunpack.c.h.b16 %v682
    %v1979 = vunpack.c.l.b16 %v683
    %v1980 = vunpack.c.h.b16 %v683
    %v1981 = vunpack.c.l.b16 %v684
    %v1982 = vunpack.c.h.b16 %v684
    %v1983 = vunpack.c.l.b16 %v685
    %v1984 = vunpack.c.h.b16 %v685
    %v1985 = vunpack.c.l.b16 %v686
    %v1986 = vunpack.c.h.b16 %v686
    %v1987 = vunpack.c.l.b16 %v687
    %v1988 = vunpack.c.h.b16 %v687
    %v1989 = vunpack.c.l.b16 %v688
    %v1990 = vunpack.c.h.b16 %v688
    %v1991 = vunpack.c.l.b16 %v689
    %v1992 = vunpack.c.h.b16 %v689
    %v1993 = vunpack.c.l.b16 %v690
    %v1994 = vunpack.c.h.b16 %v690
    %v1995 = vunpack.c.l.b16 %v691
    %v1996 = vunpack.c.h.b16 %v691
    %v1997 = vunpack.c.l.b16 %v692
    %v1998 = vunpack.c.h.b16 %v692
    %v1999 = vunpack.c.l.b16 %v693
    %v2000 = vunpack.c.h.b16 %v693
    %v2001 = vunpack.c.l.b16 %v694
    %v2002 = vunpack.c.h.b16 %v694
    %v2003 = vunpack.c.l.b16 %v695
    %v2004 = vunpack.c.h.b16 %v695
    %v2005 = vunpack.c.l.b16 %v696
    %v2006 = vunpack.c.h.b16 %v696
    %v2007 = vunpack.c.l.b16 %v697
    %v2008 = vunpack.c.h.b16 %v697
    %v2009 = vunpack.c.l.b16 %v698
    %v2010 = vunpack.c.h.b16 %v698
    %v2011 = vunpack.c.l.b16 %v699
    %v2012 = vunpack.c.h.b16 %v699
    %v2013 = vunpack.c.l.b16 %v700
    %v2014 = vunpack.c.h.b16 %v700
    %v2015 = vunpack.c.l.b16 %v701
    %v2016 = vunpack.c.h.b16 %v701
    %v2017 = vunpack.c.l.b16 %v702
    %v2018 = vunpack.c.h.b16 %v702
    %v2019 = vunpack.c.l.b16 %v703
    %v2020 = vunpack.c.h.b16 %v703
    %v2021 = vunpack.c.l.b16 %v704
    %v2022 = vunpack.c.h.b16 %v704
    %v2023 = vunpack.c.l.b16 %v705
    %v2024 = vunpack.c.h.b16 %v705
    %v2025 = vunpack.c.l.b16 %v706
    %v2026 = vunpack.c.h.b16 %v706
    %v2027 = vunpack.c.l.b16 %v707
    %v2028 = vunpack.c.h.b16 %v707
    %v2029 = vunpack.c.l.b16 %v708
    %v2030 = vunpack.c.h.b16 %v708
    %v2031 = vunpack.c.l.b16 %v709
    %v2032 = vunpack.c.h.b16 %v709
    %v2033 = vunpack.c.l.b16 %v710
    %v2034 = vunpack.c.h.b16 %v710
    %v2035 = vunpack.c.l.b16 %v711
    %v2036 = vunpack.c.h.b16 %v711
    %v2037 = vunpack.c.l.b16 %v712
    %v2038 = vunpack.c.h.b16 %v712
    %v2039 = vunpack.c.l.b16 %v713
    %v2040 = vunpack.c.h.b16 %v713
    %v2041 = vunpack.c.l.b16 %v714
    %v2042 = vunpack.c.h.b16 %v714
    %v2043 = vunpack.c.l.b16 %v715
    %v2044 = vunpack.c.h.b16 %v715
    %v2045 = vunpack.c.l.b16 %v716
    %v2046 = vunpack.c.h.b16 %v716
    %v2047 = vunpack.c.l.b16 %v717
    %v2048 = vunpack.c.h.b16 %v717
    %v2049 = vunpack.c.l.b16 %v718
    %v2050 = vunpack.c.h.b16 %v718
    %v2051 = vunpack.c.l.b16 %v719
    %v2052 = vunpack.c.h.b16 %v719
    %v2053 = vunpack.c.l.b16 %v720
    %v2054 = vunpack.c.h.b16 %v720
    %v2055 = vunpack.c.l.b16 %v721
    %v2056 = vunpack.c.h.b16 %v721
    %v2057 = vunpack.c.l.b16 %v722
    %v2058 = vunpack.c.h.b16 %v722
    %v2059 = vunpack.c.l.b16 %v723
    %v2060 = vunpack.c.h.b16 %v723
    %v2061 = vunpack.c.l.b16 %v724
    %v2062 = vunpack.c.h.b16 %v724
    %v2063 = vunpack.c.l.b16 %v725
    %v2064 = vunpack.c.h.b16 %v725
    %v2065 = vunpack.c.l.b16 %v726
    %v2066 = vunpack.c.h.b16 %v726
    %v2067 = vunpack.c.l.b16 %v727
    %v2068 = vunpack.c.h.b16 %v727
    %v2069 = vunpack.c.l.b16 %v728
    %v2070 = vunpack.c.h.b16 %v728
    %v2071 = vunpack.c.l.b16 %v729
    %v2072 = vunpack.c.h.b16 %v729
    %v2073 = vunpack.c.l.b16 %v730
    %v2074 = vunpack.c.h.b16 %v730
    %v2075 = vunpack.c.l.b16 %v731
    %v2076 = vunpack.c.h.b16 %v731
    %v2077 = vunpack.c.l.b16 %v732
    %v2078 = vunpack.c.h.b16 %v732
    %v2079 = vunpack.c.l.b16 %v733
    %v2080 = vunpack.c.h.b16 %v733
    %v2081 = vunpack.c.l.b16 %v734
    %v2082 = vunpack.c.h.b16 %v734
    %v2083 = vunpack.c.l.b16 %v735
    %v2084 = vunpack.c.h.b16 %v735
    %v2085 = vunpack.c.l.b16 %v736
    %v2086 = vunpack.c.h.b16 %v736
    %v2087 = vunpack.c.l.b16 %v737
    %v2088 = vunpack.c.h.b16 %v737
    %v2089 = vunpack.c.l.b16 %v738
    %v2090 = vunpack.c.h.b16 %v738
    %v2091 = vunpack.c.l.b16 %v739
    %v2092 = vunpack.c.h.b16 %v739
    %v2093 = vunpack.c.l.b16 %v740
    %v2094 = vunpack.c.h.b16 %v740
    %v2095 = vunpack.c.l.b16 %v741
    %v2096 = vunpack.c.h.b16 %v741
    %v2097 = vunpack.c.l.b16 %v742
    %v2098 = vunpack.c.h.b16 %v742
    %v2099 = vunpack.c.l.b16 %v743
    %v2100 = vunpack.c.h.b16 %v743
    %v2101 = vunpack.c.l.b16 %v744
    %v2102 = vunpack.c.h.b16 %v744
    %v2103 = vunpack.c.l.b16 %v745
    %v2104 = vunpack.c.h.b16 %v745
    %v2105 = vunpack.c.l.b16 %v746
    %v2106 = vunpack.c.h.b16 %v746
    %v2107 = vunpack.c.l.b16 %v747
    %v2108 = vunpack.c.h.b16 %v747
    %v2109 = vunpack.c.l.b16 %v748
    %v2110 = vunpack.c.h.b16 %v748
    %v2111 = vunpack.c.l.b16 %v749
    %v2112 = vunpack.c.h.b16 %v749
    %v2113 = vunpack.c.l.b16 %v750
    %v2114 = vunpack.c.h.b16 %v750
    %v2115 = vunpack.c.l.b16 %v751
    %v2116 = vunpack.c.h.b16 %v751
    %v2117 = vunpack.c.l.b16 %v752
    %v2118 = vunpack.c.h.b16 %v752
    %v2119 = vunpack.c.l.b16 %v753
    %v2120 = vunpack.c.h.b16 %v753
    %v2121 = vunpack.c.l.b16 %v754
    %v2122 = vunpack.c.h.b16 %v754
    %v2123 = vunpack.c.l.b16 %v755
    %v2124 = vunpack.c.h.b16 %v755
    %v2125 = vunpack.c.l.b16 %v756
    %v2126 = vunpack.c.h.b16 %v756
    %v2127 = vunpack.c.l.b16 %v757
    %v2128 = vunpack.c.h.b16 %v757
    %v2129 = vunpack.c.l.b16 %v758
    %v2130 = vunpack.c.h.b16 %v758
    %v2131 = vunpack.c.l.b16 %v759
    %v2132 = vunpack.c.h.b16 %v759
    %v2133 = vunpack.c.l.b16 %v760
    %v2134 = vunpack.c.h.b16 %v760
    %v2135 = vunpack.c.l.b16 %v761
    %v2136 = vunpack.c.h.b16 %v761
    %v2137 = vunpack.c.l.b16 %v762
    %v2138 = vunpack.c.h.b16 %v762
    %v2139 = vunpack.c.l.b16 %v763
    %v2140 = vunpack.c.h.b16 %v763
    %v2141 = vunpack.c.l.b16 %v764
    %v2142 = vunpack.c.h.b16 %v764
    %v2143 = vunpack.c.l.b16 %v765
    %v2144 = vunpack.c.h.b16 %v765
    %v2145 = vunpack.c.l.b16 %v766
    %v2146 = vunpack.c.h.b16 %v766
    %v2147 = vunpack.c.l.b16 %v767
    %v2148 = vunpack.c.h.b16 %v767
    %v2149 = vunpack.c.l.b16 %v768
    %v2150 = vunpack.c.h.b16 %v768
    %v2151 = vunpack.c.l.b16 %v769
    %v2152 = vunpack.c.h.b16 %v769
    %v2153 = vunpack.c.l.b16 %v770
    %v2154 = vunpack.c.h.b16 %v770
    %v2155 = vunpack.c.l.b16 %v771
    %v2156 = vunpack.c.h.b16 %v771
    %v2157 = vunpack.c.l.b16 %v772
    %v2158 = vunpack.c.h.b16 %v772
    %v2159 = vunpack.c.l.b16 %v773
    %v2160 = vunpack.c.h.b16 %v773
    %v2161 = vunpack.c.l.b16 %v774
    %v2162 = vunpack.c.h.b16 %v774
    %v2163 = vunpack.c.l.b16 %v775
    %v2164 = vunpack.c.h.b16 %v775
    %v2165 = vunpack.c.l.b16 %v776
    %v2166 = vunpack.c.h.b16 %v776
    %v2167 = vunpack.c.l.b16 %v777
    %v2168 = vunpack.c.h.b16 %v777
    %v2169 = vunpack.c.l.b16 %v778
    %v2170 = vunpack.c.h.b16 %v778
    %v2171 = vunpack.c.l.b16 %v779
    %v2172 = vunpack.c.h.b16 %v779
    %v2173 = vunpack.c.l.b16 %v780
    %v2174 = vunpack.c.h.b16 %v780
    %v2175 = vunpack.c.l.b16 %v781
    %v2176 = vunpack.c.h.b16 %v781
    %v2177 = vunpack.c.l.b16 %v782
    %v2178 = vunpack.c.h.b16 %v782
    %v2179 = vunpack.c.l.b16 %v783
    %v2180 = vunpack.c.h.b16 %v783
    %v2181 = vunpack.c.l.b16 %v784
    %v2182 = vunpack.c.h.b16 %v784
    %v2183 = vunpack.c.l.b16 %v785
    %v2184 = vunpack.c.h.b16 %v785
    %v2185 = vunpack.c.l.b16 %v786
    %v2186 = vunpack.c.h.b16 %v786
    %v2187 = vunpack.c.l.b16 %v787
    %v2188 = vunpack.c.h.b16 %v787
    %v2189 = vunpack.c.l.b16 %v788
    %v2190 = vunpack.c.h.b16 %v788
    %v2191 = vunpack.c.l.b16 %v789
    %v2192 = vunpack.c.h.b16 %v789
    %v2193 = vunpack.c.l.b16 %v790
    %v2194 = vunpack.c.h.b16 %v790
    %v2195 = vunpack.c.l.b16 %v791
    %v2196 = vunpack.c.h.b16 %v791
    %v2197 = vunpack.c.l.b16 %v792
    %v2198 = vunpack.c.h.b16 %v792
    %v2199 = vunpack.c.l.b16 %v793
    %v2200 = vunpack.c.h.b16 %v793
    %v2201 = vunpack.c.l.b16 %v794
    %v2202 = vunpack.c.h.b16 %v794
    %v2203 = vunpack.c.l.b16 %v795
    %v2204 = vunpack.c.h.b16 %v795
    %v2205 = vunpack.c.l.b16 %v796
    %v2206 = vunpack.c.h.b16 %v796
    %v2207 = vunpack.c.l.b16 %v797
    %v2208 = vunpack.c.h.b16 %v797
    %v2209 = vunpack.c.l.b16 %v798
    %v2210 = vunpack.c.h.b16 %v798
    %v2211 = vunpack.c.l.b16 %v799
    %v2212 = vunpack.c.h.b16 %v799
    %v2213 = vunpack.c.l.b16 %v800
    %v2214 = vunpack.c.h.b16 %v800
    %v2215 = vunpack.c.l.b16 %v801
    %v2216 = vunpack.c.h.b16 %v801
    %v2217 = vunpack.c.l.b16 %v802
    %v2218 = vunpack.c.h.b16 %v802
    %v2219 = vunpack.c.l.b16 %v803
    %v2220 = vunpack.c.h.b16 %v803
    %v2221 = vunpack.c.l.b16 %v804
    %v2222 = vunpack.c.h.b16 %v804
    %v2223 = vunpack.c.l.b16 %v805
    %v2224 = vunpack.c.h.b16 %v805
    %v2225 = vunpack.c.l.b16 %v806
    %v2226 = vunpack.c.h.b16 %v806
    %v2227 = vunpack.c.l.b16 %v807
    %v2228 = vunpack.c.h.b16 %v807
    %v2229 = vunpack.c.l.b16 %v808
    %v2230 = vunpack.c.h.b16 %v808
    %v2231 = vunpack.c.l.b16 %v809
    %v2232 = vunpack.c.h.b16 %v809
    %v2233 = vunpack.c.l.b16 %v810
    %v2234 = vunpack.c.h.b16 %v810
    %v2235 = vunpack.c.l.b16 %v811
    %v2236 = vunpack.c.h.b16 %v811
    %v2237 = vunpack.c.l.b16 %v812
    %v2238 = vunpack.c.h.b16 %v812
    %v2239 = vunpack.c.l.b16 %v813
    %v2240 = vunpack.c.h.b16 %v813
    %v2241 = vunpack.c.l.b16 %v814
    %v2242 = vunpack.c.h.b16 %v814
    %v2243 = vunpack.c.l.b16 %v815
    %v2244 = vunpack.c.h.b16 %v815
    %v2245 = vunpack.c.l.b16 %v816
    %v2246 = vunpack.c.h.b16 %v816
    %v2247 = vunpack.c.l.b16 %v817
    %v2248 = vunpack.c.h.b16 %v817
    %v2249 = vunpack.c.l.b16 %v818
    %v2250 = vunpack.c.h.b16 %v818
    %v2251 = vunpack.c.l.b16 %v819
    %v2252 = vunpack.c.h.b16 %v819
    %v2253 = vunpack.c.l.b16 %v820
    %v2254 = vunpack.c.h.b16 %v820
    %v2255 = vunpack.c.l.b16 %v821
    %v2256 = vunpack.c.h.b16 %v821
    %v2257 = vunpack.c.l.b16 %v822
    %v2258 = vunpack.c.h.b16 %v822
    %v2259 = vunpack.c.l.b16 %v823
    %v2260 = vunpack.c.h.b16 %v823
    %v2261 = vunpack.c.l.b16 %v824
    %v2262 = vunpack.c.h.b16 %v824
    %v2263 = vunpack.c.l.b16 %v825
    %v2264 = vunpack.c.h.b16 %v825
    %v2265 = vunpack.c.l.b16 %v826
    %v2266 = vunpack.c.h.b16 %v826
    %v2267 = vunpack.c.l.b16 %v827
    %v2268 = vunpack.c.h.b16 %v827
    %v2269 = vunpack.c.l.b16 %v828
    %v2270 = vunpack.c.h.b16 %v828
    %v2271 = vunpack.c.l.b16 %v829
    %v2272 = vunpack.c.h.b16 %v829
    %v2273 = vunpack.c.l.b16 %v830
    %v2274 = vunpack.c.h.b16 %v830
    %v2275 = vunpack.c.l.b16 %v831
    %v2276 = vunpack.c.h.b16 %v831
    %v2277 = vunpack.c.l.b16 %v832
    %v2278 = vunpack.c.h.b16 %v832
    %v2279 = vunpack.c.l.b16 %v833
    %v2280 = vunpack.c.h.b16 %v833
    %v2281 = vunpack.c.l.b16 %v834
    %v2282 = vunpack.c.h.b16 %v834
    %v2283 = vunpack.c.l.b16 %v835
    %v2284 = vunpack.c.h.b16 %v835
    %v2285 = vunpack.c.l.b16 %v836
    %v2286 = vunpack.c.h.b16 %v836
    %v2287 = vunpack.c.l.b16 %v837
    %v2288 = vunpack.c.h.b16 %v837
    %v2289 = vunpack.c.l.b16 %v838
    %v2290 = vunpack.c.h.b16 %v838
    %v2291 = vunpack.c.l.b16 %v839
    %v2292 = vunpack.c.h.b16 %v839
    %v2293 = vunpack.c.l.b16 %v840
    %v2294 = vunpack.c.h.b16 %v840
    %v2295 = vunpack.c.l.b16 %v841
    %v2296 = vunpack.c.h.b16 %v841
    %v2297 = vunpack.c.l.b16 %v842
    %v2298 = vunpack.c.h.b16 %v842
    %v2299 = vunpack.c.l.b16 %v843
    %v2300 = vunpack.c.h.b16 %v843
    %v2301 = vunpack.c.l.b16 %v844
    %v2302 = vunpack.c.h.b16 %v844
    %v2303 = vunpack.c.l.b16 %v845
    %v2304 = vunpack.c.h.b16 %v845
    %v2305 = vunpack.c.l.b16 %v846
    %v2306 = vunpack.c.h.b16 %v846
    %v2307 = vunpack.c.l.b16 %v847
    %v2308 = vunpack.c.h.b16 %v847
    %v2309 = vunpack.c.l.b16 %v848
    %v2310 = vunpack.c.h.b16 %v848
    %v2311 = vunpack.c.l.b16 %v849
    %v2312 = vunpack.c.h.b16 %v849
    %v2313 = vunpack.c.l.b16 %v850
    %v2314 = vunpack.c.h.b16 %v850
    %v2315 = vunpack.c.l.b16 %v851
    %v2316 = vunpack.c.h.b16 %v851
    %v2317 = vunpack.c.l.b16 %v852
    %v2318 = vunpack.c.h.b16 %v852
    %v2319 = vunpack.c.l.b16 %v853
    %v2320 = vunpack.c.h.b16 %v853
    %v2321 = vunpack.c.l.b16 %v854
    %v2322 = vunpack.c.h.b16 %v854
    %v2323 = vunpack.c.l.b16 %v855
    %v2324 = vunpack.c.h.b16 %v855
    %v2325 = vunpack.c.l.b16 %v856
    %v2326 = vunpack.c.h.b16 %v856
    %v2327 = vunpack.c.l.b16 %v857
    %v2328 = vunpack.c.h.b16 %v857
    %v2329 = vunpack.c.l.b16 %v858
    %v2330 = vunpack.c.h.b16 %v858
    %v2331 = vunpack.c.l.b16 %v859
    %v2332 = vunpack.c.h.b16 %v859
    %v2333 = vunpack.c.l.b16 %v860
    %v2334 = vunpack.c.h.b16 %v860
    %v2335 = vunpack.c.l.b16 %v861
    %v2336 = vunpack.c.h.b16 %v861
    %v2337 = vunpack.c.l.b16 %v862
    %v2338 = vunpack.c.h.b16 %v862
    %v2339 = vunpack.c.l.b16 %v863
    %v2340 = vunpack.c.h.b16 %v863
    %v2341 = vunpack.c.l.b16 %v864
    %v2342 = vunpack.c.h.b16 %v864
    %v2343 = vunpack.c.l.b16 %v865
    %v2344 = vunpack.c.h.b16 %v865
    %v2345 = vunpack.c.l.b16 %v866
    %v2346 = vunpack.c.h.b16 %v866
    %v2347 = vunpack.c.l.b16 %v867
    %v2348 = vunpack.c.h.b16 %v867
    %v2349 = vunpack.c.l.b16 %v868
    %v2350 = vunpack.c.h.b16 %v868
    %v2351 = vunpack.c.l.b16 %v869
    %v2352 = vunpack.c.h.b16 %v869
    %v2353 = vunpack.c.l.b16 %v870
    %v2354 = vunpack.c.h.b16 %v870
    %v2355 = vunpack.c.l.b16 %v871
    %v2356 = vunpack.c.h.b16 %v871
    %v2357 = vunpack.c.l.b16 %v872
    %v2358 = vunpack.c.h.b16 %v872
    %v2359 = vunpack.c.l.b16 %v873
    %v2360 = vunpack.c.h.b16 %v873
    %v2361 = vunpack.c.l.b16 %v874
    %v2362 = vunpack.c.h.b16 %v874
    %v2363 = vunpack.c.l.b16 %v875
    %v2364 = vunpack.c.h.b16 %v875
    %v2365 = vunpack.c.l.b16 %v876
    %v2366 = vunpack.c.h.b16 %v876
    %v2367 = vunpack.c.l.b16 %v877
    %v2368 = vunpack.c.h.b16 %v877
    %v2369 = vunpack.c.l.b16 %v878
    %v2370 = vunpack.c.h.b16 %v878
    %v2371 = vunpack.c.l.b16 %v879
    %v2372 = vunpack.c.h.b16 %v879
    %v2373 = vunpack.c.l.b16 %v880
    %v2374 = vunpack.c.h.b16 %v880
    %v2375 = vunpack.c.l.b16 %v881
    %v2376 = vunpack.c.h.b16 %v881
    %v2377 = vunpack.c.l.b16 %v882
    %v2378 = vunpack.c.h.b16 %v882
    %v2379 = vunpack.c.l.b16 %v883
    %v2380 = vunpack.c.h.b16 %v883
    %v2381 = vunpack.c.l.b16 %v884
    %v2382 = vunpack.c.h.b16 %v884
    %v2383 = vunpack.c.l.b16 %v885
    %v2384 = vunpack.c.h.b16 %v885
    %v2385 = vunpack.c.l.b16 %v886
    %v2386 = vunpack.c.h.b16 %v886
    %v2387 = vunpack.c.l.b16 %v887
    %v2388 = vunpack.c.h.b16 %v887
    %v2389 = vunpack.c.l.b16 %v888
    %v2390 = vunpack.c.h.b16 %v888
    %v2391 = vunpack.c.l.b16 %v889
    %v2392 = vunpack.c.h.b16 %v889
    %v2393 = vunpack.c.l.b16 %v890
    %v2394 = vunpack.c.h.b16 %v890
    %v2395 = vunpack.c.l.b16 %v891
    %v2396 = vunpack.c.h.b16 %v891
    %v2397 = vunpack.c.l.b16 %v892
    %v2398 = vunpack.c.h.b16 %v892
    %v2399 = vunpack.c.l.b16 %v893
    %v2400 = vunpack.c.h.b16 %v893
    %v2401 = vunpack.c.l.b16 %v894
    %v2402 = vunpack.c.h.b16 %v894
    %v2403 = vunpack.c.l.b16 %v895
    %v2404 = vunpack.c.h.b16 %v895
    %v2405 = vunpack.c.l.b16 %v896
    %v2406 = vunpack.c.h.b16 %v896
    %v2407 = vunpack.c.l.b16 %v897
    %v2408 = vunpack.c.h.b16 %v897
    %v2409 = vunpack.c.l.b16 %v898
    %v2410 = vunpack.c.h.b16 %v898
    %v2411 = vunpack.c.l.b16 %v899
    %v2412 = vunpack.c.h.b16 %v899
    %v2413 = vunpack.c.l.b16 %v900
    %v2414 = vunpack.c.h.b16 %v900
    %v2415 = vunpack.c.l.b16 %v901
    %v2416 = vunpack.c.h.b16 %v901
    %v2417 = vunpack.c.l.b16 %v902
    %v2418 = vunpack.c.h.b16 %v902
    %v2419 = vunpack.c.l.b16 %v903
    %v2420 = vunpack.c.h.b16 %v903
    %v2421 = vunpack.c.l.b16 %v904
    %v2422 = vunpack.c.h.b16 %v904
    %v2423 = vunpack.c.l.b16 %v905
    %v2424 = vunpack.c.h.b16 %v905
    %v2425 = vunpack.c.l.b16 %v906
    %v2426 = vunpack.c.h.b16 %v906
    %v2427 = vunpack.c.l.b16 %v907
    %v2428 = vunpack.c.h.b16 %v907
    %v2429 = vunpack.c.l.b16 %v908
    %v2430 = vunpack.c.h.b16 %v908
    %v2431 = vunpack.c.l.b16 %v909
    %v2432 = vunpack.c.h.b16 %v909
    %v2433 = vunpack.c.l.b16 %v910
    %v2434 = vunpack.c.h.b16 %v910
    %v2435 = vunpack.c.l.b16 %v911
    %v2436 = vunpack.c.h.b16 %v911
    %v2437 = vunpack.c.l.b16 %v912
    %v2438 = vunpack.c.h.b16 %v912
    %v2439 = vunpack.c.l.b16 %v913
    %v2440 = vunpack.c.h.b16 %v913
    %v2441 = vunpack.c.l.b16 %v914
    %v2442 = vunpack.c.h.b16 %v914
    %v2443 = vunpack.c.l.b16 %v915
    %v2444 = vunpack.c.h.b16 %v915
    %v2445 = vunpack.c.l.b16 %v916
    %v2446 = vunpack.c.h.b16 %v916
    %v2447 = vunpack.c.l.b16 %v917
    %v2448 = vunpack.c.h.b16 %v917
    %v2449 = vunpack.c.l.b16 %v918
    %v2450 = vunpack.c.h.b16 %v918
    %v2451 = vunpack.c.l.b16 %v919
    %v2452 = vunpack.c.h.b16 %v919
    %v2453 = vunpack.c.l.b16 %v920
    %v2454 = vunpack.c.h.b16 %v920
    %v2455 = vunpack.c.l.b16 %v921
    %v2456 = vunpack.c.h.b16 %v921
    %v2457 = vunpack.c.l.b16 %v922
    %v2458 = vunpack.c.h.b16 %v922
    %v2459 = vunpack.c.l.b16 %v923
    %v2460 = vunpack.c.h.b16 %v923
    %v2461 = vunpack.c.l.b16 %v924
    %v2462 = vunpack.c.h.b16 %v924
    %v2463 = vunpack.c.l.b16 %v925
    %v2464 = vunpack.c.h.b16 %v925
    %v2465 = vunpack.c.l.b16 %v926
    %v2466 = vunpack.c.h.b16 %v926
    %v2467 = vunpack.c.l.b16 %v927
    %v2468 = vunpack.c.h.b16 %v927
    %v2469 = vunpack.c.l.b16 %v928
    %v2470 = vunpack.c.h.b16 %v928
    %v2471 = vunpack.c.l.b16 %v929
    %v2472 = vunpack.c.h.b16 %v929
    %v2473 = vunpack.c.l.b16 %v930
    %v2474 = vunpack.c.h.b16 %v930
    %v2475 = vunpack.c.l.b16 %v931
    %v2476 = vunpack.c.h.b16 %v931
    %v2477 = vunpack.c.l.b16 %v932
    %v2478 = vunpack.c.h.b16 %v932
    %v2479 = vunpack.c.l.b16 %v933
    %v2480 = vunpack.c.h.b16 %v933
    %v2481 = vunpack.c.l.b16 %v934
    %v2482 = vunpack.c.h.b16 %v934
    %v2483 = vunpack.c.l.b16 %v935
    %v2484 = vunpack.c.h.b16 %v935
    %v2485 = vunpack.c.l.b16 %v936
    %v2486 = vunpack.c.h.b16 %v936
    %v2487 = vunpack.c.l.b16 %v937
    %v2488 = vunpack.c.h.b16 %v937
    %v2489 = vunpack.c.l.b16 %v938
    %v2490 = vunpack.c.h.b16 %v938
    %v2491 = vunpack.c.l.b16 %v939
    %v2492 = vunpack.c.h.b16 %v939
    %v2493 = vunpack.c.l.b16 %v940
    %v2494 = vunpack.c.h.b16 %v940
    %v2495 = vunpack.c.l.b16 %v941
    %v2496 = vunpack.c.h.b16 %v941
    %v2497 = vunpack.c.l.b16 %v942
    %v2498 = vunpack.c.h.b16 %v942
    %v2499 = vunpack.c.l.b16 %v943
    %v2500 = vunpack.c.h.b16 %v943
    %v2501 = vunpack.c.l.b16 %v944
    %v2502 = vunpack.c.h.b16 %v944
    %v2503 = vunpack.c.l.b16 %v945
    %v2504 = vunpack.c.h.b16 %v945
    %v2505 = vunpack.c.l.b16 %v946
    %v2506 = vunpack.c.h.b16 %v946
    %v2507 = vunpack.c.l.b16 %v947
    %v2508 = vunpack.c.h.b16 %v947
    %v2509 = vunpack.c.l.b16 %v948
    %v2510 = vunpack.c.h.b16 %v948
    %v2511 = vunpack.c.l.b16 %v949
    %v2512 = vunpack.c.h.b16 %v949
    %v2513 = vunpack.c.l.b16 %v950
    %v2514 = vunpack.c.h.b16 %v950
    %v2515 = vunpack.c.l.b16 %v951
    %v2516 = vunpack.c.h.b16 %v951
    %v2517 = vunpack.c.l.b16 %v952
    %v2518 = vunpack.c.h.b16 %v952
    %v2519 = vunpack.c.l.b16 %v953
    %v2520 = vunpack.c.h.b16 %v953
    %v2521 = vunpack.c.l.b16 %v954
    %v2522 = vunpack.c.h.b16 %v954
    %v2523 = vunpack.c.l.b16 %v955
    %v2524 = vunpack.c.h.b16 %v955
    %v2525 = vunpack.c.l.b16 %v956
    %v2526 = vunpack.c.h.b16 %v956
    %v2527 = vunpack.c.l.b16 %v957
    %v2528 = vunpack.c.h.b16 %v957
    %v2529 = vunpack.c.l.b16 %v958
    %v2530 = vunpack.c.h.b16 %v958
    %v2531 = vunpack.c.l.b16 %v959
    %v2532 = vunpack.c.h.b16 %v959
    %v2533 = vunpack.c.l.b16 %v960
    %v2534 = vunpack.c.h.b16 %v960
    %v2535 = vunpack.c.l.b16 %v961
    %v2536 = vunpack.c.h.b16 %v961
    %v2537 = vunpack.c.l.b16 %v962
    %v2538 = vunpack.c.h.b16 %v962
    %v2539 = vunpack.c.l.b16 %v963
    %v2540 = vunpack.c.h.b16 %v963
    %v2541 = vunpack.c.l.b16 %v964
    %v2542 = vunpack.c.h.b16 %v964
    %v2543 = vunpack.c.l.b16 %v965
    %v2544 = vunpack.c.h.b16 %v965
    %v2545 = vunpack.c.l.b16 %v966
    %v2546 = vunpack.c.h.b16 %v966
    %v2547 = vunpack.c.l.b16 %v967
    %v2548 = vunpack.c.h.b16 %v967
    %v2549 = vunpack.c.l.b16 %v968
    %v2550 = vunpack.c.h.b16 %v968
    %v2551 = vunpack.c.l.b16 %v969
    %v2552 = vunpack.c.h.b16 %v969
    %v2553 = vunpack.c.l.b16 %v970
    %v2554 = vunpack.c.h.b16 %v970
    %v2555 = vunpack.c.l.b16 %v971
    %v2556 = vunpack.c.h.b16 %v971
    %v2557 = vunpack.c.l.b16 %v972
    %v2558 = vunpack.c.h.b16 %v972
    %v2559 = vunpack.c.l.b16 %v973
    %v2560 = vunpack.c.h.b16 %v973
    %v2561 = vunpack.c.l.b16 %v974
    %v2562 = vunpack.c.h.b16 %v974
    %v2563 = vunpack.c.l.b16 %v975
    %v2564 = vunpack.c.h.b16 %v975
    %v2565 = vunpack.c.l.b16 %v976
    %v2566 = vunpack.c.h.b16 %v976
    %v2567 = vunpack.c.l.b16 %v977
    %v2568 = vunpack.c.h.b16 %v977
    %v2569 = vunpack.c.l.b16 %v978
    %v2570 = vunpack.c.h.b16 %v978
    %v2571 = vunpack.c.l.b16 %v979
    %v2572 = vunpack.c.h.b16 %v979
    %v2573 = vunpack.c.l.b16 %v980
    %v2574 = vunpack.c.h.b16 %v980
    %v2575 = vunpack.c.l.b16 %v981
    %v2576 = vunpack.c.h.b16 %v981
    %v2577 = vunpack.c.l.b16 %v982
    %v2578 = vunpack.c.h.b16 %v982
    %v2579 = vunpack.c.l.b16 %v983
    %v2580 = vunpack.c.h.b16 %v983
    %v2581 = vunpack.c.l.b16 %v984
    %v2582 = vunpack.c.h.b16 %v984
    %v2583 = vunpack.c.l.b16 %v985
    %v2584 = vunpack.c.h.b16 %v985
    %v2585 = vunpack.c.l.b16 %v986
    %v2586 = vunpack.c.h.b16 %v986
    %v2587 = vunpack.c.l.b16 %v987
    %v2588 = vunpack.c.h.b16 %v987
    %v2589 = vunpack.c.l.b16 %v988
    %v2590 = vunpack.c.h.b16 %v988
    %v2591 = vunpack.c.l.b16 %v989
    %v2592 = vunpack.c.h.b16 %v989
    %v2593 = vunpack.c.l.b16 %v990
    %v2594 = vunpack.c.h.b16 %v990
    %v2595 = vunpack.c.l.b16 %v991
    %v2596 = vunpack.c.h.b16 %v991
    %v2597 = vunpack.c.l.b16 %v992
    %v2598 = vunpack.c.h.b16 %v992
    %v2599 = vunpack.c.l.b16 %v993
    %v2600 = vunpack.c.h.b16 %v993
    %v2601 = vunpack.c.l.b16 %v994
    %v2602 = vunpack.c.h.b16 %v994
    %v2603 = vunpack.c.l.b16 %v995
    %v2604 = vunpack.c.h.b16 %v995
    %v2605 = vunpack.c.l.b16 %v996
    %v2606 = vunpack.c.h.b16 %v996
    %v2607 = vunpack.c.l.b16 %v997
    %v2608 = vunpack.c.h.b16 %v997
    %v2609 = vunpack.c.l.b16 %v998
    %v2610 = vunpack.c.h.b16 %v998
    %v2611 = vunpack.c.l.b16 %v999
    %v2612 = vunpack.c.h.b16 %v999
    %v2613 = vunpack.c.l.b16 %v1000
    %v2614 = vunpack.c.h.b16 %v1000
    %v2615 = vunpack.c.l.b16 %v1001
    %v2616 = vunpack.c.h.b16 %v1001
    %v2617 = vunpack.c.l.b16 %v1002
    %v2618 = vunpack.c.h.b16 %v1002
    %v2619 = vunpack.c.l.b16 %v1003
    %v2620 = vunpack.c.h.b16 %v1003
    %v2621 = vunpack.c.l.b16 %v1004
    %v2622 = vunpack.c.h.b16 %v1004
    %v2623 = vunpack.c.l.b16 %v1005
    %v2624 = vunpack.c.h.b16 %v1005
    %v2625 = vunpack.c.l.b16 %v1006
    %v2626 = vunpack.c.h.b16 %v1006
    %v2627 = vpack.c.b16 %v1619, %v1603
    %v2628 = vpack.c.b16 %v1620, %v1604
    %v2629 = vpack.c.b16 %v1621, %v1605
    %v2630 = vpack.c.b16 %v1622, %v1606
    %v2631 = vpack.c.b16 %v1623, %v1607
    %v2632 = vpack.c.b16 %v1624, %v1608
    %v2633 = vpack.c.b16 %v1625, %v1609
    %v2634 = vpack.c.b16 %v1626, %v1610
    %v2635 = vpack.c.b16 %v1627, %v1611
    %v2636 = vpack.c.b16 %v1628, %v1612
    %v2637 = vpack.c.b16 %v1629, %v1613
    %v2638 = vpack.c.b16 %v1630, %v1614
    %v2639 = vpack.c.b16 %v1631, %v1615
    %v2640 = vpack.c.b16 %v1632, %v1616
    %v2641 = vpack.c.b16 %v1633, %v1617
    %v2642 = vpack.c.b16 %v1634, %v1618
    %v2643 = vpack.c.b16 %v1651, %v1635
    %v2644 = vpack.c.b16 %v1652, %v1636
    %v2645 = vpack.c.b16 %v1653, %v1637
    %v2646 = vpack.c.b16 %v1654, %v1638
    %v2647 = vpack.c.b16 %v1655, %v1639
    %v2648 = vpack.c.b16 %v1656, %v1640
    %v2649 = vpack.c.b16 %v1657, %v1641
    %v2650 = vpack.c.b16 %v1658, %v1642
    %v2651 = vpack.c.b16 %v1659, %v1643
    %v2652 = vpack.c.b16 %v1660, %v1644
    %v2653 = vpack.c.b16 %v1661, %v1645
    %v2654 = vpack.c.b16 %v1662, %v1646
    %v2655 = vpack.c.b16 %v1663, %v1647
    %v2656 = vpack.c.b16 %v1664, %v1648
    %v2657 = vpack.c.b16 %v1665, %v1649
    %v2658 = vpack.c.b16 %v1666, %v1650
    %v2659 = vpack.c.b16 %v1683, %v1667
    %v2660 = vpack.c.b16 %v1684, %v1668
    %v2661 = vpack.c.b16 %v1685, %v1669
    %v2662 = vpack.c.b16 %v1686, %v1670
    %v2663 = vpack.c.b16 %v1687, %v1671
    %v2664 = vpack.c.b16 %v1688, %v1672
    %v2665 = vpack.c.b16 %v1689, %v1673
    %v2666 = vpack.c.b16 %v1690, %v1674
    %v2667 = vpack.c.b16 %v1691, %v1675
    %v2668 = vpack.c.b16 %v1692, %v1676
    %v2669 = vpack.c.b16 %v1693, %v1677
    %v2670 = vpack.c.b16 %v1694, %v1678
    %v2671 = vpack.c.b16 %v1695, %v1679
    %v2672 = vpack.c.b16 %v1696, %v1680
    %v2673 = vpack.c.b16 %v1697, %v1681
    %v2674 = vpack.c.b16 %v1698, %v1682
    %v2675 = vpack.c.b16 %v1715, %v1699
    %v2676 = vpack.c.b16 %v1716, %v1700
    %v2677 = vpack.c.b16 %v1717, %v1701
    %v2678 = vpack.c.b16 %v1718, %v1702
    %v2679 = vpack.c.b16 %v1719, %v1703
    %v2680 = vpack.c.b16 %v1720, %v1704
    %v2681 = vpack.c.b16 %v1721, %v1705
    %v2682 = vpack.c.b16 %v1722, %v1706
    %v2683 = vpack.c.b16 %v1723, %v1707
    %v2684 = vpack.c.b16 %v1724, %v1708
    %v2685 = vpack.c.b16 %v1725, %v1709
    %v2686 = vpack.c.b16 %v1726, %v1710
    %v2687 = vpack.c.b16 %v1727, %v1711
    %v2688 = vpack.c.b16 %v1728, %v1712
    %v2689 = vpack.c.b16 %v1729, %v1713
    %v2690 = vpack.c.b16 %v1730, %v1714
    %v2691 = vpack.c.b16 %v1747, %v1731
    %v2692 = vpack.c.b16 %v1748, %v1732
    %v2693 = vpack.c.b16 %v1749, %v1733
    %v2694 = vpack.c.b16 %v1750, %v1734
    %v2695 = vpack.c.b16 %v1751, %v1735
    %v2696 = vpack.c.b16 %v1752, %v1736
    %v2697 = vpack.c.b16 %v1753, %v1737
    %v2698 = vpack.c.b16 %v1754, %v1738
    %v2699 = vpack.c.b16 %v1755, %v1739
    %v2700 = vpack.c.b16 %v1756, %v1740
    %v2701 = vpack.c.b16 %v1757, %v1741
    %v2702 = vpack.c.b16 %v1758, %v1742
    %v2703 = vpack.c.b16 %v1759, %v1743
    %v2704 = vpack.c.b16 %v1760, %v1744
    %v2705 = vpack.c.b16 %v1761, %v1745
    %v2706 = vpack.c.b16 %v1762, %v1746
    %v2707 = vpack.c.b16 %v1779, %v1763
    %v2708 = vpack.c.b16 %v1780, %v1764
    %v2709 = vpack.c.b16 %v1781, %v1765
    %v2710 = vpack.c.b16 %v1782, %v1766
    %v2711 = vpack.c.b16 %v1783, %v1767
    %v2712 = vpack.c.b16 %v1784, %v1768
    %v2713 = vpack.c.b16 %v1785, %v1769
    %v2714 = vpack.c.b16 %v1786, %v1770
    %v2715 = vpack.c.b16 %v1787, %v1771
    %v2716 = vpack.c.b16 %v1788, %v1772
    %v2717 = vpack.c.b16 %v1789, %v1773
    %v2718 = vpack.c.b16 %v1790, %v1774
    %v2719 = vpack.c.b16 %v1791, %v1775
    %v2720 = vpack.c.b16 %v1792, %v1776
    %v2721 = vpack.c.b16 %v1793, %v1777
    %v2722 = vpack.c.b16 %v1794, %v1778
    %v2723 = vpack.c.b16 %v1811, %v1795
    %v2724 = vpack.c.b16 %v1812, %v1796
    %v2725 = vpack.c.b16 %v1813, %v1797
    %v2726 = vpack.c.b16 %v1814, %v1798
    %v2727 = vpack.c.b16 %v1815, %v1799
    %v2728 = vpack.c.b16 %v1816, %v1800
    %v2729 = vpack.c.b16 %v1817, %v1801
    %v2730 = vpack.c.b16 %v1818, %v1802
    %v2731 = vpack.c.b16 %v1819, %v1803
    %v2732 = vpack.c.b16 %v1820, %v1804
    %v2733 = vpack.c.b16 %v1821, %v1805
    %v2734 = vpack.c.b16 %v1822, %v1806
    %v2735 = vpack.c.b16 %v1823, %v1807
    %v2736 = vpack.c.b16 %v1824, %v1808
    %v2737 = vpack.c.b16 %v1825, %v1809
    %v2738 = vpack.c.b16 %v1826, %v1810
    %v2739 = vpack.c.b16 %v1843, %v1827
    %v2740 = vpack.c.b16 %v1844, %v1828
    %v2741 = vpack.c.b16 %v1845, %v1829
    %v2742 = vpack.c.b16 %v1846, %v1830
    %v2743 = vpack.c.b16 %v1847, %v1831
    %v2744 = vpack.c.b16 %v1848, %v1832
    %v2745 = vpack.c.b16 %v1849, %v1833
    %v2746 = vpack.c.b16 %v1850, %v1834
    %v2747 = vpack.c.b16 %v1851, %v1835
    %v2748 = vpack.c.b16 %v1852, %v1836
    %v2749 = vpack.c.b16 %v1853, %v1837
    %v2750 = vpack.c.b16 %v1854, %v1838
    %v2751 = vpack.c.b16 %v1855, %v1839
    %v2752 = vpack.c.b16 %v1856, %v1840
    %v2753 = vpack.c.b16 %v1857, %v1841
    %v2754 = vpack.c.b16 %v1858, %v1842
    %v2755 = vpack.c.b16 %v1875, %v1859
    %v2756 = vpack.c.b16 %v1876, %v1860
    %v2757 = vpack.c.b16 %v1877, %v1861
    %v2758 = vpack.c.b16 %v1878, %v1862
    %v2759 = vpack.c.b16 %v1879, %v1863
    %v2760 = vpack.c.b16 %v1880, %v1864
    %v2761 = vpack.c.b16 %v1881, %v1865
    %v2762 = vpack.c.b16 %v1882, %v1866
    %v2763 = vpack.c.b16 %v1883, %v1867
    %v2764 = vpack.c.b16 %v1884, %v1868
    %v2765 = vpack.c.b16 %v1885, %v1869
    %v2766 = vpack.c.b16 %v1886, %v1870
    %v2767 = vpack.c.b16 %v1887, %v1871
    %v2768 = vpack.c.b16 %v1888, %v1872
    %v2769 = vpack.c.b16 %v1889, %v1873
    %v2770 = vpack.c.b16 %v1890, %v1874
    %v2771 = vpack.c.b16 %v1907, %v1891
    %v2772 = vpack.c.b16 %v1908, %v1892
    %v2773 = vpack.c.b16 %v1909, %v1893
    %v2774 = vpack.c.b16 %v1910, %v1894
    %v2775 = vpack.c.b16 %v1911, %v1895
    %v2776 = vpack.c.b16 %v1912, %v1896
    %v2777 = vpack.c.b16 %v1913, %v1897
    %v2778 = vpack.c.b16 %v1914, %v1898
    %v2779 = vpack.c.b16 %v1915, %v1899
    %v2780 = vpack.c.b16 %v1916, %v1900
    %v2781 = vpack.c.b16 %v1917, %v1901
    %v2782 = vpack.c.b16 %v1918, %v1902
    %v2783 = vpack.c.b16 %v1919, %v1903
    %v2784 = vpack.c.b16 %v1920, %v1904
    %v2785 = vpack.c.b16 %v1921, %v1905
    %v2786 = vpack.c.b16 %v1922, %v1906
    %v2787 = vpack.c.b16 %v1939, %v1923
    %v2788 = vpack.c.b16 %v1940, %v1924
    %v2789 = vpack.c.b16 %v1941, %v1925
    %v2790 = vpack.c.b16 %v1942, %v1926
    %v2791 = vpack.c.b16 %v1943, %v1927
    %v2792 = vpack.c.b16 %v1944, %v1928
    %v2793 = vpack.c.b16 %v1945, %v1929
    %v2794 = vpack.c.b16 %v1946, %v1930
    %v2795 = vpack.c.b16 %v1947, %v1931
    %v2796 = vpack.c.b16 %v1948, %v1932
    %v2797 = vpack.c.b16 %v1949, %v1933
    %v2798 = vpack.c.b16 %v1950, %v1934
    %v2799 = vpack.c.b16 %v1951, %v1935
    %v2800 = vpack.c.b16 %v1952, %v1936
    %v2801 = vpack.c.b16 %v1953, %v1937
    %v2802 = vpack.c.b16 %v1954, %v1938
    %v2803 = vpack.c.b16 %v1971, %v1955
    %v2804 = vpack.c.b16 %v1972, %v1956
    %v2805 = vpack.c.b16 %v1973, %v1957
    %v2806 = vpack.c.b16 %v1974, %v1958
    %v2807 = vpack.c.b16 %v1975, %v1959
    %v2808 = vpack.c.b16 %v1976, %v1960
    %v2809 = vpack.c.b16 %v1977, %v1961
    %v2810 = vpack.c.b16 %v1978, %v1962
    %v2811 = vpack.c.b16 %v1979, %v1963
    %v2812 = vpack.c.b16 %v1980, %v1964
    %v2813 = vpack.c.b16 %v1981, %v1965
    %v2814 = vpack.c.b16 %v1982, %v1966
    %v2815 = vpack.c.b16 %v1983, %v1967
    %v2816 = vpack.c.b16 %v1984, %v1968
    %v2817 = vpack.c.b16 %v1985, %v1969
    %v2818 = vpack.c.b16 %v1986, %v1970
    %v2819 = vpack.c.b16 %v2003, %v1987
    %v2820 = vpack.c.b16 %v2004, %v1988
    %v2821 = vpack.c.b16 %v2005, %v1989
    %v2822 = vpack.c.b16 %v2006, %v1990
    %v2823 = vpack.c.b16 %v2007, %v1991
    %v2824 = vpack.c.b16 %v2008, %v1992
    %v2825 = vpack.c.b16 %v2009, %v1993
    %v2826 = vpack.c.b16 %v2010, %v1994
    %v2827 = vpack.c.b16 %v2011, %v1995
    %v2828 = vpack.c.b16 %v2012, %v1996
    %v2829 = vpack.c.b16 %v2013, %v1997
    %v2830 = vpack.c.b16 %v2014, %v1998
    %v2831 = vpack.c.b16 %v2015, %v1999
    %v2832 = vpack.c.b16 %v2016, %v2000
    %v2833 = vpack.c.b16 %v2017, %v2001
    %v2834 = vpack.c.b16 %v2018, %v2002
    %v2835 = vpack.c.b16 %v2035, %v2019
    %v2836 = vpack.c.b16 %v2036, %v2020
    %v2837 = vpack.c.b16 %v2037, %v2021
    %v2838 = vpack.c.b16 %v2038, %v2022
    %v2839 = vpack.c.b16 %v2039, %v2023
    %v2840 = vpack.c.b16 %v2040, %v2024
    %v2841 = vpack.c.b16 %v2041, %v2025
    %v2842 = vpack.c.b16 %v2042, %v2026
    %v2843 = vpack.c.b16 %v2043, %v2027
    %v2844 = vpack.c.b16 %v2044, %v2028
    %v2845 = vpack.c.b16 %v2045, %v2029
    %v2846 = vpack.c.b16 %v2046, %v2030
    %v2847 = vpack.c.b16 %v2047, %v2031
    %v2848 = vpack.c.b16 %v2048, %v2032
    %v2849 = vpack.c.b16 %v2049, %v2033
    %v2850 = vpack.c.b16 %v2050, %v2034
    %v2851 = vpack.c.b16 %v2067, %v2051
    %v2852 = vpack.c.b16 %v2068, %v2052
    %v2853 = vpack.c.b16 %v2069, %v2053
    %v2854 = vpack.c.b16 %v2070, %v2054
    %v2855 = vpack.c.b16 %v2071, %v2055
    %v2856 = vpack.c.b16 %v2072, %v2056
    %v2857 = vpack.c.b16 %v2073, %v2057
    %v2858 = vpack.c.b16 %v2074, %v2058
    %v2859 = vpack.c.b16 %v2075, %v2059
    %v2860 = vpack.c.b16 %v2076, %v2060
    %v2861 = vpack.c.b16 %v2077, %v2061
    %v2862 = vpack.c.b16 %v2078, %v2062
    %v2863 = vpack.c.b16 %v2079, %v2063
    %v2864 = vpack.c.b16 %v2080, %v2064
    %v2865 = vpack.c.b16 %v2081, %v2065
    %v2866 = vpack.c.b16 %v2082, %v2066
    %v2867 = vpack.c.b16 %v2099, %v2083
    %v2868 = vpack.c.b16 %v2100, %v2084
    %v2869 = vpack.c.b16 %v2101, %v2085
    %v2870 = vpack.c.b16 %v2102, %v2086
    %v2871 = vpack.c.b16 %v2103, %v2087
    %v2872 = vpack.c.b16 %v2104, %v2088
    %v2873 = vpack.c.b16 %v2105, %v2089
    %v2874 = vpack.c.b16 %v2106, %v2090
    %v2875 = vpack.c.b16 %v2107, %v2091
    %v2876 = vpack.c.b16 %v2108, %v2092
    %v2877 = vpack.c.b16 %v2109, %v2093
    %v2878 = vpack.c.b16 %v2110, %v2094
    %v2879 = vpack.c.b16 %v2111, %v2095
    %v2880 = vpack.c.b16 %v2112, %v2096
    %v2881 = vpack.c.b16 %v2113, %v2097
    %v2882 = vpack.c.b16 %v2114, %v2098
    %v2883 = vpack.c.b16 %v2131, %v2115
    %v2884 = vpack.c.b16 %v2132, %v2116
    %v2885 = vpack.c.b16 %v2133, %v2117
    %v2886 = vpack.c.b16 %v2134, %v2118
    %v2887 = vpack.c.b16 %v2135, %v2119
    %v2888 = vpack.c.b16 %v2136, %v2120
    %v2889 = vpack.c.b16 %v2137, %v2121
    %v2890 = vpack.c.b16 %v2138, %v2122
    %v2891 = vpack.c.b16 %v2139, %v2123
    %v2892 = vpack.c.b16 %v2140, %v2124
    %v2893 = vpack.c.b16 %v2141, %v2125
    %v2894 = vpack.c.b16 %v2142, %v2126
    %v2895 = vpack.c.b16 %v2143, %v2127
    %v2896 = vpack.c.b16 %v2144, %v2128
    %v2897 = vpack.c.b16 %v2145, %v2129
    %v2898 = vpack.c.b16 %v2146, %v2130
    %v2899 = vpack.c.b16 %v2163, %v2147
    %v2900 = vpack.c.b16 %v2164, %v2148
    %v2901 = vpack.c.b16 %v2165, %v2149
    %v2902 = vpack.c.b16 %v2166, %v2150
    %v2903 = vpack.c.b16 %v2167, %v2151
    %v2904 = vpack.c.b16 %v2168, %v2152
    %v2905 = vpack.c.b16 %v2169, %v2153
    %v2906 = vpack.c.b16 %v2170, %v2154
    %v2907 = vpack.c.b16 %v2171, %v2155
    %v2908 = vpack.c.b16 %v2172, %v2156
    %v2909 = vpack.c.b16 %v2173, %v2157
    %v2910 = vpack.c.b16 %v2174, %v2158
    %v2911 = vpack.c.b16 %v2175, %v2159
    %v2912 = vpack.c.b16 %v2176, %v2160
    %v2913 = vpack.c.b16 %v2177, %v2161
    %v2914 = vpack.c.b16 %v2178, %v2162
    %v2915 = vpack.c.b16 %v2195, %v2179
    %v2916 = vpack.c.b16 %v2196, %v2180
    %v2917 = vpack.c.b16 %v2197, %v2181
    %v2918 = vpack.c.b16 %v2198, %v2182
    %v2919 = vpack.c.b16 %v2199, %v2183
    %v2920 = vpack.c.b16 %v2200, %v2184
    %v2921 = vpack.c.b16 %v2201, %v2185
    %v2922 = vpack.c.b16 %v2202, %v2186
    %v2923 = vpack.c.b16 %v2203, %v2187
    %v2924 = vpack.c.b16 %v2204, %v2188
    %v2925 = vpack.c.b16 %v2205, %v2189
    %v2926 = vpack.c.b16 %v2206, %v2190
    %v2927 = vpack.c.b16 %v2207, %v2191
    %v2928 = vpack.c.b16 %v2208, %v2192
    %v2929 = vpack.c.b16 %v2209, %v2193
    %v2930 = vpack.c.b16 %v2210, %v2194
    %v2931 = vpack.c.b16 %v2227, %v2211
    %v2932 = vpack.c.b16 %v2228, %v2212
    %v2933 = vpack.c.b16 %v2229, %v2213
    %v2934 = vpack.c.b16 %v2230, %v2214
    %v2935 = vpack.c.b16 %v2231, %v2215
    %v2936 = vpack.c.b16 %v2232, %v2216
    %v2937 = vpack.c.b16 %v2233, %v2217
    %v2938 = vpack.c.b16 %v2234, %v2218
    %v2939 = vpack.c.b16 %v2235, %v2219
    %v2940 = vpack.c.b16 %v2236, %v2220
    %v2941 = vpack.c.b16 %v2237, %v2221
    %v2942 = vpack.c.b16 %v2238, %v2222
    %v2943 = vpack.c.b16 %v2239, %v2223
    %v2944 = vpack.c.b16 %v2240, %v2224
    %v2945 = vpack.c.b16 %v2241, %v2225
    %v2946 = vpack.c.b16 %v2242, %v2226
    %v2947 = vpack.c.b16 %v2259, %v2243
    %v2948 = vpack.c.b16 %v2260, %v2244
    %v2949 = vpack.c.b16 %v2261, %v2245
    %v2950 = vpack.c.b16 %v2262, %v2246
    %v2951 = vpack.c.b16 %v2263, %v2247
    %v2952 = vpack.c.b16 %v2264, %v2248
    %v2953 = vpack.c.b16 %v2265, %v2249
    %v2954 = vpack.c.b16 %v2266, %v2250
    %v2955 = vpack.c.b16 %v2267, %v2251
    %v2956 = vpack.c.b16 %v2268, %v2252
    %v2957 = vpack.c.b16 %v2269, %v2253
    %v2958 = vpack.c.b16 %v2270, %v2254
    %v2959 = vpack.c.b16 %v2271, %v2255
    %v2960 = vpack.c.b16 %v2272, %v2256
    %v2961 = vpack.c.b16 %v2273, %v2257
    %v2962 = vpack.c.b16 %v2274, %v2258
    %v2963 = vpack.c.b16 %v2291, %v2275
    %v2964 = vpack.c.b16 %v2292, %v2276
    %v2965 = vpack.c.b16 %v2293, %v2277
    %v2966 = vpack.c.b16 %v2294, %v2278
    %v2967 = vpack.c.b16 %v2295, %v2279
    %v2968 = vpack.c.b16 %v2296, %v2280
    %v2969 = vpack.c.b16 %v2297, %v2281
    %v2970 = vpack.c.b16 %v2298, %v2282
    %v2971 = vpack.c.b16 %v2299, %v2283
    %v2972 = vpack.c.b16 %v2300, %v2284
    %v2973 = vpack.c.b16 %v2301, %v2285
    %v2974 = vpack.c.b16 %v2302, %v2286
    %v2975 = vpack.c.b16 %v2303, %v2287
    %v2976 = vpack.c.b16 %v2304, %v2288
    %v2977 = vpack.c.b16 %v2305, %v2289
    %v2978 = vpack.c.b16 %v2306, %v2290
    %v2979 = vpack.c.b16 %v2323, %v2307
    %v2980 = vpack.c.b16 %v2324, %v2308
    %v2981 = vpack.c.b16 %v2325, %v2309
    %v2982 = vpack.c.b16 %v2326, %v2310
    %v2983 = vpack.c.b16 %v2327, %v2311
    %v2984 = vpack.c.b16 %v2328, %v2312
    %v2985 = vpack.c.b16 %v2329, %v2313
    %v2986 = vpack.c.b16 %v2330, %v2314
    %v2987 = vpack.c.b16 %v2331, %v2315
    %v2988 = vpack.c.b16 %v2332, %v2316
    %v2989 = vpack.c.b16 %v2333, %v2317
    %v2990 = vpack.c.b16 %v2334, %v2318
    %v2991 = vpack.c.b16 %v2335, %v2319
    %v2992 = vpack.c.b16 %v2336, %v2320
    %v2993 = vpack.c.b16 %v2337, %v2321
    %v2994 = vpack.c.b16 %v2338, %v2322
    %v2995 = vpack.c.b16 %v2355, %v2339
    %v2996 = vpack.c.b16 %v2356, %v2340
    %v2997 = vpack.c.b16 %v2357, %v2341
    %v2998 = vpack.c.b16 %v2358, %v2342
    %v2999 = vpack.c.b16 %v2359, %v2343
    %v3000 = vpack.c.b16 %v2360, %v2344
    %v3001 = vpack.c.b16 %v2361, %v2345
    %v3002 = vpack.c.b16 %v2362, %v2346
    %v3003 = vpack.c.b16 %v2363, %v2347
    %v3004 = vpack.c.b16 %v2364, %v2348
    %v3005 = vpack.c.b16 %v2365, %v2349
    %v3006 = vpack.c.b16 %v2366, %v2350
    %v3007 = vpack.c.b16 %v2367, %v2351
    %v3008 = vpack.c.b16 %v2368, %v2352
    %v3009 = vpack.c.b16 %v2369, %v2353
    %v3010 = vpack.c.b16 %v2370, %v2354
    %v3011 = vpack.c.b16 %v2387, %v2371
    %v3012 = vpack.c.b16 %v2388, %v2372
    %v3013 = vpack.c.b16 %v2389, %v2373
    %v3014 = vpack.c.b16 %v2390, %v2374
    %v3015 = vpack.c.b16 %v2391, %v2375
    %v3016 = vpack.c.b16 %v2392, %v2376
    %v3017 = vpack.c.b16 %v2393, %v2377
    %v3018 = vpack.c.b16 %v2394, %v2378
    %v3019 = vpack.c.b16 %v2395, %v2379
    %v3020 = vpack.c.b16 %v2396, %v2380
    %v3021 = vpack.c.b16 %v2397, %v2381
    %v3022 = vpack.c.b16 %v2398, %v2382
    %v3023 = vpack.c.b16 %v2399, %v2383
    %v3024 = vpack.c.b16 %v2400, %v2384
    %v3025 = vpack.c.b16 %v2401, %v2385
    %v3026 = vpack.c.b16 %v2402, %v2386
    %v3027 = vpack.c.b16 %v2419, %v2403
    %v3028 = vpack.c.b16 %v2420, %v2404
    %v3029 = vpack.c.b16 %v2421, %v2405
    %v3030 = vpack.c.b16 %v2422, %v2406
    %v3031 = vpack.c.b16 %v2423, %v2407
    %v3032 = vpack.c.b16 %v2424, %v2408
    %v3033 = vpack.c.b16 %v2425, %v2409
    %v3034 = vpack.c.b16 %v2426, %v2410
    %v3035 = vpack.c.b16 %v2427, %v2411
    %v3036 = vpack.c.b16 %v2428, %v2412
    %v3037 = vpack.c.b16 %v2429, %v2413
    %v3038 = vpack.c.b16 %v2430, %v2414
    %v3039 = vpack.c.b16 %v2431, %v2415
    %v3040 = vpack.c.b16 %v2432, %v2416
    %v3041 = vpack.c.b16 %v2433, %v2417
    %v3042 = vpack.c.b16 %v2434, %v2418
    %v3043 = vpack.c.b16 %v2451, %v2435
    %v3044 = vpack.c.b16 %v2452, %v2436
    %v3045 = vpack.c.b16 %v2453, %v2437
    %v3046 = vpack.c.b16 %v2454, %v2438
    %v3047 = vpack.c.b16 %v2455, %v2439
    %v3048 = vpack.c.b16 %v2456, %v2440
    %v3049 = vpack.c.b16 %v2457, %v2441
    %v3050 = vpack.c.b16 %v2458, %v2442
    %v3051 = vpack.c.b16 %v2459, %v2443
    %v3052 = vpack.c.b16 %v2460, %v2444
    %v3053 = vpack.c.b16 %v2461, %v2445
    %v3054 = vpack.c.b16 %v2462, %v2446
    %v3055 = vpack.c.b16 %v2463, %v2447
    %v3056 = vpack.c.b16 %v2464, %v2448
    %v3057 = vpack.c.b16 %v2465, %v2449
    %v3058 = vpack.c.b16 %v2466, %v2450
    %v3059 = vpack.c.b16 %v2483, %v2467
    %v3060 = vpack.c.b16 %v2484, %v2468
    %v3061 = vpack.c.b16 %v2485, %v2469
    %v3062 = vpack.c.b16 %v2486, %v2470
    %v3063 = vpack.c.b16 %v2487, %v2471
    %v3064 = vpack.c.b16 %v2488, %v2472
    %v3065 = vpack.c.b16 %v2489, %v2473
    %v3066 = vpack.c.b16 %v2490, %v2474
    %v3067 = vpack.c.b16 %v2491, %v2475
    %v3068 = vpack.c.b16 %v2492, %v2476
    %v3069 = vpack.c.b16 %v2493, %v2477
    %v3070 = vpack.c.b16 %v2494, %v2478
    %v3071 = vpack.c.b16 %v2495, %v2479
    %v3072 = vpack.c.b16 %v2496, %v2480
    %v3073 = vpack.c.b16 %v2497, %v2481
    %v3074 = vpack.c.b16 %v2498, %v2482
    %v3075 = vpack.c.b16 %v2515, %v2499
    %v3076 = vpack.c.b16 %v2516, %v2500
    %v3077 = vpack.c.b16 %v2517, %v2501
    %v3078 = vpack.c.b16 %v2518, %v2502
    %v3079 = vpack.c.b16 %v2519, %v2503
    %v3080 = vpack.c.b16 %v2520, %v2504
    %v3081 = vpack.c.b16 %v2521, %v2505
    %v3082 = vpack.c.b16 %v2522, %v2506
    %v3083 = vpack.c.b16 %v2523, %v2507
    %v3084 = vpack.c.b16 %v2524, %v2508
    %v3085 = vpack.c.b16 %v2525, %v2509
    %v3086 = vpack.c.b16 %v2526, %v2510
    %v3087 = vpack.c.b16 %v2527, %v2511
    %v3088 = vpack.c.b16 %v2528, %v2512
    %v3089 = vpack.c.b16 %v2529, %v2513
    %v3090 = vpack.c.b16 %v2530, %v2514
    %v3091 = vpack.c.b16 %v2547, %v2531
    %v3092 = vpack.c.b16 %v2548, %v2532
    %v3093 = vpack.c.b16 %v2549, %v2533
    %v3094 = vpack.c.b16 %v2550, %v2534
    %v3095 = vpack.c.b16 %v2551, %v2535
    %v3096 = vpack.c.b16 %v2552, %v2536
    %v3097 = vpack.c.b16 %v2553, %v2537
    %v3098 = vpack.c.b16 %v2554, %v2538
    %v3099 = vpack.c.b16 %v2555, %v2539
    %v3100 = vpack.c.b16 %v2556, %v2540
    %v3101 = vpack.c.b16 %v2557, %v2541
    %v3102 = vpack.c.b16 %v2558, %v2542
    %v3103 = vpack.c.b16 %v2559, %v2543
    %v3104 = vpack.c.b16 %v2560, %v2544
    %v3105 = vpack.c.b16 %v2561, %v2545
    %v3106 = vpack.c.b16 %v2562, %v2546
    %v3107 = vpack.c.b16 %v2579, %v2563
    %v3108 = vpack.c.b16 %v2580, %v2564
    %v3109 = vpack.c.b16 %v2581, %v2565
    %v3110 = vpack.c.b16 %v2582, %v2566
    %v3111 = vpack.c.b16 %v2583, %v2567
    %v3112 = vpack.c.b16 %v2584, %v2568
    %v3113 = vpack.c.b16 %v2585, %v2569
    %v3114 = vpack.c.b16 %v2586, %v2570
    %v3115 = vpack.c.b16 %v2587, %v2571
    %v3116 = vpack.c.b16 %v2588, %v2572
    %v3117 = vpack.c.b16 %v2589, %v2573
    %v3118 = vpack.c.b16 %v2590, %v2574
    %v3119 = vpack.c.b16 %v2591, %v2575
    %v3120 = vpack.c.b16 %v2592, %v2576
    %v3121 = vpack.c.b16 %v2593, %v2577
    %v3122 = vpack.c.b16 %v2594, %v2578
    %v3123 = vpack.c.b16 %v2611, %v2595
    %v3124 = vpack.c.b16 %v2612, %v2596
    %v3125 = vpack.c.b16 %v2613, %v2597
    %v3126 = vpack.c.b16 %v2614, %v2598
    %v3127 = vpack.c.b16 %v2615, %v2599
    %v3128 = vpack.c.b16 %v2616, %v2600
    %v3129 = vpack.c.b16 %v2617, %v2601
    %v3130 = vpack.c.b16 %v2618, %v2602
    %v3131 = vpack.c.b16 %v2619, %v2603
    %v3132 = vpack.c.b16 %v2620, %v2604
    %v3133 = vpack.c.b16 %v2621, %v2605
    %v3134 = vpack.c.b16 %v2622, %v2606
    %v3135 = vpack.c.b16 %v2623, %v2607
    %v3136 = vpack.c.b16 %v2624, %v2608
    %v3137 = vpack.c.b16 %v2625, %v2609
    %v3138 = vpack.c.b16 %v2626, %v2610
    %3651 = vmatprep.subr.bf16.mxu0 %v2740
    %3652 = vmatpush1.bf16.msra.mxu0 %v2739
    %3653 = vmatprep.subr.bf16.mxu0 %v2724
    %3654 = vmatpush1.bf16.msra.mxu0 %v2723
    %3655 = vmatprep.subr.bf16.mxu0 %v2708
    %3656 = vmatpush1.bf16.msra.mxu0 %v2707
    %3657 = vmatprep.subr.bf16.mxu0 %v2692
    %3658 = vmatpush1.bf16.msra.mxu0 %v2691
    %3659 = vmatprep.subr.bf16.mxu0 %v2676
    %3660 = vmatpush1.bf16.msra.mxu0 %v2675
    %3661 = vmatprep.subr.bf16.mxu0 %v2660
    %3662 = vmatpush1.bf16.msra.mxu0 %v2659
    %3663 = vmatprep.subr.bf16.mxu0 %v2644
    %3664 = vmatpush1.bf16.msra.mxu0 %v2643
    %3665 = vmatprep.subr.bf16.mxu0 %v2628
    %3666 = vmatpush1.bf16.msra.mxu0 %v2627
    %3667 = vmatprep.subr.bf16.mxu0 %v2868
    %3668 = vmatpush2.bf16.msra.mxu0 %v2867
    %3669 = vmatprep.subr.bf16.mxu0 %v2852
    %3670 = vmatpush2.bf16.msra.mxu0 %v2851
    %3671 = vmatprep.subr.bf16.mxu0 %v2836
    %3672 = vmatpush2.bf16.msra.mxu0 %v2835
    %3673 = vmatprep.subr.bf16.mxu0 %v2820
    %3674 = vmatpush2.bf16.msra.mxu0 %v2819
    %3675 = vmatprep.subr.bf16.mxu0 %v2804
    %3676 = vmatpush2.bf16.msra.mxu0 %v2803
    %3677 = vmatprep.subr.bf16.mxu0 %v2788
    %3678 = vmatpush2.bf16.msra.mxu0 %v2787
    %3679 = vmatprep.subr.bf16.mxu0 %v2772
    %3680 = vmatpush2.bf16.msra.mxu0 %v2771
    %3681 = vmatprep.subr.bf16.mxu0 %v2756
    %3682 = vmatpush2.bf16.msra.mxu0 %v2755
    %3683 = vmatprep.mubr.bf16.mxu0 %v492
    %3684 = vmatmul.mubr.bf16.gmra.mxu0 %v491
    %v3685 = vpop.f32.mrf.mxu0
    %v3686 = vadd.f32 %v1014, %v3685
    %v3687 = vpop.f32.mrf.mxu0
    %v3688 = vadd.f32 %v1018, %v3687
    %v3689 = vpop.f32.mrf.mxu0
    %v3690 = vpop.f32.mrf.mxu0
    %3691 = vdwg.mxu0
    %3692 = vmatprep.subr.bf16.mxu0 %v2996
    %3693 = vmatpush1.bf16.msra.mxu0 %v2995
    %3694 = vmatprep.subr.bf16.mxu0 %v2980
    %3695 = vmatpush1.bf16.msra.mxu0 %v2979
    %3696 = vmatprep.subr.bf16.mxu0 %v2964
    %3697 = vmatpush1.bf16.msra.mxu0 %v2963
    %3698 = vmatprep.subr.bf16.mxu0 %v2948
    %3699 = vmatpush1.bf16.msra.mxu0 %v2947
    %3700 = vmatprep.subr.bf16.mxu0 %v2932
    %3701 = vmatpush1.bf16.msra.mxu0 %v2931
    %3702 = vmatprep.subr.bf16.mxu0 %v2916
    %3703 = vmatpush1.bf16.msra.mxu0 %v2915
    %3704 = vmatprep.subr.bf16.mxu0 %v2900
    %3705 = vmatpush1.bf16.msra.mxu0 %v2899
    %3706 = vmatprep.subr.bf16.mxu0 %v2884
    %3707 = vmatpush1.bf16.msra.mxu0 %v2883
    %3708 = vmatprep.subr.bf16.mxu0 %v3124
    %3709 = vmatpush2.bf16.msra.mxu0 %v3123
    %3710 = vmatprep.subr.bf16.mxu0 %v3108
    %3711 = vmatpush2.bf16.msra.mxu0 %v3107
    %3712 = vmatprep.subr.bf16.mxu0 %v3092
    %3713 = vmatpush2.bf16.msra.mxu0 %v3091
    %3714 = vmatprep.subr.bf16.mxu0 %v3076
    %3715 = vmatpush2.bf16.msra.mxu0 %v3075
    %3716 = vmatprep.subr.bf16.mxu0 %v3060
    %3717 = vmatpush2.bf16.msra.mxu0 %v3059
    %3718 = vmatprep.subr.bf16.mxu0 %v3044
    %3719 = vmatpush2.bf16.msra.mxu0 %v3043
    %3720 = vmatprep.subr.bf16.mxu0 %v3028
    %3721 = vmatpush2.bf16.msra.mxu0 %v3027
    %3722 = vmatprep.subr.bf16.mxu0 %v3012
    %3723 = vmatpush2.bf16.msra.mxu0 %v3011
    %3724 = vmatprep.mubr.bf16.mxu0 %v494
    %3725 = vmatmul.mubr.bf16.gmra.mxu0 %v493
    %v3726 = vpop.f32.mrf.mxu0
    %v3727 = vadd.f32 %v3686, %v3726
    %v3728 = vpop.f32.mrf.mxu0
    %v3729 = vadd.f32 %v3688, %v3728
    %v3730 = vpop.f32.mrf.mxu0
    %v3731 = vpop.f32.mrf.mxu0
    %3732 = vdwg.mxu0
    %3733 = vmatprep.subr.bf16.mxu0 %v2742
    %3734 = vmatpush1.bf16.msra.mxu0 %v2741
    %3735 = vmatprep.subr.bf16.mxu0 %v2726
    %3736 = vmatpush1.bf16.msra.mxu0 %v2725
    %3737 = vmatprep.subr.bf16.mxu0 %v2710
    %3738 = vmatpush1.bf16.msra.mxu0 %v2709
    %3739 = vmatprep.subr.bf16.mxu0 %v2694
    %3740 = vmatpush1.bf16.msra.mxu0 %v2693
    %3741 = vmatprep.subr.bf16.mxu0 %v2678
    %3742 = vmatpush1.bf16.msra.mxu0 %v2677
    %3743 = vmatprep.subr.bf16.mxu0 %v2662
    %3744 = vmatpush1.bf16.msra.mxu0 %v2661
    %3745 = vmatprep.subr.bf16.mxu0 %v2646
    %3746 = vmatpush1.bf16.msra.mxu0 %v2645
    %3747 = vmatprep.subr.bf16.mxu0 %v2630
    %3748 = vmatpush1.bf16.msra.mxu0 %v2629
    %3749 = vmatprep.subr.bf16.mxu0 %v2870
    %3750 = vmatpush2.bf16.msra.mxu0 %v2869
    %3751 = vmatprep.subr.bf16.mxu0 %v2854
    %3752 = vmatpush2.bf16.msra.mxu0 %v2853
    %3753 = vmatprep.subr.bf16.mxu0 %v2838
    %3754 = vmatpush2.bf16.msra.mxu0 %v2837
    %3755 = vmatprep.subr.bf16.mxu0 %v2822
    %3756 = vmatpush2.bf16.msra.mxu0 %v2821
    %3757 = vmatprep.subr.bf16.mxu0 %v2806
    %3758 = vmatpush2.bf16.msra.mxu0 %v2805
    %3759 = vmatprep.subr.bf16.mxu0 %v2790
    %3760 = vmatpush2.bf16.msra.mxu0 %v2789
    %3761 = vmatprep.subr.bf16.mxu0 %v2774
    %3762 = vmatpush2.bf16.msra.mxu0 %v2773
    %3763 = vmatprep.subr.bf16.mxu0 %v2758
    %3764 = vmatpush2.bf16.msra.mxu0 %v2757
    %3765 = vmatprep.mubr.bf16.mxu0 %v492
    %3766 = vmatmul.mubr.bf16.gmra.mxu0 %v491
    %v3767 = vpop.f32.mrf.mxu0
    %v3768 = vadd.f32 %v1022, %v3767
    %v3769 = vpop.f32.mrf.mxu0
    %v3770 = vadd.f32 %v1026, %v3769
    %v3771 = vpop.f32.mrf.mxu0
    %v3772 = vpop.f32.mrf.mxu0
    %3773 = vdwg.mxu0
    %3774 = vmatprep.subr.bf16.mxu0 %v2998
    %3775 = vmatpush1.bf16.msra.mxu0 %v2997
    %3776 = vmatprep.subr.bf16.mxu0 %v2982
    %3777 = vmatpush1.bf16.msra.mxu0 %v2981
    %3778 = vmatprep.subr.bf16.mxu0 %v2966
    %3779 = vmatpush1.bf16.msra.mxu0 %v2965
    %3780 = vmatprep.subr.bf16.mxu0 %v2950
    %3781 = vmatpush1.bf16.msra.mxu0 %v2949
    %3782 = vmatprep.subr.bf16.mxu0 %v2934
    %3783 = vmatpush1.bf16.msra.mxu0 %v2933
    %3784 = vmatprep.subr.bf16.mxu0 %v2918
    %3785 = vmatpush1.bf16.msra.mxu0 %v2917
    %3786 = vmatprep.subr.bf16.mxu0 %v2902
    %3787 = vmatpush1.bf16.msra.mxu0 %v2901
    %3788 = vmatprep.subr.bf16.mxu0 %v2886
    %3789 = vmatpush1.bf16.msra.mxu0 %v2885
    %3790 = vmatprep.subr.bf16.mxu0 %v3126
    %3791 = vmatpush2.bf16.msra.mxu0 %v3125
    %3792 = vmatprep.subr.bf16.mxu0 %v3110
    %3793 = vmatpush2.bf16.msra.mxu0 %v3109
    %3794 = vmatprep.subr.bf16.mxu0 %v3094
    %3795 = vmatpush2.bf16.msra.mxu0 %v3093
    %3796 = vmatprep.subr.bf16.mxu0 %v3078
    %3797 = vmatpush2.bf16.msra.mxu0 %v3077
    %3798 = vmatprep.subr.bf16.mxu0 %v3062
    %3799 = vmatpush2.bf16.msra.mxu0 %v3061
    %3800 = vmatprep.subr.bf16.mxu0 %v3046
    %3801 = vmatpush2.bf16.msra.mxu0 %v3045
    %3802 = vmatprep.subr.bf16.mxu0 %v3030
    %3803 = vmatpush2.bf16.msra.mxu0 %v3029
    %3804 = vmatprep.subr.bf16.mxu0 %v3014
    %3805 = vmatpush2.bf16.msra.mxu0 %v3013
    %3806 = vmatprep.mubr.bf16.mxu0 %v494
    %3807 = vmatmul.mubr.bf16.gmra.mxu0 %v493
    %v3808 = vpop.f32.mrf.mxu0
    %v3809 = vadd.f32 %v3768, %v3808
    %v3810 = vpop.f32.mrf.mxu0
    %v3811 = vadd.f32 %v3770, %v3810
    %v3812 = vpop.f32.mrf.mxu0
    %v3813 = vpop.f32.mrf.mxu0
    %3814 = vdwg.mxu0
    %3815 = vmatprep.subr.bf16.mxu0 %v2744
    %3816 = vmatpush1.bf16.msra.mxu0 %v2743
    %3817 = vmatprep.subr.bf16.mxu0 %v2728
    %3818 = vmatpush1.bf16.msra.mxu0 %v2727
    %3819 = vmatprep.subr.bf16.mxu0 %v2712
    %3820 = vmatpush1.bf16.msra.mxu0 %v2711
    %3821 = vmatprep.subr.bf16.mxu0 %v2696
    %3822 = vmatpush1.bf16.msra.mxu0 %v2695
    %3823 = vmatprep.subr.bf16.mxu0 %v2680
    %3824 = vmatpush1.bf16.msra.mxu0 %v2679
    %3825 = vmatprep.subr.bf16.mxu0 %v2664
    %3826 = vmatpush1.bf16.msra.mxu0 %v2663
    %3827 = vmatprep.subr.bf16.mxu0 %v2648
    %3828 = vmatpush1.bf16.msra.mxu0 %v2647
    %3829 = vmatprep.subr.bf16.mxu0 %v2632
    %3830 = vmatpush1.bf16.msra.mxu0 %v2631
    %3831 = vmatprep.subr.bf16.mxu0 %v2872
    %3832 = vmatpush2.bf16.msra.mxu0 %v2871
    %3833 = vmatprep.subr.bf16.mxu0 %v2856
    %3834 = vmatpush2.bf16.msra.mxu0 %v2855
    %3835 = vmatprep.subr.bf16.mxu0 %v2840
    %3836 = vmatpush2.bf16.msra.mxu0 %v2839
    %3837 = vmatprep.subr.bf16.mxu0 %v2824
    %3838 = vmatpush2.bf16.msra.mxu0 %v2823
    %3839 = vmatprep.subr.bf16.mxu0 %v2808
    %3840 = vmatpush2.bf16.msra.mxu0 %v2807
    %3841 = vmatprep.subr.bf16.mxu0 %v2792
    %3842 = vmatpush2.bf16.msra.mxu0 %v2791
    %3843 = vmatprep.subr.bf16.mxu0 %v2776
    %3844 = vmatpush2.bf16.msra.mxu0 %v2775
    %3845 = vmatprep.subr.bf16.mxu0 %v2760
    %3846 = vmatpush2.bf16.msra.mxu0 %v2759
    %3847 = vmatprep.mubr.bf16.mxu0 %v492
    %3848 = vmatmul.mubr.bf16.gmra.mxu0 %v491
    %v3849 = vpop.f32.mrf.mxu0
    %v3850 = vadd.f32 %v1030, %v3849
    %v3851 = vpop.f32.mrf.mxu0
    %v3852 = vadd.f32 %v1034, %v3851
    %v3853 = vpop.f32.mrf.mxu0
    %v3854 = vpop.f32.mrf.mxu0
    %3855 = vdwg.mxu0
    %3856 = vmatprep.subr.bf16.mxu0 %v3000
    %3857 = vmatpush1.bf16.msra.mxu0 %v2999
    %3858 = vmatprep.subr.bf16.mxu0 %v2984
    %3859 = vmatpush1.bf16.msra.mxu0 %v2983
    %3860 = vmatprep.subr.bf16.mxu0 %v2968
    %3861 = vmatpush1.bf16.msra.mxu0 %v2967
    %3862 = vmatprep.subr.bf16.mxu0 %v2952
    %3863 = vmatpush1.bf16.msra.mxu0 %v2951
    %3864 = vmatprep.subr.bf16.mxu0 %v2936
    %3865 = vmatpush1.bf16.msra.mxu0 %v2935
    %3866 = vmatprep.subr.bf16.mxu0 %v2920
    %3867 = vmatpush1.bf16.msra.mxu0 %v2919
    %3868 = vmatprep.subr.bf16.mxu0 %v2904
    %3869 = vmatpush1.bf16.msra.mxu0 %v2903
    %3870 = vmatprep.subr.bf16.mxu0 %v2888
    %3871 = vmatpush1.bf16.msra.mxu0 %v2887
    %3872 = vmatprep.subr.bf16.mxu0 %v3128
    %3873 = vmatpush2.bf16.msra.mxu0 %v3127
    %3874 = vmatprep.subr.bf16.mxu0 %v3112
    %3875 = vmatpush2.bf16.msra.mxu0 %v3111
    %3876 = vmatprep.subr.bf16.mxu0 %v3096
    %3877 = vmatpush2.bf16.msra.mxu0 %v3095
    %3878 = vmatprep.subr.bf16.mxu0 %v3080
    %3879 = vmatpush2.bf16.msra.mxu0 %v3079
    %3880 = vmatprep.subr.bf16.mxu0 %v3064
    %3881 = vmatpush2.bf16.msra.mxu0 %v3063
    %3882 = vmatprep.subr.bf16.mxu0 %v3048
    %3883 = vmatpush2.bf16.msra.mxu0 %v3047
    %3884 = vmatprep.subr.bf16.mxu0 %v3032
    %3885 = vmatpush2.bf16.msra.mxu0 %v3031
    %3886 = vmatprep.subr.bf16.mxu0 %v3016
    %3887 = vmatpush2.bf16.msra.mxu0 %v3015
    %3888 = vmatprep.mubr.bf16.mxu0 %v494
    %3889 = vmatmul.mubr.bf16.gmra.mxu0 %v493
    %v3890 = vpop.f32.mrf.mxu0
    %v3891 = vadd.f32 %v3850, %v3890
    %v3892 = vpop.f32.mrf.mxu0
    %v3893 = vadd.f32 %v3852, %v3892
    %v3894 = vpop.f32.mrf.mxu0
    %v3895 = vpop.f32.mrf.mxu0
    %3896 = vdwg.mxu0
    %3897 = vmatprep.subr.bf16.mxu0 %v2746
    %3898 = vmatpush1.bf16.msra.mxu0 %v2745
    %3899 = vmatprep.subr.bf16.mxu0 %v2730
    %3900 = vmatpush1.bf16.msra.mxu0 %v2729
    %3901 = vmatprep.subr.bf16.mxu0 %v2714
    %3902 = vmatpush1.bf16.msra.mxu0 %v2713
    %3903 = vmatprep.subr.bf16.mxu0 %v2698
    %3904 = vmatpush1.bf16.msra.mxu0 %v2697
    %3905 = vmatprep.subr.bf16.mxu0 %v2682
    %3906 = vmatpush1.bf16.msra.mxu0 %v2681
    %3907 = vmatprep.subr.bf16.mxu0 %v2666
    %3908 = vmatpush1.bf16.msra.mxu0 %v2665
    %3909 = vmatprep.subr.bf16.mxu0 %v2650
    %3910 = vmatpush1.bf16.msra.mxu0 %v2649
    %3911 = vmatprep.subr.bf16.mxu0 %v2634
    %3912 = vmatpush1.bf16.msra.mxu0 %v2633
    %3913 = vmatprep.subr.bf16.mxu0 %v2874
    %3914 = vmatpush2.bf16.msra.mxu0 %v2873
    %3915 = vmatprep.subr.bf16.mxu0 %v2858
    %3916 = vmatpush2.bf16.msra.mxu0 %v2857
    %3917 = vmatprep.subr.bf16.mxu0 %v2842
    %3918 = vmatpush2.bf16.msra.mxu0 %v2841
    %3919 = vmatprep.subr.bf16.mxu0 %v2826
    %3920 = vmatpush2.bf16.msra.mxu0 %v2825
    %3921 = vmatprep.subr.bf16.mxu0 %v2810
    %3922 = vmatpush2.bf16.msra.mxu0 %v2809
    %3923 = vmatprep.subr.bf16.mxu0 %v2794
    %3924 = vmatpush2.bf16.msra.mxu0 %v2793
    %3925 = vmatprep.subr.bf16.mxu0 %v2778
    %3926 = vmatpush2.bf16.msra.mxu0 %v2777
    %3927 = vmatprep.subr.bf16.mxu0 %v2762
    %3928 = vmatpush2.bf16.msra.mxu0 %v2761
    %3929 = vmatprep.mubr.bf16.mxu0 %v492
    %3930 = vmatmul.mubr.bf16.gmra.mxu0 %v491
    %v3931 = vpop.f32.mrf.mxu0
    %v3932 = vadd.f32 %v1038, %v3931
    %v3933 = vpop.f32.mrf.mxu0
    %v3934 = vadd.f32 %v1042, %v3933
    %v3935 = vpop.f32.mrf.mxu0
    %v3936 = vpop.f32.mrf.mxu0
    %3937 = vdwg.mxu0
    %3938 = vmatprep.subr.bf16.mxu0 %v3002
    %3939 = vmatpush1.bf16.msra.mxu0 %v3001
    %3940 = vmatprep.subr.bf16.mxu0 %v2986
    %3941 = vmatpush1.bf16.msra.mxu0 %v2985
    %3942 = vmatprep.subr.bf16.mxu0 %v2970
    %3943 = vmatpush1.bf16.msra.mxu0 %v2969
    %3944 = vmatprep.subr.bf16.mxu0 %v2954
    %3945 = vmatpush1.bf16.msra.mxu0 %v2953
    %3946 = vmatprep.subr.bf16.mxu0 %v2938
    %3947 = vmatpush1.bf16.msra.mxu0 %v2937
    %3948 = vmatprep.subr.bf16.mxu0 %v2922
    %3949 = vmatpush1.bf16.msra.mxu0 %v2921
    %3950 = vmatprep.subr.bf16.mxu0 %v2906
    %3951 = vmatpush1.bf16.msra.mxu0 %v2905
    %3952 = vmatprep.subr.bf16.mxu0 %v2890
    %3953 = vmatpush1.bf16.msra.mxu0 %v2889
    %3954 = vmatprep.subr.bf16.mxu0 %v3130
    %3955 = vmatpush2.bf16.msra.mxu0 %v3129
    %3956 = vmatprep.subr.bf16.mxu0 %v3114
    %3957 = vmatpush2.bf16.msra.mxu0 %v3113
    %3958 = vmatprep.subr.bf16.mxu0 %v3098
    %3959 = vmatpush2.bf16.msra.mxu0 %v3097
    %3960 = vmatprep.subr.bf16.mxu0 %v3082
    %3961 = vmatpush2.bf16.msra.mxu0 %v3081
    %3962 = vmatprep.subr.bf16.mxu0 %v3066
    %3963 = vmatpush2.bf16.msra.mxu0 %v3065
    %3964 = vmatprep.subr.bf16.mxu0 %v3050
    %3965 = vmatpush2.bf16.msra.mxu0 %v3049
    %3966 = vmatprep.subr.bf16.mxu0 %v3034
    %3967 = vmatpush2.bf16.msra.mxu0 %v3033
    %3968 = vmatprep.subr.bf16.mxu0 %v3018
    %3969 = vmatpush2.bf16.msra.mxu0 %v3017
    %3970 = vmatprep.mubr.bf16.mxu0 %v494
    %3971 = vmatmul.mubr.bf16.gmra.mxu0 %v493
    %v3972 = vpop.f32.mrf.mxu0
    %v3973 = vadd.f32 %v3932, %v3972
    %v3974 = vpop.f32.mrf.mxu0
    %v3975 = vadd.f32 %v3934, %v3974
    %v3976 = vpop.f32.mrf.mxu0
    %v3977 = vpop.f32.mrf.mxu0
    %3978 = vdwg.mxu0
    %3979 = vmatprep.subr.bf16.mxu0 %v2748
    %3980 = vmatpush1.bf16.msra.mxu0 %v2747
    %3981 = vmatprep.subr.bf16.mxu0 %v2732
    %3982 = vmatpush1.bf16.msra.mxu0 %v2731
    %3983 = vmatprep.subr.bf16.mxu0 %v2716
    %3984 = vmatpush1.bf16.msra.mxu0 %v2715
    %3985 = vmatprep.subr.bf16.mxu0 %v2700
    %3986 = vmatpush1.bf16.msra.mxu0 %v2699
    %3987 = vmatprep.subr.bf16.mxu0 %v2684
    %3988 = vmatpush1.bf16.msra.mxu0 %v2683
    %3989 = vmatprep.subr.bf16.mxu0 %v2668
    %3990 = vmatpush1.bf16.msra.mxu0 %v2667
    %3991 = vmatprep.subr.bf16.mxu0 %v2652
    %3992 = vmatpush1.bf16.msra.mxu0 %v2651
    %3993 = vmatprep.subr.bf16.mxu0 %v2636
    %3994 = vmatpush1.bf16.msra.mxu0 %v2635
    %3995 = vmatprep.subr.bf16.mxu0 %v2876
    %3996 = vmatpush2.bf16.msra.mxu0 %v2875
    %3997 = vmatprep.subr.bf16.mxu0 %v2860
    %3998 = vmatpush2.bf16.msra.mxu0 %v2859
    %3999 = vmatprep.subr.bf16.mxu0 %v2844
    %4000 = vmatpush2.bf16.msra.mxu0 %v2843
    %4001 = vmatprep.subr.bf16.mxu0 %v2828
    %4002 = vmatpush2.bf16.msra.mxu0 %v2827
    %4003 = vmatprep.subr.bf16.mxu0 %v2812
    %4004 = vmatpush2.bf16.msra.mxu0 %v2811
    %4005 = vmatprep.subr.bf16.mxu0 %v2796
    %4006 = vmatpush2.bf16.msra.mxu0 %v2795
    %4007 = vmatprep.subr.bf16.mxu0 %v2780
    %4008 = vmatpush2.bf16.msra.mxu0 %v2779
    %4009 = vmatprep.subr.bf16.mxu0 %v2764
    %4010 = vmatpush2.bf16.msra.mxu0 %v2763
    %4011 = vmatprep.mubr.bf16.mxu0 %v492
    %4012 = vmatmul.mubr.bf16.gmra.mxu0 %v491
    %v4013 = vpop.f32.mrf.mxu0
    %v4014 = vadd.f32 %v1046, %v4013
    %v4015 = vpop.f32.mrf.mxu0
    %v4016 = vadd.f32 %v1050, %v4015
    %v4017 = vpop.f32.mrf.mxu0
    %v4018 = vpop.f32.mrf.mxu0
    %4019 = vdwg.mxu0
    %4020 = vmatprep.subr.bf16.mxu0 %v3004
    %4021 = vmatpush1.bf16.msra.mxu0 %v3003
    %4022 = vmatprep.subr.bf16.mxu0 %v2988
    %4023 = vmatpush1.bf16.msra.mxu0 %v2987
    %4024 = vmatprep.subr.bf16.mxu0 %v2972
    %4025 = vmatpush1.bf16.msra.mxu0 %v2971
    %4026 = vmatprep.subr.bf16.mxu0 %v2956
    %4027 = vmatpush1.bf16.msra.mxu0 %v2955
    %4028 = vmatprep.subr.bf16.mxu0 %v2940
    %4029 = vmatpush1.bf16.msra.mxu0 %v2939
    %4030 = vmatprep.subr.bf16.mxu0 %v2924
    %4031 = vmatpush1.bf16.msra.mxu0 %v2923
    %4032 = vmatprep.subr.bf16.mxu0 %v2908
    %4033 = vmatpush1.bf16.msra.mxu0 %v2907
    %4034 = vmatprep.subr.bf16.mxu0 %v2892
    %4035 = vmatpush1.bf16.msra.mxu0 %v2891
    %4036 = vmatprep.subr.bf16.mxu0 %v3132
    %4037 = vmatpush2.bf16.msra.mxu0 %v3131
    %4038 = vmatprep.subr.bf16.mxu0 %v3116
    %4039 = vmatpush2.bf16.msra.mxu0 %v3115
    %4040 = vmatprep.subr.bf16.mxu0 %v3100
    %4041 = vmatpush2.bf16.msra.mxu0 %v3099
    %4042 = vmatprep.subr.bf16.mxu0 %v3084
    %4043 = vmatpush2.bf16.msra.mxu0 %v3083
    %4044 = vmatprep.subr.bf16.mxu0 %v3068
    %4045 = vmatpush2.bf16.msra.mxu0 %v3067
    %4046 = vmatprep.subr.bf16.mxu0 %v3052
    %4047 = vmatpush2.bf16.msra.mxu0 %v3051
    %4048 = vmatprep.subr.bf16.mxu0 %v3036
    %4049 = vmatpush2.bf16.msra.mxu0 %v3035
    %4050 = vmatprep.subr.bf16.mxu0 %v3020
    %4051 = vmatpush2.bf16.msra.mxu0 %v3019
    %4052 = vmatprep.mubr.bf16.mxu0 %v494
    %4053 = vmatmul.mubr.bf16.gmra.mxu0 %v493
    %v4054 = vpop.f32.mrf.mxu0
    %v4055 = vadd.f32 %v4014, %v4054
    %v4056 = vpop.f32.mrf.mxu0
    %v4057 = vadd.f32 %v4016, %v4056
    %v4058 = vpop.f32.mrf.mxu0
    %v4059 = vpop.f32.mrf.mxu0
    %4060 = vdwg.mxu0
    %4061 = vmatprep.subr.bf16.mxu0 %v2750
    %4062 = vmatpush1.bf16.msra.mxu0 %v2749
    %4063 = vmatprep.subr.bf16.mxu0 %v2734
    %4064 = vmatpush1.bf16.msra.mxu0 %v2733
    %4065 = vmatprep.subr.bf16.mxu0 %v2718
    %4066 = vmatpush1.bf16.msra.mxu0 %v2717
    %4067 = vmatprep.subr.bf16.mxu0 %v2702
    %4068 = vmatpush1.bf16.msra.mxu0 %v2701
    %4069 = vmatprep.subr.bf16.mxu0 %v2686
    %4070 = vmatpush1.bf16.msra.mxu0 %v2685
    %4071 = vmatprep.subr.bf16.mxu0 %v2670
    %4072 = vmatpush1.bf16.msra.mxu0 %v2669
    %4073 = vmatprep.subr.bf16.mxu0 %v2654
    %4074 = vmatpush1.bf16.msra.mxu0 %v2653
    %4075 = vmatprep.subr.bf16.mxu0 %v2638
    %4076 = vmatpush1.bf16.msra.mxu0 %v2637
    %4077 = vmatprep.subr.bf16.mxu0 %v2878
    %4078 = vmatpush2.bf16.msra.mxu0 %v2877
    %4079 = vmatprep.subr.bf16.mxu0 %v2862
    %4080 = vmatpush2.bf16.msra.mxu0 %v2861
    %4081 = vmatprep.subr.bf16.mxu0 %v2846
    %4082 = vmatpush2.bf16.msra.mxu0 %v2845
    %4083 = vmatprep.subr.bf16.mxu0 %v2830
    %4084 = vmatpush2.bf16.msra.mxu0 %v2829
    %4085 = vmatprep.subr.bf16.mxu0 %v2814
    %4086 = vmatpush2.bf16.msra.mxu0 %v2813
    %4087 = vmatprep.subr.bf16.mxu0 %v2798
    %4088 = vmatpush2.bf16.msra.mxu0 %v2797
    %4089 = vmatprep.subr.bf16.mxu0 %v2782
    %4090 = vmatpush2.bf16.msra.mxu0 %v2781
    %4091 = vmatprep.subr.bf16.mxu0 %v2766
    %4092 = vmatpush2.bf16.msra.mxu0 %v2765
    %4093 = vmatprep.mubr.bf16.mxu0 %v492
    %4094 = vmatmul.mubr.bf16.gmra.mxu0 %v491
    %v4095 = vpop.f32.mrf.mxu0
    %v4096 = vadd.f32 %v1054, %v4095
    %v4097 = vpop.f32.mrf.mxu0
    %v4098 = vadd.f32 %v1058, %v4097
    %v4099 = vpop.f32.mrf.mxu0
    %v4100 = vpop.f32.mrf.mxu0
    %4101 = vdwg.mxu0
    %4102 = vmatprep.subr.bf16.mxu0 %v3006
    %4103 = vmatpush1.bf16.msra.mxu0 %v3005
    %4104 = vmatprep.subr.bf16.mxu0 %v2990
    %4105 = vmatpush1.bf16.msra.mxu0 %v2989
    %4106 = vmatprep.subr.bf16.mxu0 %v2974
    %4107 = vmatpush1.bf16.msra.mxu0 %v2973
    %4108 = vmatprep.subr.bf16.mxu0 %v2958
    %4109 = vmatpush1.bf16.msra.mxu0 %v2957
    %4110 = vmatprep.subr.bf16.mxu0 %v2942
    %4111 = vmatpush1.bf16.msra.mxu0 %v2941
    %4112 = vmatprep.subr.bf16.mxu0 %v2926
    %4113 = vmatpush1.bf16.msra.mxu0 %v2925
    %4114 = vmatprep.subr.bf16.mxu0 %v2910
    %4115 = vmatpush1.bf16.msra.mxu0 %v2909
    %4116 = vmatprep.subr.bf16.mxu0 %v2894
    %4117 = vmatpush1.bf16.msra.mxu0 %v2893
    %4118 = vmatprep.subr.bf16.mxu0 %v3134
    %4119 = vmatpush2.bf16.msra.mxu0 %v3133
    %4120 = vmatprep.subr.bf16.mxu0 %v3118
    %4121 = vmatpush2.bf16.msra.mxu0 %v3117
    %4122 = vmatprep.subr.bf16.mxu0 %v3102
    %4123 = vmatpush2.bf16.msra.mxu0 %v3101
    %4124 = vmatprep.subr.bf16.mxu0 %v3086
    %4125 = vmatpush2.bf16.msra.mxu0 %v3085
    %4126 = vmatprep.subr.bf16.mxu0 %v3070
    %4127 = vmatpush2.bf16.msra.mxu0 %v3069
    %4128 = vmatprep.subr.bf16.mxu0 %v3054
    %4129 = vmatpush2.bf16.msra.mxu0 %v3053
    %4130 = vmatprep.subr.bf16.mxu0 %v3038
    %4131 = vmatpush2.bf16.msra.mxu0 %v3037
    %4132 = vmatprep.subr.bf16.mxu0 %v3022
    %4133 = vmatpush2.bf16.msra.mxu0 %v3021
    %4134 = vmatprep.mubr.bf16.mxu0 %v494
    %4135 = vmatmul.mubr.bf16.gmra.mxu0 %v493
    %v4136 = vpop.f32.mrf.mxu0
    %v4137 = vadd.f32 %v4096, %v4136
    %v4138 = vpop.f32.mrf.mxu0
    %v4139 = vadd.f32 %v4098, %v4138
    %v4140 = vpop.f32.mrf.mxu0
    %v4141 = vpop.f32.mrf.mxu0
    %4142 = vdwg.mxu0
    %4143 = vmatprep.subr.bf16.mxu0 %v2752
    %4144 = vmatpush1.bf16.msra.mxu0 %v2751
    %4145 = vmatprep.subr.bf16.mxu0 %v2736
    %4146 = vmatpush1.bf16.msra.mxu0 %v2735
    %4147 = vmatprep.subr.bf16.mxu0 %v2720
    %4148 = vmatpush1.bf16.msra.mxu0 %v2719
    %4149 = vmatprep.subr.bf16.mxu0 %v2704
    %4150 = vmatpush1.bf16.msra.mxu0 %v2703
    %4151 = vmatprep.subr.bf16.mxu0 %v2688
    %4152 = vmatpush1.bf16.msra.mxu0 %v2687
    %4153 = vmatprep.subr.bf16.mxu0 %v2672
    %4154 = vmatpush1.bf16.msra.mxu0 %v2671
    %4155 = vmatprep.subr.bf16.mxu0 %v2656
    %4156 = vmatpush1.bf16.msra.mxu0 %v2655
    %4157 = vmatprep.subr.bf16.mxu0 %v2640
    %4158 = vmatpush1.bf16.msra.mxu0 %v2639
    %4159 = vmatprep.subr.bf16.mxu0 %v2880
    %4160 = vmatpush2.bf16.msra.mxu0 %v2879
    %4161 = vmatprep.subr.bf16.mxu0 %v2864
    %4162 = vmatpush2.bf16.msra.mxu0 %v2863
    %4163 = vmatprep.subr.bf16.mxu0 %v2848
    %4164 = vmatpush2.bf16.msra.mxu0 %v2847
    %4165 = vmatprep.subr.bf16.mxu0 %v2832
    %4166 = vmatpush2.bf16.msra.mxu0 %v2831
    %4167 = vmatprep.subr.bf16.mxu0 %v2816
    %4168 = vmatpush2.bf16.msra.mxu0 %v2815
    %4169 = vmatprep.subr.bf16.mxu0 %v2800
    %4170 = vmatpush2.bf16.msra.mxu0 %v2799
    %4171 = vmatprep.subr.bf16.mxu0 %v2784
    %4172 = vmatpush2.bf16.msra.mxu0 %v2783
    %4173 = vmatprep.subr.bf16.mxu0 %v2768
    %4174 = vmatpush2.bf16.msra.mxu0 %v2767
    %4175 = vmatprep.mubr.bf16.mxu0 %v492
    %4176 = vmatmul.mubr.bf16.gmra.mxu0 %v491
    %v4177 = vpop.f32.mrf.mxu0
    %v4178 = vadd.f32 %v1062, %v4177
    %v4179 = vpop.f32.mrf.mxu0
    %v4180 = vadd.f32 %v1066, %v4179
    %v4181 = vpop.f32.mrf.mxu0
    %v4182 = vpop.f32.mrf.mxu0
    %4183 = vdwg.mxu0
    %4184 = vmatprep.subr.bf16.mxu0 %v3008
    %4185 = vmatpush1.bf16.msra.mxu0 %v3007
    %4186 = vmatprep.subr.bf16.mxu0 %v2992
    %4187 = vmatpush1.bf16.msra.mxu0 %v2991
    %4188 = vmatprep.subr.bf16.mxu0 %v2976
    %4189 = vmatpush1.bf16.msra.mxu0 %v2975
    %4190 = vmatprep.subr.bf16.mxu0 %v2960
    %4191 = vmatpush1.bf16.msra.mxu0 %v2959
    %4192 = vmatprep.subr.bf16.mxu0 %v2944
    %4193 = vmatpush1.bf16.msra.mxu0 %v2943
    %4194 = vmatprep.subr.bf16.mxu0 %v2928
    %4195 = vmatpush1.bf16.msra.mxu0 %v2927
    %4196 = vmatprep.subr.bf16.mxu0 %v2912
    %4197 = vmatpush1.bf16.msra.mxu0 %v2911
    %4198 = vmatprep.subr.bf16.mxu0 %v2896
    %4199 = vmatpush1.bf16.msra.mxu0 %v2895
    %4200 = vmatprep.subr.bf16.mxu0 %v3136
    %4201 = vmatpush2.bf16.msra.mxu0 %v3135
    %4202 = vmatprep.subr.bf16.mxu0 %v3120
    %4203 = vmatpush2.bf16.msra.mxu0 %v3119
    %4204 = vmatprep.subr.bf16.mxu0 %v3104
    %4205 = vmatpush2.bf16.msra.mxu0 %v3103
    %4206 = vmatprep.subr.bf16.mxu0 %v3088
    %4207 = vmatpush2.bf16.msra.mxu0 %v3087
    %4208 = vmatprep.subr.bf16.mxu0 %v3072
    %4209 = vmatpush2.bf16.msra.mxu0 %v3071
    %4210 = vmatprep.subr.bf16.mxu0 %v3056
    %4211 = vmatpush2.bf16.msra.mxu0 %v3055
    %4212 = vmatprep.subr.bf16.mxu0 %v3040
    %4213 = vmatpush2.bf16.msra.mxu0 %v3039
    %4214 = vmatprep.subr.bf16.mxu0 %v3024
    %4215 = vmatpush2.bf16.msra.mxu0 %v3023
    %4216 = vmatprep.mubr.bf16.mxu0 %v494
    %4217 = vmatmul.mubr.bf16.gmra.mxu0 %v493
    %v4218 = vpop.f32.mrf.mxu0
    %v4219 = vadd.f32 %v4178, %v4218
    %v4220 = vpop.f32.mrf.mxu0
    %v4221 = vadd.f32 %v4180, %v4220
    %v4222 = vpop.f32.mrf.mxu0
    %v4223 = vpop.f32.mrf.mxu0
    %4224 = vdwg.mxu0
    %4225 = vmatprep.subr.bf16.mxu0 %v2754
    %4226 = vmatpush1.bf16.msra.mxu0 %v2753
    %4227 = vmatprep.subr.bf16.mxu0 %v2738
    %4228 = vmatpush1.bf16.msra.mxu0 %v2737
    %4229 = vmatprep.subr.bf16.mxu0 %v2722
    %4230 = vmatpush1.bf16.msra.mxu0 %v2721
    %4231 = vmatprep.subr.bf16.mxu0 %v2706
    %4232 = vmatpush1.bf16.msra.mxu0 %v2705
    %4233 = vmatprep.subr.bf16.mxu0 %v2690
    %4234 = vmatpush1.bf16.msra.mxu0 %v2689
    %4235 = vmatprep.subr.bf16.mxu0 %v2674
    %4236 = vmatpush1.bf16.msra.mxu0 %v2673
    %4237 = vmatprep.subr.bf16.mxu0 %v2658
    %4238 = vmatpush1.bf16.msra.mxu0 %v2657
    %4239 = vmatprep.subr.bf16.mxu0 %v2642
    %4240 = vmatpush1.bf16.msra.mxu0 %v2641
    %4241 = vmatprep.subr.bf16.mxu0 %v2882
    %4242 = vmatpush2.bf16.msra.mxu0 %v2881
    %4243 = vmatprep.subr.bf16.mxu0 %v2866
    %4244 = vmatpush2.bf16.msra.mxu0 %v2865
    %4245 = vmatprep.subr.bf16.mxu0 %v2850
    %4246 = vmatpush2.bf16.msra.mxu0 %v2849
    %4247 = vmatprep.subr.bf16.mxu0 %v2834
    %4248 = vmatpush2.bf16.msra.mxu0 %v2833
    %4249 = vmatprep.subr.bf16.mxu0 %v2818
    %4250 = vmatpush2.bf16.msra.mxu0 %v2817
    %4251 = vmatprep.subr.bf16.mxu0 %v2802
    %4252 = vmatpush2.bf16.msra.mxu0 %v2801
    %4253 = vmatprep.subr.bf16.mxu0 %v2786
    %4254 = vmatpush2.bf16.msra.mxu0 %v2785
    %4255 = vmatprep.subr.bf16.mxu0 %v2770
    %4256 = vmatpush2.bf16.msra.mxu0 %v2769
    %4257 = vmatprep.mubr.bf16.mxu0 %v492
    %4258 = vmatmul.mubr.bf16.gmra.mxu0 %v491
    %v4259 = vpop.f32.mrf.mxu0
    %v4260 = vadd.f32 %v1070, %v4259
    %v4261 = vpop.f32.mrf.mxu0
    %v4262 = vadd.f32 %v1074, %v4261
    %v4263 = vpop.f32.mrf.mxu0
    %v4264 = vpop.f32.mrf.mxu0
    %4265 = vdwg.mxu0
    %4266 = vmatprep.subr.bf16.mxu0 %v3010
    %4267 = vmatpush1.bf16.msra.mxu0 %v3009
    %4268 = vmatprep.subr.bf16.mxu0 %v2994
    %4269 = vmatpush1.bf16.msra.mxu0 %v2993
    %4270 = vmatprep.subr.bf16.mxu0 %v2978
    %4271 = vmatpush1.bf16.msra.mxu0 %v2977
    %4272 = vmatprep.subr.bf16.mxu0 %v2962
    %4273 = vmatpush1.bf16.msra.mxu0 %v2961
    %4274 = vmatprep.subr.bf16.mxu0 %v2946
    %4275 = vmatpush1.bf16.msra.mxu0 %v2945
    %4276 = vmatprep.subr.bf16.mxu0 %v2930
    %4277 = vmatpush1.bf16.msra.mxu0 %v2929
    %4278 = vmatprep.subr.bf16.mxu0 %v2914
    %4279 = vmatpush1.bf16.msra.mxu0 %v2913
    %4280 = vmatprep.subr.bf16.mxu0 %v2898
    %4281 = vmatpush1.bf16.msra.mxu0 %v2897
    %4282 = vmatprep.subr.bf16.mxu0 %v3138
    %4283 = vmatpush2.bf16.msra.mxu0 %v3137
    %4284 = vmatprep.subr.bf16.mxu0 %v3122
    %4285 = vmatpush2.bf16.msra.mxu0 %v3121
    %4286 = vmatprep.subr.bf16.mxu0 %v3106
    %4287 = vmatpush2.bf16.msra.mxu0 %v3105
    %4288 = vmatprep.subr.bf16.mxu0 %v3090
    %4289 = vmatpush2.bf16.msra.mxu0 %v3089
    %4290 = vmatprep.subr.bf16.mxu0 %v3074
    %4291 = vmatpush2.bf16.msra.mxu0 %v3073
    %4292 = vmatprep.subr.bf16.mxu0 %v3058
    %4293 = vmatpush2.bf16.msra.mxu0 %v3057
    %4294 = vmatprep.subr.bf16.mxu0 %v3042
    %4295 = vmatpush2.bf16.msra.mxu0 %v3041
    %4296 = vmatprep.subr.bf16.mxu0 %v3026
    %4297 = vmatpush2.bf16.msra.mxu0 %v3025
    %4298 = vmatprep.mubr.bf16.mxu0 %v494
    %4299 = vmatmul.mubr.bf16.gmra.mxu0 %v493
    %v4300 = vpop.f32.mrf.mxu0
    %v4301 = vadd.f32 %v4260, %v4300
    %v4302 = vpop.f32.mrf.mxu0
    %v4303 = vadd.f32 %v4262, %v4302
    %v4304 = vpop.f32.mrf.mxu0
    %v4305 = vpop.f32.mrf.mxu0
    %4306 = vdwg.mxu0
    %v4307 = vpack.c.bf16 %v3727, %v3727
    %v4308 = vpack.c.bf16 %v3729, %v3729
    %v4309 = vpack.c.bf16 %v3809, %v3809
    %v4310 = vpack.c.bf16 %v3811, %v3811
    %v4311 = vpack.c.bf16 %v3891, %v3891
    %v4312 = vpack.c.bf16 %v3893, %v3893
    %v4313 = vpack.c.bf16 %v3973, %v3973
    %v4314 = vpack.c.bf16 %v3975, %v3975
    %v4315 = vpack.c.bf16 %v4055, %v4055
    %v4316 = vpack.c.bf16 %v4057, %v4057
    %v4317 = vpack.c.bf16 %v4137, %v4137
    %v4318 = vpack.c.bf16 %v4139, %v4139
    %v4319 = vpack.c.bf16 %v4219, %v4219
    %v4320 = vpack.c.bf16 %v4221, %v4221
    %v4321 = vpack.c.bf16 %v4301, %v4301
    %v4322 = vpack.c.bf16 %v4303, %v4303
    %v4323 = vld [vmem:[#allocation16] sm:$0xf]
    %v4324 = vld [vmem:[#allocation16 + $0x4] sm:$0xf]
    %v4325 = vld [vmem:[#allocation16 + $0x8] sm:$0xf]
    %v4326 = vld [vmem:[#allocation16 + $0xc] sm:$0xf]
    %v4327 = vld [vmem:[#allocation16 + $0x10] sm:$0xf]
    %v4328 = vld [vmem:[#allocation16 + $0x14] sm:$0xf]
    %v4329 = vld [vmem:[#allocation16 + $0x18] sm:$0xf]
    %v4330 = vld [vmem:[#allocation16 + $0x1c] sm:$0xf]
    %v4331 = vld [vmem:[#allocation16 + $0x20] sm:$0xf]
    %v4332 = vld [vmem:[#allocation16 + $0x24] sm:$0xf]
    %v4333 = vld [vmem:[#allocation16 + $0x28] sm:$0xf]
    %v4334 = vld [vmem:[#allocation16 + $0x2c] sm:$0xf]
    %v4335 = vld [vmem:[#allocation16 + $0x30] sm:$0xf]
    %v4336 = vld [vmem:[#allocation16 + $0x34] sm:$0xf]
    %v4337 = vld [vmem:[#allocation16 + $0x38] sm:$0xf]
    %v4338 = vld [vmem:[#allocation16 + $0x3c] sm:$0xf]
    %v4339 = vld [vmem:[#allocation16 + $0x40] sm:$0xf]
    %v4340 = vld [vmem:[#allocation16 + $0x44] sm:$0xf]
    %v4341 = vld [vmem:[#allocation16 + $0x48] sm:$0xf]
    %v4342 = vld [vmem:[#allocation16 + $0x4c] sm:$0xf]
    %v4343 = vld [vmem:[#allocation16 + $0x50] sm:$0xf]
    %v4344 = vld [vmem:[#allocation16 + $0x54] sm:$0xf]
    %v4345 = vld [vmem:[#allocation16 + $0x58] sm:$0xf]
    %v4346 = vld [vmem:[#allocation16 + $0x5c] sm:$0xf]
    %v4347 = vld [vmem:[#allocation16 + $0x60] sm:$0xf]
    %v4348 = vld [vmem:[#allocation16 + $0x64] sm:$0xf]
    %v4349 = vld [vmem:[#allocation16 + $0x68] sm:$0xf]
    %v4350 = vld [vmem:[#allocation16 + $0x6c] sm:$0xf]
    %v4351 = vld [vmem:[#allocation16 + $0x70] sm:$0xf]
    %v4352 = vld [vmem:[#allocation16 + $0x74] sm:$0xf]
    %v4353 = vld [vmem:[#allocation16 + $0x78] sm:$0xf]
    %v4354 = vld [vmem:[#allocation16 + $0x7c] sm:$0xf]
    %v4355 = vld [vmem:[#allocation16 + $0x80] sm:$0xf]
    %v4356 = vld [vmem:[#allocation16 + $0x84] sm:$0xf]
    %v4357 = vld [vmem:[#allocation16 + $0x88] sm:$0xf]
    %v4358 = vld [vmem:[#allocation16 + $0x8c] sm:$0xf]
    %v4359 = vld [vmem:[#allocation16 + $0x90] sm:$0xf]
    %v4360 = vld [vmem:[#allocation16 + $0x94] sm:$0xf]
    %v4361 = vld [vmem:[#allocation16 + $0x98] sm:$0xf]
    %v4362 = vld [vmem:[#allocation16 + $0x9c] sm:$0xf]
    %v4363 = vld [vmem:[#allocation16 + $0xa0] sm:$0xf]
    %v4364 = vld [vmem:[#allocation16 + $0xa4] sm:$0xf]
    %v4365 = vld [vmem:[#allocation16 + $0xa8] sm:$0xf]
    %v4366 = vld [vmem:[#allocation16 + $0xac] sm:$0xf]
    %v4367 = vld [vmem:[#allocation16 + $0xb0] sm:$0xf]
    %v4368 = vld [vmem:[#allocation16 + $0xb4] sm:$0xf]
    %v4369 = vld [vmem:[#allocation16 + $0xb8] sm:$0xf]
    %v4370 = vld [vmem:[#allocation16 + $0xbc] sm:$0xf]
    %v4371 = vld [vmem:[#allocation16 + $0xc0] sm:$0xf]
    %v4372 = vld [vmem:[#allocation16 + $0xc4] sm:$0xf]
    %v4373 = vld [vmem:[#allocation16 + $0xc8] sm:$0xf]
    %v4374 = vld [vmem:[#allocation16 + $0xcc] sm:$0xf]
    %v4375 = vld [vmem:[#allocation16 + $0xd0] sm:$0xf]
    %v4376 = vld [vmem:[#allocation16 + $0xd4] sm:$0xf]
    %v4377 = vld [vmem:[#allocation16 + $0xd8] sm:$0xf]
    %v4378 = vld [vmem:[#allocation16 + $0xdc] sm:$0xf]
    %v4379 = vld [vmem:[#allocation16 + $0xe0] sm:$0xf]
    %v4380 = vld [vmem:[#allocation16 + $0xe4] sm:$0xf]
    %v4381 = vld [vmem:[#allocation16 + $0xe8] sm:$0xf]
    %v4382 = vld [vmem:[#allocation16 + $0xec] sm:$0xf]
    %v4383 = vld [vmem:[#allocation16 + $0xf0] sm:$0xf]
    %v4384 = vld [vmem:[#allocation16 + $0xf4] sm:$0xf]
    %v4385 = vld [vmem:[#allocation16 + $0xf8] sm:$0xf]
    %v4386 = vld [vmem:[#allocation16 + $0xfc] sm:$0xf]
    %v4387 = vld [vmem:[#allocation16 + $0x100] sm:$0xf]
    %v4388 = vld [vmem:[#allocation16 + $0x104] sm:$0xf]
    %v4389 = vld [vmem:[#allocation16 + $0x108] sm:$0xf]
    %v4390 = vld [vmem:[#allocation16 + $0x10c] sm:$0xf]
    %v4391 = vld [vmem:[#allocation16 + $0x110] sm:$0xf]
    %v4392 = vld [vmem:[#allocation16 + $0x114] sm:$0xf]
    %v4393 = vld [vmem:[#allocation16 + $0x118] sm:$0xf]
    %v4394 = vld [vmem:[#allocation16 + $0x11c] sm:$0xf]
    %v4395 = vld [vmem:[#allocation16 + $0x120] sm:$0xf]
    %v4396 = vld [vmem:[#allocation16 + $0x124] sm:$0xf]
    %v4397 = vld [vmem:[#allocation16 + $0x128] sm:$0xf]
    %v4398 = vld [vmem:[#allocation16 + $0x12c] sm:$0xf]
    %v4399 = vld [vmem:[#allocation16 + $0x130] sm:$0xf]
    %v4400 = vld [vmem:[#allocation16 + $0x134] sm:$0xf]
    %v4401 = vld [vmem:[#allocation16 + $0x138] sm:$0xf]
    %v4402 = vld [vmem:[#allocation16 + $0x13c] sm:$0xf]
    %v4403 = vld [vmem:[#allocation16 + $0x140] sm:$0xf]
    %v4404 = vld [vmem:[#allocation16 + $0x144] sm:$0xf]
    %v4405 = vld [vmem:[#allocation16 + $0x148] sm:$0xf]
    %v4406 = vld [vmem:[#allocation16 + $0x14c] sm:$0xf]
    %v4407 = vld [vmem:[#allocation16 + $0x150] sm:$0xf]
    %v4408 = vld [vmem:[#allocation16 + $0x154] sm:$0xf]
    %v4409 = vld [vmem:[#allocation16 + $0x158] sm:$0xf]
    %v4410 = vld [vmem:[#allocation16 + $0x15c] sm:$0xf]
    %v4411 = vld [vmem:[#allocation16 + $0x160] sm:$0xf]
    %v4412 = vld [vmem:[#allocation16 + $0x164] sm:$0xf]
    %v4413 = vld [vmem:[#allocation16 + $0x168] sm:$0xf]
    %v4414 = vld [vmem:[#allocation16 + $0x16c] sm:$0xf]
    %v4415 = vld [vmem:[#allocation16 + $0x170] sm:$0xf]
    %v4416 = vld [vmem:[#allocation16 + $0x174] sm:$0xf]
    %v4417 = vld [vmem:[#allocation16 + $0x178] sm:$0xf]
    %v4418 = vld [vmem:[#allocation16 + $0x17c] sm:$0xf]
    %v4419 = vld [vmem:[#allocation16 + $0x180] sm:$0xf]
    %v4420 = vld [vmem:[#allocation16 + $0x184] sm:$0xf]
    %v4421 = vld [vmem:[#allocation16 + $0x188] sm:$0xf]
    %v4422 = vld [vmem:[#allocation16 + $0x18c] sm:$0xf]
    %v4423 = vld [vmem:[#allocation16 + $0x190] sm:$0xf]
    %v4424 = vld [vmem:[#allocation16 + $0x194] sm:$0xf]
    %v4425 = vld [vmem:[#allocation16 + $0x198] sm:$0xf]
    %v4426 = vld [vmem:[#allocation16 + $0x19c] sm:$0xf]
    %v4427 = vld [vmem:[#allocation16 + $0x1a0] sm:$0xf]
    %v4428 = vld [vmem:[#allocation16 + $0x1a4] sm:$0xf]
    %v4429 = vld [vmem:[#allocation16 + $0x1a8] sm:$0xf]
    %v4430 = vld [vmem:[#allocation16 + $0x1ac] sm:$0xf]
    %v4431 = vld [vmem:[#allocation16 + $0x1b0] sm:$0xf]
    %v4432 = vld [vmem:[#allocation16 + $0x1b4] sm:$0xf]
    %v4433 = vld [vmem:[#allocation16 + $0x1b8] sm:$0xf]
    %v4434 = vld [vmem:[#allocation16 + $0x1bc] sm:$0xf]
    %v4435 = vld [vmem:[#allocation16 + $0x1c0] sm:$0xf]
    %v4436 = vld [vmem:[#allocation16 + $0x1c4] sm:$0xf]
    %v4437 = vld [vmem:[#allocation16 + $0x1c8] sm:$0xf]
    %v4438 = vld [vmem:[#allocation16 + $0x1cc] sm:$0xf]
    %v4439 = vld [vmem:[#allocation16 + $0x1d0] sm:$0xf]
    %v4440 = vld [vmem:[#allocation16 + $0x1d4] sm:$0xf]
    %v4441 = vld [vmem:[#allocation16 + $0x1d8] sm:$0xf]
    %v4442 = vld [vmem:[#allocation16 + $0x1dc] sm:$0xf]
    %v4443 = vld [vmem:[#allocation16 + $0x1e0] sm:$0xf]
    %v4444 = vld [vmem:[#allocation16 + $0x1e4] sm:$0xf]
    %v4445 = vld [vmem:[#allocation16 + $0x1e8] sm:$0xf]
    %v4446 = vld [vmem:[#allocation16 + $0x1ec] sm:$0xf]
    %v4447 = vld [vmem:[#allocation16 + $0x1f0] sm:$0xf]
    %v4448 = vld [vmem:[#allocation16 + $0x1f4] sm:$0xf]
    %v4449 = vld [vmem:[#allocation16 + $0x1f8] sm:$0xf]
    %v4450 = vld [vmem:[#allocation16 + $0x1fc] sm:$0xf]
    %v4451 = vld [vmem:[#allocation16 + $0x200] sm:$0xf]
    %v4452 = vld [vmem:[#allocation16 + $0x204] sm:$0xf]
    %v4453 = vld [vmem:[#allocation16 + $0x208] sm:$0xf]
    %v4454 = vld [vmem:[#allocation16 + $0x20c] sm:$0xf]
    %v4455 = vld [vmem:[#allocation16 + $0x210] sm:$0xf]
    %v4456 = vld [vmem:[#allocation16 + $0x214] sm:$0xf]
    %v4457 = vld [vmem:[#allocation16 + $0x218] sm:$0xf]
    %v4458 = vld [vmem:[#allocation16 + $0x21c] sm:$0xf]
    %v4459 = vld [vmem:[#allocation16 + $0x220] sm:$0xf]
    %v4460 = vld [vmem:[#allocation16 + $0x224] sm:$0xf]
    %v4461 = vld [vmem:[#allocation16 + $0x228] sm:$0xf]
    %v4462 = vld [vmem:[#allocation16 + $0x22c] sm:$0xf]
    %v4463 = vld [vmem:[#allocation16 + $0x230] sm:$0xf]
    %v4464 = vld [vmem:[#allocation16 + $0x234] sm:$0xf]
    %v4465 = vld [vmem:[#allocation16 + $0x238] sm:$0xf]
    %v4466 = vld [vmem:[#allocation16 + $0x23c] sm:$0xf]
    %v4467 = vld [vmem:[#allocation16 + $0x240] sm:$0xf]
    %v4468 = vld [vmem:[#allocation16 + $0x244] sm:$0xf]
    %v4469 = vld [vmem:[#allocation16 + $0x248] sm:$0xf]
    %v4470 = vld [vmem:[#allocation16 + $0x24c] sm:$0xf]
    %v4471 = vld [vmem:[#allocation16 + $0x250] sm:$0xf]
    %v4472 = vld [vmem:[#allocation16 + $0x254] sm:$0xf]
    %v4473 = vld [vmem:[#allocation16 + $0x258] sm:$0xf]
    %v4474 = vld [vmem:[#allocation16 + $0x25c] sm:$0xf]
    %v4475 = vld [vmem:[#allocation16 + $0x260] sm:$0xf]
    %v4476 = vld [vmem:[#allocation16 + $0x264] sm:$0xf]
    %v4477 = vld [vmem:[#allocation16 + $0x268] sm:$0xf]
    %v4478 = vld [vmem:[#allocation16 + $0x26c] sm:$0xf]
    %v4479 = vld [vmem:[#allocation16 + $0x270] sm:$0xf]
    %v4480 = vld [vmem:[#allocation16 + $0x274] sm:$0xf]
    %v4481 = vld [vmem:[#allocation16 + $0x278] sm:$0xf]
    %v4482 = vld [vmem:[#allocation16 + $0x27c] sm:$0xf]
    %v4483 = vld [vmem:[#allocation16 + $0x280] sm:$0xf]
    %v4484 = vld [vmem:[#allocation16 + $0x284] sm:$0xf]
    %v4485 = vld [vmem:[#allocation16 + $0x288] sm:$0xf]
    %v4486 = vld [vmem:[#allocation16 + $0x28c] sm:$0xf]
    %v4487 = vld [vmem:[#allocation16 + $0x290] sm:$0xf]
    %v4488 = vld [vmem:[#allocation16 + $0x294] sm:$0xf]
    %v4489 = vld [vmem:[#allocation16 + $0x298] sm:$0xf]
    %v4490 = vld [vmem:[#allocation16 + $0x29c] sm:$0xf]
    %v4491 = vld [vmem:[#allocation16 + $0x2a0] sm:$0xf]
    %v4492 = vld [vmem:[#allocation16 + $0x2a4] sm:$0xf]
    %v4493 = vld [vmem:[#allocation16 + $0x2a8] sm:$0xf]
    %v4494 = vld [vmem:[#allocation16 + $0x2ac] sm:$0xf]
    %v4495 = vld [vmem:[#allocation16 + $0x2b0] sm:$0xf]
    %v4496 = vld [vmem:[#allocation16 + $0x2b4] sm:$0xf]
    %v4497 = vld [vmem:[#allocation16 + $0x2b8] sm:$0xf]
    %v4498 = vld [vmem:[#allocation16 + $0x2bc] sm:$0xf]
    %v4499 = vld [vmem:[#allocation16 + $0x2c0] sm:$0xf]
    %v4500 = vld [vmem:[#allocation16 + $0x2c4] sm:$0xf]
    %v4501 = vld [vmem:[#allocation16 + $0x2c8] sm:$0xf]
    %v4502 = vld [vmem:[#allocation16 + $0x2cc] sm:$0xf]
    %v4503 = vld [vmem:[#allocation16 + $0x2d0] sm:$0xf]
    %v4504 = vld [vmem:[#allocation16 + $0x2d4] sm:$0xf]
    %v4505 = vld [vmem:[#allocation16 + $0x2d8] sm:$0xf]
    %v4506 = vld [vmem:[#allocation16 + $0x2dc] sm:$0xf]
    %v4507 = vld [vmem:[#allocation16 + $0x2e0] sm:$0xf]
    %v4508 = vld [vmem:[#allocation16 + $0x2e4] sm:$0xf]
    %v4509 = vld [vmem:[#allocation16 + $0x2e8] sm:$0xf]
    %v4510 = vld [vmem:[#allocation16 + $0x2ec] sm:$0xf]
    %v4511 = vld [vmem:[#allocation16 + $0x2f0] sm:$0xf]
    %v4512 = vld [vmem:[#allocation16 + $0x2f4] sm:$0xf]
    %v4513 = vld [vmem:[#allocation16 + $0x2f8] sm:$0xf]
    %v4514 = vld [vmem:[#allocation16 + $0x2fc] sm:$0xf]
    %v4515 = vld [vmem:[#allocation16 + $0x300] sm:$0xf]
    %v4516 = vld [vmem:[#allocation16 + $0x304] sm:$0xf]
    %v4517 = vld [vmem:[#allocation16 + $0x308] sm:$0xf]
    %v4518 = vld [vmem:[#allocation16 + $0x30c] sm:$0xf]
    %v4519 = vld [vmem:[#allocation16 + $0x310] sm:$0xf]
    %v4520 = vld [vmem:[#allocation16 + $0x314] sm:$0xf]
    %v4521 = vld [vmem:[#allocation16 + $0x318] sm:$0xf]
    %v4522 = vld [vmem:[#allocation16 + $0x31c] sm:$0xf]
    %v4523 = vld [vmem:[#allocation16 + $0x320] sm:$0xf]
    %v4524 = vld [vmem:[#allocation16 + $0x324] sm:$0xf]
    %v4525 = vld [vmem:[#allocation16 + $0x328] sm:$0xf]
    %v4526 = vld [vmem:[#allocation16 + $0x32c] sm:$0xf]
    %v4527 = vld [vmem:[#allocation16 + $0x330] sm:$0xf]
    %v4528 = vld [vmem:[#allocation16 + $0x334] sm:$0xf]
    %v4529 = vld [vmem:[#allocation16 + $0x338] sm:$0xf]
    %v4530 = vld [vmem:[#allocation16 + $0x33c] sm:$0xf]
    %v4531 = vld [vmem:[#allocation16 + $0x340] sm:$0xf]
    %v4532 = vld [vmem:[#allocation16 + $0x344] sm:$0xf]
    %v4533 = vld [vmem:[#allocation16 + $0x348] sm:$0xf]
    %v4534 = vld [vmem:[#allocation16 + $0x34c] sm:$0xf]
    %v4535 = vld [vmem:[#allocation16 + $0x350] sm:$0xf]
    %v4536 = vld [vmem:[#allocation16 + $0x354] sm:$0xf]
    %v4537 = vld [vmem:[#allocation16 + $0x358] sm:$0xf]
    %v4538 = vld [vmem:[#allocation16 + $0x35c] sm:$0xf]
    %v4539 = vld [vmem:[#allocation16 + $0x360] sm:$0xf]
    %v4540 = vld [vmem:[#allocation16 + $0x364] sm:$0xf]
    %v4541 = vld [vmem:[#allocation16 + $0x368] sm:$0xf]
    %v4542 = vld [vmem:[#allocation16 + $0x36c] sm:$0xf]
    %v4543 = vld [vmem:[#allocation16 + $0x370] sm:$0xf]
    %v4544 = vld [vmem:[#allocation16 + $0x374] sm:$0xf]
    %v4545 = vld [vmem:[#allocation16 + $0x378] sm:$0xf]
    %v4546 = vld [vmem:[#allocation16 + $0x37c] sm:$0xf]
    %v4547 = vld [vmem:[#allocation16 + $0x380] sm:$0xf]
    %v4548 = vld [vmem:[#allocation16 + $0x384] sm:$0xf]
    %v4549 = vld [vmem:[#allocation16 + $0x388] sm:$0xf]
    %v4550 = vld [vmem:[#allocation16 + $0x38c] sm:$0xf]
    %v4551 = vld [vmem:[#allocation16 + $0x390] sm:$0xf]
    %v4552 = vld [vmem:[#allocation16 + $0x394] sm:$0xf]
    %v4553 = vld [vmem:[#allocation16 + $0x398] sm:$0xf]
    %v4554 = vld [vmem:[#allocation16 + $0x39c] sm:$0xf]
    %v4555 = vld [vmem:[#allocation16 + $0x3a0] sm:$0xf]
    %v4556 = vld [vmem:[#allocation16 + $0x3a4] sm:$0xf]
    %v4557 = vld [vmem:[#allocation16 + $0x3a8] sm:$0xf]
    %v4558 = vld [vmem:[#allocation16 + $0x3ac] sm:$0xf]
    %v4559 = vld [vmem:[#allocation16 + $0x3b0] sm:$0xf]
    %v4560 = vld [vmem:[#allocation16 + $0x3b4] sm:$0xf]
    %v4561 = vld [vmem:[#allocation16 + $0x3b8] sm:$0xf]
    %v4562 = vld [vmem:[#allocation16 + $0x3bc] sm:$0xf]
    %v4563 = vld [vmem:[#allocation16 + $0x3c0] sm:$0xf]
    %v4564 = vld [vmem:[#allocation16 + $0x3c4] sm:$0xf]
    %v4565 = vld [vmem:[#allocation16 + $0x3c8] sm:$0xf]
    %v4566 = vld [vmem:[#allocation16 + $0x3cc] sm:$0xf]
    %v4567 = vld [vmem:[#allocation16 + $0x3d0] sm:$0xf]
    %v4568 = vld [vmem:[#allocation16 + $0x3d4] sm:$0xf]
    %v4569 = vld [vmem:[#allocation16 + $0x3d8] sm:$0xf]
    %v4570 = vld [vmem:[#allocation16 + $0x3dc] sm:$0xf]
    %v4571 = vld [vmem:[#allocation16 + $0x3e0] sm:$0xf]
    %v4572 = vld [vmem:[#allocation16 + $0x3e4] sm:$0xf]
    %v4573 = vld [vmem:[#allocation16 + $0x3e8] sm:$0xf]
    %v4574 = vld [vmem:[#allocation16 + $0x3ec] sm:$0xf]
    %v4575 = vld [vmem:[#allocation16 + $0x3f0] sm:$0xf]
    %v4576 = vld [vmem:[#allocation16 + $0x3f4] sm:$0xf]
    %v4577 = vld [vmem:[#allocation16 + $0x3f8] sm:$0xf]
    %v4578 = vld [vmem:[#allocation16 + $0x3fc] sm:$0xf]
    %v4579 = vld [vmem:[#allocation17] sm:$0x1]
    %v4581 = vlaneseq
    %v4582 = vshrl.u32 %v4581, 7
    %v4583 = vsub.s32 0, %v4582
    %v4584 = vrot.slane %v4579, %v4583
    %v4842 = vunpack.c.l.b16 %v4323
    %v4843 = vunpack.c.l.b16 %v4324
    %v4844 = vunpack.c.l.b16 %v4325
    %v4845 = vunpack.c.l.b16 %v4326
    %v4846 = vunpack.c.l.b16 %v4327
    %v4847 = vunpack.c.l.b16 %v4328
    %v4848 = vunpack.c.l.b16 %v4329
    %v4849 = vunpack.c.l.b16 %v4330
    %v4850 = vunpack.c.l.b16 %v4331
    %v4851 = vunpack.c.l.b16 %v4332
    %v4852 = vunpack.c.l.b16 %v4333
    %v4853 = vunpack.c.l.b16 %v4334
    %v4854 = vunpack.c.l.b16 %v4335
    %v4855 = vunpack.c.l.b16 %v4336
    %v4856 = vunpack.c.l.b16 %v4337
    %v4857 = vunpack.c.l.b16 %v4338
    %v4858 = vunpack.c.l.b16 %v4339
    %v4859 = vunpack.c.l.b16 %v4340
    %v4860 = vunpack.c.l.b16 %v4341
    %v4861 = vunpack.c.l.b16 %v4342
    %v4862 = vunpack.c.l.b16 %v4343
    %v4863 = vunpack.c.l.b16 %v4344
    %v4864 = vunpack.c.l.b16 %v4345
    %v4865 = vunpack.c.l.b16 %v4346
    %v4866 = vunpack.c.l.b16 %v4347
    %v4867 = vunpack.c.l.b16 %v4348
    %v4868 = vunpack.c.l.b16 %v4349
    %v4869 = vunpack.c.l.b16 %v4350
    %v4870 = vunpack.c.l.b16 %v4351
    %v4871 = vunpack.c.l.b16 %v4352
    %v4872 = vunpack.c.l.b16 %v4353
    %v4873 = vunpack.c.l.b16 %v4354
    %v4874 = vunpack.c.l.b16 %v4355
    %v4875 = vunpack.c.l.b16 %v4356
    %v4876 = vunpack.c.l.b16 %v4357
    %v4877 = vunpack.c.l.b16 %v4358
    %v4878 = vunpack.c.l.b16 %v4359
    %v4879 = vunpack.c.l.b16 %v4360
    %v4880 = vunpack.c.l.b16 %v4361
    %v4881 = vunpack.c.l.b16 %v4362
    %v4882 = vunpack.c.l.b16 %v4363
    %v4883 = vunpack.c.l.b16 %v4364
    %v4884 = vunpack.c.l.b16 %v4365
    %v4885 = vunpack.c.l.b16 %v4366
    %v4886 = vunpack.c.l.b16 %v4367
    %v4887 = vunpack.c.l.b16 %v4368
    %v4888 = vunpack.c.l.b16 %v4369
    %v4889 = vunpack.c.l.b16 %v4370
    %v4890 = vunpack.c.l.b16 %v4371
    %v4891 = vunpack.c.l.b16 %v4372
    %v4892 = vunpack.c.l.b16 %v4373
    %v4893 = vunpack.c.l.b16 %v4374
    %v4894 = vunpack.c.l.b16 %v4375
    %v4895 = vunpack.c.l.b16 %v4376
    %v4896 = vunpack.c.l.b16 %v4377
    %v4897 = vunpack.c.l.b16 %v4378
    %v4898 = vunpack.c.l.b16 %v4379
    %v4899 = vunpack.c.l.b16 %v4380
    %v4900 = vunpack.c.l.b16 %v4381
    %v4901 = vunpack.c.l.b16 %v4382
    %v4902 = vunpack.c.l.b16 %v4383
    %v4903 = vunpack.c.l.b16 %v4384
    %v4904 = vunpack.c.l.b16 %v4385
    %v4905 = vunpack.c.l.b16 %v4386
    %v4906 = vunpack.c.l.b16 %v4387
    %v4907 = vunpack.c.l.b16 %v4388
    %v4908 = vunpack.c.l.b16 %v4389
    %v4909 = vunpack.c.l.b16 %v4390
    %v4910 = vunpack.c.l.b16 %v4391
    %v4911 = vunpack.c.l.b16 %v4392
    %v4912 = vunpack.c.l.b16 %v4393
    %v4913 = vunpack.c.l.b16 %v4394
    %v4914 = vunpack.c.l.b16 %v4395
    %v4915 = vunpack.c.l.b16 %v4396
    %v4916 = vunpack.c.l.b16 %v4397
    %v4917 = vunpack.c.l.b16 %v4398
    %v4918 = vunpack.c.l.b16 %v4399
    %v4919 = vunpack.c.l.b16 %v4400
    %v4920 = vunpack.c.l.b16 %v4401
    %v4921 = vunpack.c.l.b16 %v4402
    %v4922 = vunpack.c.l.b16 %v4403
    %v4923 = vunpack.c.l.b16 %v4404
    %v4924 = vunpack.c.l.b16 %v4405
    %v4925 = vunpack.c.l.b16 %v4406
    %v4926 = vunpack.c.l.b16 %v4407
    %v4927 = vunpack.c.l.b16 %v4408
    %v4928 = vunpack.c.l.b16 %v4409
    %v4929 = vunpack.c.l.b16 %v4410
    %v4930 = vunpack.c.l.b16 %v4411
    %v4931 = vunpack.c.l.b16 %v4412
    %v4932 = vunpack.c.l.b16 %v4413
    %v4933 = vunpack.c.l.b16 %v4414
    %v4934 = vunpack.c.l.b16 %v4415
    %v4935 = vunpack.c.l.b16 %v4416
    %v4936 = vunpack.c.l.b16 %v4417
    %v4937 = vunpack.c.l.b16 %v4418
    %v4938 = vunpack.c.l.b16 %v4419
    %v4939 = vunpack.c.l.b16 %v4420
    %v4940 = vunpack.c.l.b16 %v4421
    %v4941 = vunpack.c.l.b16 %v4422
    %v4942 = vunpack.c.l.b16 %v4423
    %v4943 = vunpack.c.l.b16 %v4424
    %v4944 = vunpack.c.l.b16 %v4425
    %v4945 = vunpack.c.l.b16 %v4426
    %v4946 = vunpack.c.l.b16 %v4427
    %v4947 = vunpack.c.l.b16 %v4428
    %v4948 = vunpack.c.l.b16 %v4429
    %v4949 = vunpack.c.l.b16 %v4430
    %v4950 = vunpack.c.l.b16 %v4431
    %v4951 = vunpack.c.l.b16 %v4432
    %v4952 = vunpack.c.l.b16 %v4433
    %v4953 = vunpack.c.l.b16 %v4434
    %v4954 = vunpack.c.l.b16 %v4435
    %v4955 = vunpack.c.l.b16 %v4436
    %v4956 = vunpack.c.l.b16 %v4437
    %v4957 = vunpack.c.l.b16 %v4438
    %v4958 = vunpack.c.l.b16 %v4439
    %v4959 = vunpack.c.l.b16 %v4440
    %v4960 = vunpack.c.l.b16 %v4441
    %v4961 = vunpack.c.l.b16 %v4442
    %v4962 = vunpack.c.l.b16 %v4443
    %v4963 = vunpack.c.l.b16 %v4444
    %v4964 = vunpack.c.l.b16 %v4445
    %v4965 = vunpack.c.l.b16 %v4446
    %v4966 = vunpack.c.l.b16 %v4447
    %v4967 = vunpack.c.l.b16 %v4448
    %v4968 = vunpack.c.l.b16 %v4449
    %v4969 = vunpack.c.l.b16 %v4450
    %v4970 = vunpack.c.l.b16 %v4451
    %v4971 = vunpack.c.l.b16 %v4452
    %v4972 = vunpack.c.l.b16 %v4453
    %v4973 = vunpack.c.l.b16 %v4454
    %v4974 = vunpack.c.l.b16 %v4455
    %v4975 = vunpack.c.l.b16 %v4456
    %v4976 = vunpack.c.l.b16 %v4457
    %v4977 = vunpack.c.l.b16 %v4458
    %v4978 = vunpack.c.l.b16 %v4459
    %v4979 = vunpack.c.l.b16 %v4460
    %v4980 = vunpack.c.l.b16 %v4461
    %v4981 = vunpack.c.l.b16 %v4462
    %v4982 = vunpack.c.l.b16 %v4463
    %v4983 = vunpack.c.l.b16 %v4464
    %v4984 = vunpack.c.l.b16 %v4465
    %v4985 = vunpack.c.l.b16 %v4466
    %v4986 = vunpack.c.l.b16 %v4467
    %v4987 = vunpack.c.l.b16 %v4468
    %v4988 = vunpack.c.l.b16 %v4469
    %v4989 = vunpack.c.l.b16 %v4470
    %v4990 = vunpack.c.l.b16 %v4471
    %v4991 = vunpack.c.l.b16 %v4472
    %v4992 = vunpack.c.l.b16 %v4473
    %v4993 = vunpack.c.l.b16 %v4474
    %v4994 = vunpack.c.l.b16 %v4475
    %v4995 = vunpack.c.l.b16 %v4476
    %v4996 = vunpack.c.l.b16 %v4477
    %v4997 = vunpack.c.l.b16 %v4478
    %v4998 = vunpack.c.l.b16 %v4479
    %v4999 = vunpack.c.l.b16 %v4480
    %v5000 = vunpack.c.l.b16 %v4481
    %v5001 = vunpack.c.l.b16 %v4482
    %v5002 = vunpack.c.l.b16 %v4483
    %v5003 = vunpack.c.l.b16 %v4484
    %v5004 = vunpack.c.l.b16 %v4485
    %v5005 = vunpack.c.l.b16 %v4486
    %v5006 = vunpack.c.l.b16 %v4487
    %v5007 = vunpack.c.l.b16 %v4488
    %v5008 = vunpack.c.l.b16 %v4489
    %v5009 = vunpack.c.l.b16 %v4490
    %v5010 = vunpack.c.l.b16 %v4491
    %v5011 = vunpack.c.l.b16 %v4492
    %v5012 = vunpack.c.l.b16 %v4493
    %v5013 = vunpack.c.l.b16 %v4494
    %v5014 = vunpack.c.l.b16 %v4495
    %v5015 = vunpack.c.l.b16 %v4496
    %v5016 = vunpack.c.l.b16 %v4497
    %v5017 = vunpack.c.l.b16 %v4498
    %v5018 = vunpack.c.l.b16 %v4499
    %v5019 = vunpack.c.l.b16 %v4500
    %v5020 = vunpack.c.l.b16 %v4501
    %v5021 = vunpack.c.l.b16 %v4502
    %v5022 = vunpack.c.l.b16 %v4503
    %v5023 = vunpack.c.l.b16 %v4504
    %v5024 = vunpack.c.l.b16 %v4505
    %v5025 = vunpack.c.l.b16 %v4506
    %v5026 = vunpack.c.l.b16 %v4507
    %v5027 = vunpack.c.l.b16 %v4508
    %v5028 = vunpack.c.l.b16 %v4509
    %v5029 = vunpack.c.l.b16 %v4510
    %v5030 = vunpack.c.l.b16 %v4511
    %v5031 = vunpack.c.l.b16 %v4512
    %v5032 = vunpack.c.l.b16 %v4513
    %v5033 = vunpack.c.l.b16 %v4514
    %v5034 = vunpack.c.l.b16 %v4515
    %v5035 = vunpack.c.l.b16 %v4516
    %v5036 = vunpack.c.l.b16 %v4517
    %v5037 = vunpack.c.l.b16 %v4518
    %v5038 = vunpack.c.l.b16 %v4519
    %v5039 = vunpack.c.l.b16 %v4520
    %v5040 = vunpack.c.l.b16 %v4521
    %v5041 = vunpack.c.l.b16 %v4522
    %v5042 = vunpack.c.l.b16 %v4523
    %v5043 = vunpack.c.l.b16 %v4524
    %v5044 = vunpack.c.l.b16 %v4525
    %v5045 = vunpack.c.l.b16 %v4526
    %v5046 = vunpack.c.l.b16 %v4527
    %v5047 = vunpack.c.l.b16 %v4528
    %v5048 = vunpack.c.l.b16 %v4529
    %v5049 = vunpack.c.l.b16 %v4530
    %v5050 = vunpack.c.l.b16 %v4531
    %v5051 = vunpack.c.l.b16 %v4532
    %v5052 = vunpack.c.l.b16 %v4533
    %v5053 = vunpack.c.l.b16 %v4534
    %v5054 = vunpack.c.l.b16 %v4535
    %v5055 = vunpack.c.l.b16 %v4536
    %v5056 = vunpack.c.l.b16 %v4537
    %v5057 = vunpack.c.l.b16 %v4538
    %v5058 = vunpack.c.l.b16 %v4539
    %v5059 = vunpack.c.l.b16 %v4540
    %v5060 = vunpack.c.l.b16 %v4541
    %v5061 = vunpack.c.l.b16 %v4542
    %v5062 = vunpack.c.l.b16 %v4543
    %v5063 = vunpack.c.l.b16 %v4544
    %v5064 = vunpack.c.l.b16 %v4545
    %v5065 = vunpack.c.l.b16 %v4546
    %v5066 = vunpack.c.l.b16 %v4547
    %v5067 = vunpack.c.l.b16 %v4548
    %v5068 = vunpack.c.l.b16 %v4549
    %v5069 = vunpack.c.l.b16 %v4550
    %v5070 = vunpack.c.l.b16 %v4551
    %v5071 = vunpack.c.l.b16 %v4552
    %v5072 = vunpack.c.l.b16 %v4553
    %v5073 = vunpack.c.l.b16 %v4554
    %v5074 = vunpack.c.l.b16 %v4555
    %v5075 = vunpack.c.l.b16 %v4556
    %v5076 = vunpack.c.l.b16 %v4557
    %v5077 = vunpack.c.l.b16 %v4558
    %v5078 = vunpack.c.l.b16 %v4559
    %v5079 = vunpack.c.l.b16 %v4560
    %v5080 = vunpack.c.l.b16 %v4561
    %v5081 = vunpack.c.l.b16 %v4562
    %v5082 = vunpack.c.l.b16 %v4563
    %v5083 = vunpack.c.l.b16 %v4564
    %v5084 = vunpack.c.l.b16 %v4565
    %v5085 = vunpack.c.l.b16 %v4566
    %v5086 = vunpack.c.l.b16 %v4567
    %v5087 = vunpack.c.l.b16 %v4568
    %v5088 = vunpack.c.l.b16 %v4569
    %v5089 = vunpack.c.l.b16 %v4570
    %v5090 = vunpack.c.l.b16 %v4571
    %v5091 = vunpack.c.l.b16 %v4572
    %v5092 = vunpack.c.l.b16 %v4573
    %v5093 = vunpack.c.l.b16 %v4574
    %v5094 = vunpack.c.l.b16 %v4575
    %v5095 = vunpack.c.l.b16 %v4576
    %v5096 = vunpack.c.l.b16 %v4577
    %v5097 = vunpack.c.l.b16 %v4578
    %v5098 = vpack.c.b16 %v4843, %v4842
    %v5099 = vpack.c.b16 %v4845, %v4844
    %v5100 = vpack.c.b16 %v4847, %v4846
    %v5101 = vpack.c.b16 %v4849, %v4848
    %v5102 = vpack.c.b16 %v4851, %v4850
    %v5103 = vpack.c.b16 %v4853, %v4852
    %v5104 = vpack.c.b16 %v4855, %v4854
    %v5105 = vpack.c.b16 %v4857, %v4856
    %v5106 = vpack.c.b16 %v4859, %v4858
    %v5107 = vpack.c.b16 %v4861, %v4860
    %v5108 = vpack.c.b16 %v4863, %v4862
    %v5109 = vpack.c.b16 %v4865, %v4864
    %v5110 = vpack.c.b16 %v4867, %v4866
    %v5111 = vpack.c.b16 %v4869, %v4868
    %v5112 = vpack.c.b16 %v4871, %v4870
    %v5113 = vpack.c.b16 %v4873, %v4872
    %v5114 = vpack.c.b16 %v4875, %v4874
    %v5115 = vpack.c.b16 %v4877, %v4876
    %v5116 = vpack.c.b16 %v4879, %v4878
    %v5117 = vpack.c.b16 %v4881, %v4880
    %v5118 = vpack.c.b16 %v4883, %v4882
    %v5119 = vpack.c.b16 %v4885, %v4884
    %v5120 = vpack.c.b16 %v4887, %v4886
    %v5121 = vpack.c.b16 %v4889, %v4888
    %v5122 = vpack.c.b16 %v4891, %v4890
    %v5123 = vpack.c.b16 %v4893, %v4892
    %v5124 = vpack.c.b16 %v4895, %v4894
    %v5125 = vpack.c.b16 %v4897, %v4896
    %v5126 = vpack.c.b16 %v4899, %v4898
    %v5127 = vpack.c.b16 %v4901, %v4900
    %v5128 = vpack.c.b16 %v4903, %v4902
    %v5129 = vpack.c.b16 %v4905, %v4904
    %v5130 = vpack.c.b16 %v4907, %v4906
    %v5131 = vpack.c.b16 %v4909, %v4908
    %v5132 = vpack.c.b16 %v4911, %v4910
    %v5133 = vpack.c.b16 %v4913, %v4912
    %v5134 = vpack.c.b16 %v4915, %v4914
    %v5135 = vpack.c.b16 %v4917, %v4916
    %v5136 = vpack.c.b16 %v4919, %v4918
    %v5137 = vpack.c.b16 %v4921, %v4920
    %v5138 = vpack.c.b16 %v4923, %v4922
    %v5139 = vpack.c.b16 %v4925, %v4924
    %v5140 = vpack.c.b16 %v4927, %v4926
    %v5141 = vpack.c.b16 %v4929, %v4928
    %v5142 = vpack.c.b16 %v4931, %v4930
    %v5143 = vpack.c.b16 %v4933, %v4932
    %v5144 = vpack.c.b16 %v4935, %v4934
    %v5145 = vpack.c.b16 %v4937, %v4936
    %v5146 = vpack.c.b16 %v4939, %v4938
    %v5147 = vpack.c.b16 %v4941, %v4940
    %v5148 = vpack.c.b16 %v4943, %v4942
    %v5149 = vpack.c.b16 %v4945, %v4944
    %v5150 = vpack.c.b16 %v4947, %v4946
    %v5151 = vpack.c.b16 %v4949, %v4948
    %v5152 = vpack.c.b16 %v4951, %v4950
    %v5153 = vpack.c.b16 %v4953, %v4952
    %v5154 = vpack.c.b16 %v4955, %v4954
    %v5155 = vpack.c.b16 %v4957, %v4956
    %v5156 = vpack.c.b16 %v4959, %v4958
    %v5157 = vpack.c.b16 %v4961, %v4960
    %v5158 = vpack.c.b16 %v4963, %v4962
    %v5159 = vpack.c.b16 %v4965, %v4964
    %v5160 = vpack.c.b16 %v4967, %v4966
    %v5161 = vpack.c.b16 %v4969, %v4968
    %v5162 = vpack.c.b16 %v4971, %v4970
    %v5163 = vpack.c.b16 %v4973, %v4972
    %v5164 = vpack.c.b16 %v4975, %v4974
    %v5165 = vpack.c.b16 %v4977, %v4976
    %v5166 = vpack.c.b16 %v4979, %v4978
    %v5167 = vpack.c.b16 %v4981, %v4980
    %v5168 = vpack.c.b16 %v4983, %v4982
    %v5169 = vpack.c.b16 %v4985, %v4984
    %v5170 = vpack.c.b16 %v4987, %v4986
    %v5171 = vpack.c.b16 %v4989, %v4988
    %v5172 = vpack.c.b16 %v4991, %v4990
    %v5173 = vpack.c.b16 %v4993, %v4992
    %v5174 = vpack.c.b16 %v4995, %v4994
    %v5175 = vpack.c.b16 %v4997, %v4996
    %v5176 = vpack.c.b16 %v4999, %v4998
    %v5177 = vpack.c.b16 %v5001, %v5000
    %v5178 = vpack.c.b16 %v5003, %v5002
    %v5179 = vpack.c.b16 %v5005, %v5004
    %v5180 = vpack.c.b16 %v5007, %v5006
    %v5181 = vpack.c.b16 %v5009, %v5008
    %v5182 = vpack.c.b16 %v5011, %v5010
    %v5183 = vpack.c.b16 %v5013, %v5012
    %v5184 = vpack.c.b16 %v5015, %v5014
    %v5185 = vpack.c.b16 %v5017, %v5016
    %v5186 = vpack.c.b16 %v5019, %v5018
    %v5187 = vpack.c.b16 %v5021, %v5020
    %v5188 = vpack.c.b16 %v5023, %v5022
    %v5189 = vpack.c.b16 %v5025, %v5024
    %v5190 = vpack.c.b16 %v5027, %v5026
    %v5191 = vpack.c.b16 %v5029, %v5028
    %v5192 = vpack.c.b16 %v5031, %v5030
    %v5193 = vpack.c.b16 %v5033, %v5032
    %v5194 = vpack.c.b16 %v5035, %v5034
    %v5195 = vpack.c.b16 %v5037, %v5036
    %v5196 = vpack.c.b16 %v5039, %v5038
    %v5197 = vpack.c.b16 %v5041, %v5040
    %v5198 = vpack.c.b16 %v5043, %v5042
    %v5199 = vpack.c.b16 %v5045, %v5044
    %v5200 = vpack.c.b16 %v5047, %v5046
    %v5201 = vpack.c.b16 %v5049, %v5048
    %v5202 = vpack.c.b16 %v5051, %v5050
    %v5203 = vpack.c.b16 %v5053, %v5052
    %v5204 = vpack.c.b16 %v5055, %v5054
    %v5205 = vpack.c.b16 %v5057, %v5056
    %v5206 = vpack.c.b16 %v5059, %v5058
    %v5207 = vpack.c.b16 %v5061, %v5060
    %v5208 = vpack.c.b16 %v5063, %v5062
    %v5209 = vpack.c.b16 %v5065, %v5064
    %v5210 = vpack.c.b16 %v5067, %v5066
    %v5211 = vpack.c.b16 %v5069, %v5068
    %v5212 = vpack.c.b16 %v5071, %v5070
    %v5213 = vpack.c.b16 %v5073, %v5072
    %v5214 = vpack.c.b16 %v5075, %v5074
    %v5215 = vpack.c.b16 %v5077, %v5076
    %v5216 = vpack.c.b16 %v5079, %v5078
    %v5217 = vpack.c.b16 %v5081, %v5080
    %v5218 = vpack.c.b16 %v5083, %v5082
    %v5219 = vpack.c.b16 %v5085, %v5084
    %v5220 = vpack.c.b16 %v5087, %v5086
    %v5221 = vpack.c.b16 %v5089, %v5088
    %v5222 = vpack.c.b16 %v5091, %v5090
    %v5223 = vpack.c.b16 %v5093, %v5092
    %v5224 = vpack.c.b16 %v5095, %v5094
    %v5225 = vpack.c.b16 %v5097, %v5096
    %5354 = vmatprep.subr.bf16.mxu0 0
    %5355 = vmatpush1.bf16.msra.mxu0 %v5105
    %5356 = vmatprep.subr.bf16.mxu0 0
    %5357 = vmatpush1.bf16.msra.mxu0 %v5104
    %5358 = vmatprep.subr.bf16.mxu0 0
    %5359 = vmatpush1.bf16.msra.mxu0 %v5103
    %5360 = vmatprep.subr.bf16.mxu0 0
    %5361 = vmatpush1.bf16.msra.mxu0 %v5102
    %5362 = vmatprep.subr.bf16.mxu0 0
    %5363 = vmatpush1.bf16.msra.mxu0 %v5101
    %5364 = vmatprep.subr.bf16.mxu0 0
    %5365 = vmatpush1.bf16.msra.mxu0 %v5100
    %5366 = vmatprep.subr.bf16.mxu0 0
    %5367 = vmatpush1.bf16.msra.mxu0 %v5099
    %5368 = vmatprep.subr.bf16.mxu0 0
    %5369 = vmatpush1.bf16.msra.mxu0 %v5098
    %5370 = vmatprep.subr.bf16.mxu0 0
    %5371 = vmatpush2.bf16.msra.mxu0 %v5113
    %5372 = vmatprep.subr.bf16.mxu0 0
    %5373 = vmatpush2.bf16.msra.mxu0 %v5112
    %5374 = vmatprep.subr.bf16.mxu0 0
    %5375 = vmatpush2.bf16.msra.mxu0 %v5111
    %5376 = vmatprep.subr.bf16.mxu0 0
    %5377 = vmatpush2.bf16.msra.mxu0 %v5110
    %5378 = vmatprep.subr.bf16.mxu0 0
    %5379 = vmatpush2.bf16.msra.mxu0 %v5109
    %5380 = vmatprep.subr.bf16.mxu0 0
    %5381 = vmatpush2.bf16.msra.mxu0 %v5108
    %5382 = vmatprep.subr.bf16.mxu0 0
    %5383 = vmatpush2.bf16.msra.mxu0 %v5107
    %5384 = vmatprep.subr.bf16.mxu0 0
    %5385 = vmatpush2.bf16.msra.mxu0 %v5106
    %5386 = vmatprep.mubr.bf16.mxu0 %v4308
    %5387 = vmatmul.mubr.bf16.gmra.mxu0 %v4307
    %v5388 = vpop.f32.mrf.mxu0
    %v5389 = vadd.f32 %v4584, %v5388
    %v5390 = vpop.f32.mrf.mxu0
    %v5391 = vpop.f32.mrf.mxu0
    %v5392 = vpop.f32.mrf.mxu0
    %5393 = vdwg.mxu0
    %5394 = vmatprep.subr.bf16.mxu0 0
    %5395 = vmatpush1.bf16.msra.mxu0 %v5121
    %5396 = vmatprep.subr.bf16.mxu0 0
    %5397 = vmatpush1.bf16.msra.mxu0 %v5120
    %5398 = vmatprep.subr.bf16.mxu0 0
    %5399 = vmatpush1.bf16.msra.mxu0 %v5119
    %5400 = vmatprep.subr.bf16.mxu0 0
    %5401 = vmatpush1.bf16.msra.mxu0 %v5118
    %5402 = vmatprep.subr.bf16.mxu0 0
    %5403 = vmatpush1.bf16.msra.mxu0 %v5117
    %5404 = vmatprep.subr.bf16.mxu0 0
    %5405 = vmatpush1.bf16.msra.mxu0 %v5116
    %5406 = vmatprep.subr.bf16.mxu0 0
    %5407 = vmatpush1.bf16.msra.mxu0 %v5115
    %5408 = vmatprep.subr.bf16.mxu0 0
    %5409 = vmatpush1.bf16.msra.mxu0 %v5114
    %5410 = vmatprep.subr.bf16.mxu0 0
    %5411 = vmatpush2.bf16.msra.mxu0 %v5129
    %5412 = vmatprep.subr.bf16.mxu0 0
    %5413 = vmatpush2.bf16.msra.mxu0 %v5128
    %5414 = vmatprep.subr.bf16.mxu0 0
    %5415 = vmatpush2.bf16.msra.mxu0 %v5127
    %5416 = vmatprep.subr.bf16.mxu0 0
    %5417 = vmatpush2.bf16.msra.mxu0 %v5126
    %5418 = vmatprep.subr.bf16.mxu0 0
    %5419 = vmatpush2.bf16.msra.mxu0 %v5125
    %5420 = vmatprep.subr.bf16.mxu0 0
    %5421 = vmatpush2.bf16.msra.mxu0 %v5124
    %5422 = vmatprep.subr.bf16.mxu0 0
    %5423 = vmatpush2.bf16.msra.mxu0 %v5123
    %5424 = vmatprep.subr.bf16.mxu0 0
    %5425 = vmatpush2.bf16.msra.mxu0 %v5122
    %5426 = vmatprep.mubr.bf16.mxu0 %v4310
    %5427 = vmatmul.mubr.bf16.gmra.mxu0 %v4309
    %v5428 = vpop.f32.mrf.mxu0
    %v5429 = vadd.f32 %v5389, %v5428
    %v5430 = vpop.f32.mrf.mxu0
    %v5431 = vpop.f32.mrf.mxu0
    %v5432 = vpop.f32.mrf.mxu0
    %5433 = vdwg.mxu0
    %5434 = vmatprep.subr.bf16.mxu0 0
    %5435 = vmatpush1.bf16.msra.mxu0 %v5137
    %5436 = vmatprep.subr.bf16.mxu0 0
    %5437 = vmatpush1.bf16.msra.mxu0 %v5136
    %5438 = vmatprep.subr.bf16.mxu0 0
    %5439 = vmatpush1.bf16.msra.mxu0 %v5135
    %5440 = vmatprep.subr.bf16.mxu0 0
    %5441 = vmatpush1.bf16.msra.mxu0 %v5134
    %5442 = vmatprep.subr.bf16.mxu0 0
    %5443 = vmatpush1.bf16.msra.mxu0 %v5133
    %5444 = vmatprep.subr.bf16.mxu0 0
    %5445 = vmatpush1.bf16.msra.mxu0 %v5132
    %5446 = vmatprep.subr.bf16.mxu0 0
    %5447 = vmatpush1.bf16.msra.mxu0 %v5131
    %5448 = vmatprep.subr.bf16.mxu0 0
    %5449 = vmatpush1.bf16.msra.mxu0 %v5130
    %5450 = vmatprep.subr.bf16.mxu0 0
    %5451 = vmatpush2.bf16.msra.mxu0 %v5145
    %5452 = vmatprep.subr.bf16.mxu0 0
    %5453 = vmatpush2.bf16.msra.mxu0 %v5144
    %5454 = vmatprep.subr.bf16.mxu0 0
    %5455 = vmatpush2.bf16.msra.mxu0 %v5143
    %5456 = vmatprep.subr.bf16.mxu0 0
    %5457 = vmatpush2.bf16.msra.mxu0 %v5142
    %5458 = vmatprep.subr.bf16.mxu0 0
    %5459 = vmatpush2.bf16.msra.mxu0 %v5141
    %5460 = vmatprep.subr.bf16.mxu0 0
    %5461 = vmatpush2.bf16.msra.mxu0 %v5140
    %5462 = vmatprep.subr.bf16.mxu0 0
    %5463 = vmatpush2.bf16.msra.mxu0 %v5139
    %5464 = vmatprep.subr.bf16.mxu0 0
    %5465 = vmatpush2.bf16.msra.mxu0 %v5138
    %5466 = vmatprep.mubr.bf16.mxu0 %v4312
    %5467 = vmatmul.mubr.bf16.gmra.mxu0 %v4311
    %v5468 = vpop.f32.mrf.mxu0
    %v5469 = vadd.f32 %v5429, %v5468
    %v5470 = vpop.f32.mrf.mxu0
    %v5471 = vpop.f32.mrf.mxu0
    %v5472 = vpop.f32.mrf.mxu0
    %5473 = vdwg.mxu0
    %5474 = vmatprep.subr.bf16.mxu0 0
    %5475 = vmatpush1.bf16.msra.mxu0 %v5153
    %5476 = vmatprep.subr.bf16.mxu0 0
    %5477 = vmatpush1.bf16.msra.mxu0 %v5152
    %5478 = vmatprep.subr.bf16.mxu0 0
    %5479 = vmatpush1.bf16.msra.mxu0 %v5151
    %5480 = vmatprep.subr.bf16.mxu0 0
    %5481 = vmatpush1.bf16.msra.mxu0 %v5150
    %5482 = vmatprep.subr.bf16.mxu0 0
    %5483 = vmatpush1.bf16.msra.mxu0 %v5149
    %5484 = vmatprep.subr.bf16.mxu0 0
    %5485 = vmatpush1.bf16.msra.mxu0 %v5148
    %5486 = vmatprep.subr.bf16.mxu0 0
    %5487 = vmatpush1.bf16.msra.mxu0 %v5147
    %5488 = vmatprep.subr.bf16.mxu0 0
    %5489 = vmatpush1.bf16.msra.mxu0 %v5146
    %5490 = vmatprep.subr.bf16.mxu0 0
    %5491 = vmatpush2.bf16.msra.mxu0 %v5161
    %5492 = vmatprep.subr.bf16.mxu0 0
    %5493 = vmatpush2.bf16.msra.mxu0 %v5160
    %5494 = vmatprep.subr.bf16.mxu0 0
    %5495 = vmatpush2.bf16.msra.mxu0 %v5159
    %5496 = vmatprep.subr.bf16.mxu0 0
    %5497 = vmatpush2.bf16.msra.mxu0 %v5158
    %5498 = vmatprep.subr.bf16.mxu0 0
    %5499 = vmatpush2.bf16.msra.mxu0 %v5157
    %5500 = vmatprep.subr.bf16.mxu0 0
    %5501 = vmatpush2.bf16.msra.mxu0 %v5156
    %5502 = vmatprep.subr.bf16.mxu0 0
    %5503 = vmatpush2.bf16.msra.mxu0 %v5155
    %5504 = vmatprep.subr.bf16.mxu0 0
    %5505 = vmatpush2.bf16.msra.mxu0 %v5154
    %5506 = vmatprep.mubr.bf16.mxu0 %v4314
    %5507 = vmatmul.mubr.bf16.gmra.mxu0 %v4313
    %v5508 = vpop.f32.mrf.mxu0
    %v5509 = vadd.f32 %v5469, %v5508
    %v5510 = vpop.f32.mrf.mxu0
    %v5511 = vpop.f32.mrf.mxu0
    %v5512 = vpop.f32.mrf.mxu0
    %5513 = vdwg.mxu0
    %5514 = vmatprep.subr.bf16.mxu0 0
    %5515 = vmatpush1.bf16.msra.mxu0 %v5169
    %5516 = vmatprep.subr.bf16.mxu0 0
    %5517 = vmatpush1.bf16.msra.mxu0 %v5168
    %5518 = vmatprep.subr.bf16.mxu0 0
    %5519 = vmatpush1.bf16.msra.mxu0 %v5167
    %5520 = vmatprep.subr.bf16.mxu0 0
    %5521 = vmatpush1.bf16.msra.mxu0 %v5166
    %5522 = vmatprep.subr.bf16.mxu0 0
    %5523 = vmatpush1.bf16.msra.mxu0 %v5165
    %5524 = vmatprep.subr.bf16.mxu0 0
    %5525 = vmatpush1.bf16.msra.mxu0 %v5164
    %5526 = vmatprep.subr.bf16.mxu0 0
    %5527 = vmatpush1.bf16.msra.mxu0 %v5163
    %5528 = vmatprep.subr.bf16.mxu0 0
    %5529 = vmatpush1.bf16.msra.mxu0 %v5162
    %5530 = vmatprep.subr.bf16.mxu0 0
    %5531 = vmatpush2.bf16.msra.mxu0 %v5177
    %5532 = vmatprep.subr.bf16.mxu0 0
    %5533 = vmatpush2.bf16.msra.mxu0 %v5176
    %5534 = vmatprep.subr.bf16.mxu0 0
    %5535 = vmatpush2.bf16.msra.mxu0 %v5175
    %5536 = vmatprep.subr.bf16.mxu0 0
    %5537 = vmatpush2.bf16.msra.mxu0 %v5174
    %5538 = vmatprep.subr.bf16.mxu0 0
    %5539 = vmatpush2.bf16.msra.mxu0 %v5173
    %5540 = vmatprep.subr.bf16.mxu0 0
    %5541 = vmatpush2.bf16.msra.mxu0 %v5172
    %5542 = vmatprep.subr.bf16.mxu0 0
    %5543 = vmatpush2.bf16.msra.mxu0 %v5171
    %5544 = vmatprep.subr.bf16.mxu0 0
    %5545 = vmatpush2.bf16.msra.mxu0 %v5170
    %5546 = vmatprep.mubr.bf16.mxu0 %v4316
    %5547 = vmatmul.mubr.bf16.gmra.mxu0 %v4315
    %v5548 = vpop.f32.mrf.mxu0
    %v5549 = vadd.f32 %v5509, %v5548
    %v5550 = vpop.f32.mrf.mxu0
    %v5551 = vpop.f32.mrf.mxu0
    %v5552 = vpop.f32.mrf.mxu0
    %5553 = vdwg.mxu0
    %5554 = vmatprep.subr.bf16.mxu0 0
    %5555 = vmatpush1.bf16.msra.mxu0 %v5185
    %5556 = vmatprep.subr.bf16.mxu0 0
    %5557 = vmatpush1.bf16.msra.mxu0 %v5184
    %5558 = vmatprep.subr.bf16.mxu0 0
    %5559 = vmatpush1.bf16.msra.mxu0 %v5183
    %5560 = vmatprep.subr.bf16.mxu0 0
    %5561 = vmatpush1.bf16.msra.mxu0 %v5182
    %5562 = vmatprep.subr.bf16.mxu0 0
    %5563 = vmatpush1.bf16.msra.mxu0 %v5181
    %5564 = vmatprep.subr.bf16.mxu0 0
    %5565 = vmatpush1.bf16.msra.mxu0 %v5180
    %5566 = vmatprep.subr.bf16.mxu0 0
    %5567 = vmatpush1.bf16.msra.mxu0 %v5179
    %5568 = vmatprep.subr.bf16.mxu0 0
    %5569 = vmatpush1.bf16.msra.mxu0 %v5178
    %5570 = vmatprep.subr.bf16.mxu0 0
    %5571 = vmatpush2.bf16.msra.mxu0 %v5193
    %5572 = vmatprep.subr.bf16.mxu0 0
    %5573 = vmatpush2.bf16.msra.mxu0 %v5192
    %5574 = vmatprep.subr.bf16.mxu0 0
    %5575 = vmatpush2.bf16.msra.mxu0 %v5191
    %5576 = vmatprep.subr.bf16.mxu0 0
    %5577 = vmatpush2.bf16.msra.mxu0 %v5190
    %5578 = vmatprep.subr.bf16.mxu0 0
    %5579 = vmatpush2.bf16.msra.mxu0 %v5189
    %5580 = vmatprep.subr.bf16.mxu0 0
    %5581 = vmatpush2.bf16.msra.mxu0 %v5188
    %5582 = vmatprep.subr.bf16.mxu0 0
    %5583 = vmatpush2.bf16.msra.mxu0 %v5187
    %5584 = vmatprep.subr.bf16.mxu0 0
    %5585 = vmatpush2.bf16.msra.mxu0 %v5186
    %5586 = vmatprep.mubr.bf16.mxu0 %v4318
    %5587 = vmatmul.mubr.bf16.gmra.mxu0 %v4317
    %v5588 = vpop.f32.mrf.mxu0
    %v5589 = vadd.f32 %v5549, %v5588
    %v5590 = vpop.f32.mrf.mxu0
    %v5591 = vpop.f32.mrf.mxu0
    %v5592 = vpop.f32.mrf.mxu0
    %5593 = vdwg.mxu0
    %5594 = vmatprep.subr.bf16.mxu0 0
    %5595 = vmatpush1.bf16.msra.mxu0 %v5201
    %5596 = vmatprep.subr.bf16.mxu0 0
    %5597 = vmatpush1.bf16.msra.mxu0 %v5200
    %5598 = vmatprep.subr.bf16.mxu0 0
    %5599 = vmatpush1.bf16.msra.mxu0 %v5199
    %5600 = vmatprep.subr.bf16.mxu0 0
    %5601 = vmatpush1.bf16.msra.mxu0 %v5198
    %5602 = vmatprep.subr.bf16.mxu0 0
    %5603 = vmatpush1.bf16.msra.mxu0 %v5197
    %5604 = vmatprep.subr.bf16.mxu0 0
    %5605 = vmatpush1.bf16.msra.mxu0 %v5196
    %5606 = vmatprep.subr.bf16.mxu0 0
    %5607 = vmatpush1.bf16.msra.mxu0 %v5195
    %5608 = vmatprep.subr.bf16.mxu0 0
    %5609 = vmatpush1.bf16.msra.mxu0 %v5194
    %5610 = vmatprep.subr.bf16.mxu0 0
    %5611 = vmatpush2.bf16.msra.mxu0 %v5209
    %5612 = vmatprep.subr.bf16.mxu0 0
    %5613 = vmatpush2.bf16.msra.mxu0 %v5208
    %5614 = vmatprep.subr.bf16.mxu0 0
    %5615 = vmatpush2.bf16.msra.mxu0 %v5207
    %5616 = vmatprep.subr.bf16.mxu0 0
    %5617 = vmatpush2.bf16.msra.mxu0 %v5206
    %5618 = vmatprep.subr.bf16.mxu0 0
    %5619 = vmatpush2.bf16.msra.mxu0 %v5205
    %5620 = vmatprep.subr.bf16.mxu0 0
    %5621 = vmatpush2.bf16.msra.mxu0 %v5204
    %5622 = vmatprep.subr.bf16.mxu0 0
    %5623 = vmatpush2.bf16.msra.mxu0 %v5203
    %5624 = vmatprep.subr.bf16.mxu0 0
    %5625 = vmatpush2.bf16.msra.mxu0 %v5202
    %5626 = vmatprep.mubr.bf16.mxu0 %v4320
    %5627 = vmatmul.mubr.bf16.gmra.mxu0 %v4319
    %v5628 = vpop.f32.mrf.mxu0
    %v5629 = vadd.f32 %v5589, %v5628
    %v5630 = vpop.f32.mrf.mxu0
    %v5631 = vpop.f32.mrf.mxu0
    %v5632 = vpop.f32.mrf.mxu0
    %5633 = vdwg.mxu0
    %5634 = vmatprep.subr.bf16.mxu0 0
    %5635 = vmatpush1.bf16.msra.mxu0 %v5217
    %5636 = vmatprep.subr.bf16.mxu0 0
    %5637 = vmatpush1.bf16.msra.mxu0 %v5216
    %5638 = vmatprep.subr.bf16.mxu0 0
    %5639 = vmatpush1.bf16.msra.mxu0 %v5215
    %5640 = vmatprep.subr.bf16.mxu0 0
    %5641 = vmatpush1.bf16.msra.mxu0 %v5214
    %5642 = vmatprep.subr.bf16.mxu0 0
    %5643 = vmatpush1.bf16.msra.mxu0 %v5213
    %5644 = vmatprep.subr.bf16.mxu0 0
    %5645 = vmatpush1.bf16.msra.mxu0 %v5212
    %5646 = vmatprep.subr.bf16.mxu0 0
    %5647 = vmatpush1.bf16.msra.mxu0 %v5211
    %5648 = vmatprep.subr.bf16.mxu0 0
    %5649 = vmatpush1.bf16.msra.mxu0 %v5210
    %5650 = vmatprep.subr.bf16.mxu0 0
    %5651 = vmatpush2.bf16.msra.mxu0 %v5225
    %5652 = vmatprep.subr.bf16.mxu0 0
    %5653 = vmatpush2.bf16.msra.mxu0 %v5224
    %5654 = vmatprep.subr.bf16.mxu0 0
    %5655 = vmatpush2.bf16.msra.mxu0 %v5223
    %5656 = vmatprep.subr.bf16.mxu0 0
    %5657 = vmatpush2.bf16.msra.mxu0 %v5222
    %5658 = vmatprep.subr.bf16.mxu0 0
    %5659 = vmatpush2.bf16.msra.mxu0 %v5221
    %5660 = vmatprep.subr.bf16.mxu0 0
    %5661 = vmatpush2.bf16.msra.mxu0 %v5220
    %5662 = vmatprep.subr.bf16.mxu0 0
    %5663 = vmatpush2.bf16.msra.mxu0 %v5219
    %5664 = vmatprep.subr.bf16.mxu0 0
    %5665 = vmatpush2.bf16.msra.mxu0 %v5218
    %5666 = vmatprep.mubr.bf16.mxu0 %v4322
    %5667 = vmatmul.mubr.bf16.gmra.mxu0 %v4321
    %v5668 = vpop.f32.mrf.mxu0
    %v5669 = vadd.f32 %v5629, %v5668
    %v5670 = vpop.f32.mrf.mxu0
    %v5671 = vpop.f32.mrf.mxu0
    %v5672 = vpop.f32.mrf.mxu0
    %5673 = vdwg.mxu0
    %5674 = vst [vmem:[#allocation22] sm:$0x3] %v5669
    // Predicated region
    $region82: #{embedding_model_forward.1} parent=1 // pred_check
      _
    $region83: #{embedding_model_forward.1} parent=1 // pred_check_branch
      %5676 = sbr.rel (0) target = $region85
    $region84: #{embedding_model_forward.1} parent=1 // pred_region
      %s5678 = ssub.s32 32, 32
      %5679 = vsyncadd [#allocation4], %s5678
      %s5681 = sshll.u32 [#allocation19], 4
      %s5682 = int_to_ptr.vmem [resolvable:$true] %s5681
      %5684 = dma.vmem_to_hbm [thread:$0]  %s5682, 32, %s10, [#allocation4]
    $region85: #{embedding_model_forward.1} parent=1 // pred_fallthru
      _
    // Predicated region
    $region86: #{embedding_model_forward.1} parent=1 // pred_check
      _
    $region87: #{embedding_model_forward.1} parent=1 // pred_check_branch
      %5686 = sbr.rel (0) target = $region89
    $region88: #{embedding_model_forward.1} parent=1 // pred_region
      %s5688 = ssub.s32 32, 32
      %5689 = vsyncadd [#allocation21], %s5688
      %s5691 = sshll.u32 [#allocation20], 4
      %s5692 = int_to_ptr.vmem [resolvable:$true] %s5691
      %5694 = dma.vmem_to_hbm [thread:$0]  %s5692, 32, %s11, [#allocation21]
    $region89: #{embedding_model_forward.1} parent=1 // pred_fallthru
      _
    // Predicated region
    $region90: #{embedding_model_forward.1} parent=1 // pred_check
      _
    $region91: #{embedding_model_forward.1} parent=1 // pred_check_branch
      %5696 = sbr.rel (0) target = $region93
    $region92: #{embedding_model_forward.1} parent=1 // pred_region
      %s5698 = ssub.s32 32, 32
      %5699 = vsyncadd [#allocation21], %s5698
      %s5701 = sshll.u32 [#allocation22], 4
      %s5702 = int_to_ptr.vmem [resolvable:$true] %s5701
      %5704 = dma.vmem_to_hbm [thread:$0]  %s5702, 32, %s12, [#allocation21]
    $region93: #{embedding_model_forward.1} parent=1 // pred_fallthru
      _
    // Predicated region
    $region94: #{embedding_model_forward.1} parent=1 // pred_check
      _
    $region95: #{embedding_model_forward.1} parent=1 // pred_check_branch
      %5706 = sbr.rel (0) target = $region97
    $region96: #{embedding_model_forward.1} parent=1 // pred_region
      %5707 = dma.done [#allocation4], 32
    $region97: #{embedding_model_forward.1} parent=1 // pred_fallthru
      _
    // Predicated region
    $region98: #{embedding_model_forward.1} parent=1 // pred_check
      _
    $region99: #{embedding_model_forward.1} parent=1 // pred_check_branch
      %5709 = sbr.rel (0) target = $region101
    $region100: #{embedding_model_forward.1} parent=1 // pred_region
      %5710 = dma.done [#allocation21], 32
    $region101: #{embedding_model_forward.1} parent=1 // pred_fallthru
      _
    // Predicated region
    $region102: #{embedding_model_forward.1} parent=1 // pred_check
      _
    $region103: #{embedding_model_forward.1} parent=1 // pred_check_branch
      %5712 = sbr.rel (0) target = $region105
    $region104: #{embedding_model_forward.1} parent=1 // pred_region
      %5713 = dma.done [#allocation21], 32
    $region105: #{embedding_model_forward.1} parent=1 // pred_fallthru
      _
    %5714 = vsyncpa [#allocation3], 1
    %5715 = vsyncpa [#allocation6], 1
    %5716 = vsyncpa [#allocation9], 1
    %5717 = vsyncpa [#allocation12], 1
    %5718 = vsyncpa [#allocation15], 1
    %5719 = vsyncpa [#allocation18], 1
    %5720 = vsyncpa [#allocation4], 1
    %5721 = vsyncpa [#allocation21], 1

</llo_original>
